<compile_context>
chip_gen: v7x
topology: tpu7x:2x2x1
jax: 0.10.0
libtpu: 0.0.40
codegen_flags: <defaults>
</compile_context>

<pallas_src>
import functools
import math

import jax
import jax.numpy as jnp
from jax.experimental import pallas as pl
from jax.experimental.pallas import tpu as pltpu


def _layer_norm_f32(x, g, b, eps=1e-5):
    # x: (S, E) f32; g, b: (1, E) f32.  Stats in f32 (matches torch LayerNorm).
    mean = jnp.mean(x, axis=-1, keepdims=True)
    var = jnp.mean(jnp.square(x - mean), axis=-1, keepdims=True)
    return (x - mean) * jax.lax.rsqrt(var + eps) * g + b


# ---------------------------------------------------------------------------
# Fused GPT block kernel: one batch element per grid step.
# ---------------------------------------------------------------------------
def _gpt_block_kernel(x_ref, ln1g_ref, ln1b_ref, wqkv_ref, wproj_ref, bproj_ref,
                      ln2g_ref, ln2b_ref, w1_ref, b1_ref, w2_ref, b2_ref,
                      o_ref, cat_ref, *, n_head, head_dim):
    S = x_ref.shape[1]
    HE = n_head * head_dim

    x = x_ref[0].astype(jnp.float32)                       # (S, E) residual stream, f32

    # ---- LN1 -> one lane-dense QKV matmul for all heads (bf16 MXU, f32 acc) ----
    h = _layer_norm_f32(x, ln1g_ref[...], ln1b_ref[...])
    qkv = jnp.dot(h.astype(jnp.bfloat16), wqkv_ref[...],
                  preferred_element_type=jnp.float32).astype(jnp.bfloat16)   # (S, 3*H*E)

    # ---- causal self-attention, heads statically unrolled ----
    row = jax.lax.broadcasted_iota(jnp.int32, (S, S), 0)
    col = jax.lax.broadcasted_iota(jnp.int32, (S, S), 1)
    causal = col <= row                                    # hoisted out of the head loop

    for hd in range(n_head):
        lo = hd * head_dim
        qh = qkv[:, lo:lo + head_dim]
        kh = qkv[:, HE + lo:HE + lo + head_dim]
        vh = qkv[:, 2 * HE + lo:2 * HE + lo + head_dim]
        # NOTE: 1/sqrt(head_dim) is already folded into the Q columns of w_qkv.
        s = jax.lax.dot_general(qh, kh, (((1,), (1,)), ((), ())),
                                preferred_element_type=jnp.float32)
        # -1e30 is safe only because the score tile stays f32 (diagonal never masked).
        s = jnp.where(causal, s, -1e30)
        m = jnp.max(s, axis=-1, keepdims=True)
        p = jnp.exp(s - m)
        p = p * pl.reciprocal(jnp.sum(p, axis=-1, keepdims=True), approx=True)
        out_h = jnp.dot(p.astype(jnp.bfloat16), vh, preferred_element_type=jnp.float32)
        # Store immediately at the head's static lane offset: bounds live ranges,
        # no list-of-heads + concat.
        cat_ref[:, lo:lo + head_dim] = out_h.astype(jnp.bfloat16)

    # ---- head projection + residual ----
    y = jnp.dot(cat_ref[...], wproj_ref[...], preferred_element_type=jnp.float32)
    x = x + y + bproj_ref[...]

    # ---- LN2 -> FFN (Linear -> exact erf GELU in f32 -> Linear) + residual ----
    h2 = _layer_norm_f32(x, ln2g_ref[...], ln2b_ref[...])
    h1 = jnp.dot(h2.astype(jnp.bfloat16), w1_ref[...],
                 preferred_element_type=jnp.float32) + b1_ref[...]
    h1 = 0.5 * h1 * (1.0 + jax.lax.erf(h1 * (1.0 / math.sqrt(2.0))))   # torch nn.GELU (exact)
    y2 = jnp.dot(h1.astype(jnp.bfloat16), w2_ref[...],
                 preferred_element_type=jnp.float32) + b2_ref[...]

    o_ref[0] = (x + y2).astype(o_ref.dtype)


# ---------------------------------------------------------------------------
# pallas_call wrapper (whole GPT block, one launch)
# ---------------------------------------------------------------------------
def gpt_block(params, x):
    B, S, E = x.shape
    n_head = params['w_qkv'].shape[1] // (3 * E)   # per-head width == E (reference layout)
    head_dim = E
    HE = n_head * head_dim

    kern = functools.partial(_gpt_block_kernel, n_head=n_head, head_dim=head_dim)
    const2d = lambda b: (0, 0)                     # weights/biases resident across grid steps

    return pl.pallas_call(
        kern,
        grid=(B,),
        in_specs=[
            pl.BlockSpec((1, S, E), lambda b: (b, 0, 0)),    # x
            pl.BlockSpec((1, E), const2d),                   # ln1_g
            pl.BlockSpec((1, E), const2d),                   # ln1_b
            pl.BlockSpec((E, 3 * HE), const2d),              # w_qkv  (Q | K | V, per head)
            pl.BlockSpec((HE, E), const2d),                  # w_proj
            pl.BlockSpec((1, E), const2d),                   # b_proj
            pl.BlockSpec((1, E), const2d),                   # ln2_g
            pl.BlockSpec((1, E), const2d),                   # ln2_b
            pl.BlockSpec((E, 4 * E), const2d),               # w1
            pl.BlockSpec((1, 4 * E), const2d),               # b1
            pl.BlockSpec((4 * E, E), const2d),               # w2
            pl.BlockSpec((1, E), const2d),                   # b2
        ],
        out_specs=pl.BlockSpec((1, S, E), lambda b: (b, 0, 0)),
        out_shape=jax.ShapeDtypeStruct((B, S, E), x.dtype),
        scratch_shapes=[pltpu.VMEM((S, HE), jnp.bfloat16)],  # per-head output slab
        compiler_params=pltpu.CompilerParams(dimension_semantics=("parallel",)),
    )(x,
      params['ln1_g'].reshape(1, -1), params['ln1_b'].reshape(1, -1),
      params['w_qkv'], params['w_proj'], params['b_proj'].reshape(1, -1),
      params['ln2_g'].reshape(1, -1), params['ln2_b'].reshape(1, -1),
      params['w1'], params['b1'].reshape(1, -1),
      params['w2'], params['b2'].reshape(1, -1))


# ---------------------------------------------------------------------------
# Parameter construction (matches the reference module's init distributions)
# ---------------------------------------------------------------------------
def _uniform(key, shape, fan_in):
    bound = 1.0 / math.sqrt(fan_in)
    return jax.random.uniform(key, shape, jnp.float32, -bound, bound)


def init_params(key, n_head, n_embd):
    E, H = n_embd, n_head
    ks = jax.random.split(key, 7)
    # Per-head torch.randn(E,E) Wq/Wk/Wv packed as [Wq_0..Wq_{H-1} | Wk_* | Wv_*].
    w_qkv = jax.random.normal(ks[0], (E, 3 * H * E), jnp.float32)
    # Fold the attention scale 1/sqrt(head_dim) into the Q columns (constant fold;
    # removes one (S,S) f32 VPU multiply per head per grid step).
    w_qkv = w_qkv.at[:, :H * E].multiply(1.0 / math.sqrt(E))
    return {
        'ln1_g': jnp.ones((E,), jnp.float32),
        'ln1_b': jnp.zeros((E,), jnp.float32),
        'ln2_g': jnp.ones((E,), jnp.float32),
        'ln2_b': jnp.zeros((E,), jnp.float32),
        'w_qkv': w_qkv.astype(jnp.bfloat16),
        'w_proj': _uniform(ks[1], (H * E, E), H * E).astype(jnp.bfloat16),
        'b_proj': _uniform(ks[2], (E,), H * E),
        'w1': _uniform(ks[3], (E, 4 * E), E).astype(jnp.bfloat16),
        'b1': _uniform(ks[4], (4 * E,), E),
        'w2': _uniform(ks[5], (4 * E, E), 4 * E).astype(jnp.bfloat16),
        'b2': _uniform(ks[6], (E,), 4 * E),
    }


# ---------------------------------------------------------------------------
if __name__ == "__main__":
    # Config consistent with GPTConfig(..., n_head=4, n_embd=64, seq_len=128).
    batch, seq_len, n_head, n_embd = 2, 128, 4, 64

    key = jax.random.PRNGKey(0)
    pkey, xkey = jax.random.split(key)
    params = init_params(pkey, n_head, n_embd)
    x = jax.random.normal(xkey, (batch, seq_len, n_embd), jnp.float32)

    y = jax.jit(gpt_block)(params, x)
    jax.block_until_ready(y)
    assert y.shape == (batch, seq_len, n_embd)
    assert bool(jnp.all(jnp.isfinite(y)))
    print("KERNEL_OK")
</pallas_src>

<mosaic_0001>
module attributes {stable_mosaic.version = 11 : i64} {
  func.func @_gpt_block_kernel(%arg0: i32, %arg1: memref<1x128x64xf32, #tpu.memory_space<vmem>>, %arg2: memref<1x64xf32, #tpu.memory_space<vmem>>, %arg3: memref<1x64xf32, #tpu.memory_space<vmem>>, %arg4: memref<64x768xbf16, #tpu.memory_space<vmem>>, %arg5: memref<256x64xbf16, #tpu.memory_space<vmem>>, %arg6: memref<1x64xf32, #tpu.memory_space<vmem>>, %arg7: memref<1x64xf32, #tpu.memory_space<vmem>>, %arg8: memref<1x64xf32, #tpu.memory_space<vmem>>, %arg9: memref<64x256xbf16, #tpu.memory_space<vmem>>, %arg10: memref<1x256xf32, #tpu.memory_space<vmem>>, %arg11: memref<256x64xbf16, #tpu.memory_space<vmem>>, %arg12: memref<1x64xf32, #tpu.memory_space<vmem>>, %arg13: memref<1x128x64xf32, #tpu.memory_space<vmem>>, %arg14: memref<128x256xbf16, #tpu.memory_space<vmem>>) attributes {dimension_semantics = [#tpu.dimension_semantics<parallel>], iteration_bounds = array<i64: 2>, scalar_prefetch = 0 : i64, scratch_operands = 1 : i64, tpu.core_type = #tpu.core_type<tc>, window_params = [{transform_indices = @transform_0, window_bounds = array<i64: 1, 128, 64>}, {pipeline_mode = #tpu.pipeline_mode<synchronous>, transform_indices = @transform_1, window_bounds = array<i64: 1, 64>}, {pipeline_mode = #tpu.pipeline_mode<synchronous>, transform_indices = @transform_2, window_bounds = array<i64: 1, 64>}, {pipeline_mode = #tpu.pipeline_mode<synchronous>, transform_indices = @transform_3, window_bounds = array<i64: 64, 768>}, {pipeline_mode = #tpu.pipeline_mode<synchronous>, transform_indices = @transform_4, window_bounds = array<i64: 256, 64>}, {pipeline_mode = #tpu.pipeline_mode<synchronous>, transform_indices = @transform_5, window_bounds = array<i64: 1, 64>}, {pipeline_mode = #tpu.pipeline_mode<synchronous>, transform_indices = @transform_6, window_bounds = array<i64: 1, 64>}, {pipeline_mode = #tpu.pipeline_mode<synchronous>, transform_indices = @transform_7, window_bounds = array<i64: 1, 64>}, {pipeline_mode = #tpu.pipeline_mode<synchronous>, transform_indices = @transform_8, window_bounds = array<i64: 64, 256>}, {pipeline_mode = #tpu.pipeline_mode<synchronous>, transform_indices = @transform_9, window_bounds = array<i64: 1, 256>}, {pipeline_mode = #tpu.pipeline_mode<synchronous>, transform_indices = @transform_10, window_bounds = array<i64: 256, 64>}, {pipeline_mode = #tpu.pipeline_mode<synchronous>, transform_indices = @transform_11, window_bounds = array<i64: 1, 64>}, {transform_indices = @transform_12, window_bounds = array<i64: 1, 128, 64>}]} {
    %c0 = arith.constant 0 : index
    %c0_0 = arith.constant 0 : index
    %c0_1 = arith.constant 0 : index
    %0 = vector.load %arg1[%c0, %c0_0, %c0_1] : memref<1x128x64xf32, #tpu.memory_space<vmem>>, vector<1x128x64xf32>
    %1 = vector.shape_cast %0 : vector<1x128x64xf32> to vector<128x64xf32>
    %c0_2 = arith.constant 0 : index
    %c0_3 = arith.constant 0 : index
    %2 = vector.load %arg2[%c0_2, %c0_3] : memref<1x64xf32, #tpu.memory_space<vmem>>, vector<1x64xf32>
    %c0_4 = arith.constant 0 : index
    %c0_5 = arith.constant 0 : index
    %3 = vector.load %arg3[%c0_4, %c0_5] : memref<1x64xf32, #tpu.memory_space<vmem>>, vector<1x64xf32>
    %cst = arith.constant dense<0.000000e+00> : vector<128xf32>
    %4 = vector.multi_reduction <add>, %1, %cst [1] : vector<128x64xf32> to vector<128xf32>
    %5 = vector.shape_cast %4 : vector<128xf32> to vector<128x1xf32>
    %cst_6 = arith.constant 6.400000e+01 : f32
    %6 = vector.broadcast %cst_6 : f32 to vector<128x1xf32>
    %7 = arith.divf %5, %6 : vector<128x1xf32>
    %8 = vector.broadcast %7 : vector<128x1xf32> to vector<128x64xf32>
    %9 = arith.subf %1, %8 : vector<128x64xf32>
    %10 = arith.mulf %9, %9 : vector<128x64xf32>
    %cst_7 = arith.constant dense<0.000000e+00> : vector<128xf32>
    %11 = vector.multi_reduction <add>, %10, %cst_7 [1] : vector<128x64xf32> to vector<128xf32>
    %12 = vector.shape_cast %11 : vector<128xf32> to vector<128x1xf32>
    %cst_8 = arith.constant 6.400000e+01 : f32
    %13 = vector.broadcast %cst_8 : f32 to vector<128x1xf32>
    %14 = arith.divf %12, %13 : vector<128x1xf32>
    %15 = vector.broadcast %7 : vector<128x1xf32> to vector<128x64xf32>
    %16 = arith.subf %1, %15 : vector<128x64xf32>
    %cst_9 = arith.constant 9.99999974E-6 : f32
    %17 = vector.broadcast %cst_9 : f32 to vector<128x1xf32>
    %18 = arith.addf %14, %17 : vector<128x1xf32>
    %19 = math.rsqrt %18 : vector<128x1xf32>
    %20 = vector.broadcast %19 : vector<128x1xf32> to vector<128x64xf32>
    %21 = arith.mulf %16, %20 : vector<128x64xf32>
    %22 = vector.broadcast %2 : vector<1x64xf32> to vector<128x64xf32>
    %23 = arith.mulf %21, %22 : vector<128x64xf32>
    %24 = vector.broadcast %3 : vector<1x64xf32> to vector<128x64xf32>
    %25 = arith.addf %23, %24 : vector<128x64xf32>
    %26 = arith.truncf %25 : vector<128x64xf32> to vector<128x64xbf16>
    %c0_10 = arith.constant 0 : index
    %c0_11 = arith.constant 0 : index
    %27 = vector.load %arg4[%c0_10, %c0_11] : memref<64x768xbf16, #tpu.memory_space<vmem>>, vector<64x768xbf16>
    %cst_12 = arith.constant dense<0.000000e+00> : vector<128x768xf32>
    %28 = tpu.matmul %26, %27, %cst_12 {dimension_numbers = #tpu.dot_dimension_numbers<[1], [0], [0], [1], [0, 0, 1, 1], [], []>} : vector<128x64xbf16>, vector<64x768xbf16>, vector<128x768xf32> -> vector<128x768xf32>
    %29 = arith.truncf %28 : vector<128x768xf32> to vector<128x768xbf16>
    %30 = tpu.iota {dimensions = array<i32: 0>} : vector<128x128xi32>
    %31 = tpu.iota {dimensions = array<i32: 1>} : vector<128x128xi32>
    %32 = arith.cmpi sle, %31, %30 : vector<128x128xi32>
    %33 = vector.extract_strided_slice %29 {offsets = [0, 0], sizes = [128, 64], strides = [1, 1]} : vector<128x768xbf16> to vector<128x64xbf16>
    %34 = vector.extract_strided_slice %29 {offsets = [0, 256], sizes = [128, 64], strides = [1, 1]} : vector<128x768xbf16> to vector<128x64xbf16>
    %35 = vector.extract_strided_slice %29 {offsets = [0, 512], sizes = [128, 64], strides = [1, 1]} : vector<128x768xbf16> to vector<128x64xbf16>
    %cst_13 = arith.constant dense<0.000000e+00> : vector<128x128xf32>
    %36 = tpu.matmul %33, %34, %cst_13 {dimension_numbers = #tpu.dot_dimension_numbers<[1], [1], [0], [0], [0, 0, 1, 0], [], []>} : vector<128x64xbf16>, vector<128x64xbf16>, vector<128x128xf32> -> vector<128x128xf32>
    %cst_14 = arith.constant -1.000000e+30 : f32
    %37 = vector.broadcast %cst_14 : f32 to vector<128x128xf32>
    %38 = arith.select %32, %36, %37 : vector<128x128xi1>, vector<128x128xf32>
    %cst_15 = arith.constant dense<0xFF800000> : vector<128xf32>
    %39 = vector.multi_reduction <maximumf>, %38, %cst_15 [1] : vector<128x128xf32> to vector<128xf32>
    %40 = vector.shape_cast %39 : vector<128xf32> to vector<128x1xf32>
    %41 = vector.broadcast %40 : vector<128x1xf32> to vector<128x128xf32>
    %42 = arith.subf %38, %41 : vector<128x128xf32>
    %43 = math.exp %42 : vector<128x128xf32>
    %cst_16 = arith.constant dense<0.000000e+00> : vector<128xf32>
    %44 = vector.multi_reduction <add>, %43, %cst_16 [1] : vector<128x128xf32> to vector<128xf32>
    %45 = vector.shape_cast %44 : vector<128xf32> to vector<128x1xf32>
    %46 = tpu.reciprocal %45 {approx = true} : vector<128x1xf32> -> vector<128x1xf32>
    %47 = vector.broadcast %46 : vector<128x1xf32> to vector<128x128xf32>
    %48 = arith.mulf %43, %47 : vector<128x128xf32>
    %49 = arith.truncf %48 : vector<128x128xf32> to vector<128x128xbf16>
    %cst_17 = arith.constant dense<0.000000e+00> : vector<128x64xf32>
    %50 = tpu.matmul %49, %35, %cst_17 {dimension_numbers = #tpu.dot_dimension_numbers<[1], [0], [0], [1], [0, 0, 1, 1], [], []>} : vector<128x128xbf16>, vector<128x64xbf16>, vector<128x64xf32> -> vector<128x64xf32>
    %51 = arith.truncf %50 : vector<128x64xf32> to vector<128x64xbf16>
    %c0_18 = arith.constant 0 : index
    %c0_19 = arith.constant 0 : index
    %52 = vector.load %arg14[%c0_18, %c0_19] : memref<128x256xbf16, #tpu.memory_space<vmem>>, vector<128x64xbf16>
    tpu.vector_store %arg14[%c0_18, %c0_19], %51 {strides = array<i32>} : memref<128x256xbf16, #tpu.memory_space<vmem>>, vector<128x64xbf16>,
    %53 = vector.extract_strided_slice %29 {offsets = [0, 64], sizes = [128, 64], strides = [1, 1]} : vector<128x768xbf16> to vector<128x64xbf16>
    %54 = vector.extract_strided_slice %29 {offsets = [0, 320], sizes = [128, 64], strides = [1, 1]} : vector<128x768xbf16> to vector<128x64xbf16>
    %55 = vector.extract_strided_slice %29 {offsets = [0, 576], sizes = [128, 64], strides = [1, 1]} : vector<128x768xbf16> to vector<128x64xbf16>
    %cst_20 = arith.constant dense<0.000000e+00> : vector<128x128xf32>
    %56 = tpu.matmul %53, %54, %cst_20 {dimension_numbers = #tpu.dot_dimension_numbers<[1], [1], [0], [0], [0, 0, 1, 0], [], []>} : vector<128x64xbf16>, vector<128x64xbf16>, vector<128x128xf32> -> vector<128x128xf32>
    %cst_21 = arith.constant -1.000000e+30 : f32
    %57 = vector.broadcast %cst_21 : f32 to vector<128x128xf32>
    %58 = arith.select %32, %56, %57 : vector<128x128xi1>, vector<128x128xf32>
    %cst_22 = arith.constant dense<0xFF800000> : vector<128xf32>
    %59 = vector.multi_reduction <maximumf>, %58, %cst_22 [1] : vector<128x128xf32> to vector<128xf32>
    %60 = vector.shape_cast %59 : vector<128xf32> to vector<128x1xf32>
    %61 = vector.broadcast %60 : vector<128x1xf32> to vector<128x128xf32>
    %62 = arith.subf %58, %61 : vector<128x128xf32>
    %63 = math.exp %62 : vector<128x128xf32>
    %cst_23 = arith.constant dense<0.000000e+00> : vector<128xf32>
    %64 = vector.multi_reduction <add>, %63, %cst_23 [1] : vector<128x128xf32> to vector<128xf32>
    %65 = vector.shape_cast %64 : vector<128xf32> to vector<128x1xf32>
    %66 = tpu.reciprocal %65 {approx = true} : vector<128x1xf32> -> vector<128x1xf32>
    %67 = vector.broadcast %66 : vector<128x1xf32> to vector<128x128xf32>
    %68 = arith.mulf %63, %67 : vector<128x128xf32>
    %69 = arith.truncf %68 : vector<128x128xf32> to vector<128x128xbf16>
    %cst_24 = arith.constant dense<0.000000e+00> : vector<128x64xf32>
    %70 = tpu.matmul %69, %55, %cst_24 {dimension_numbers = #tpu.dot_dimension_numbers<[1], [0], [0], [1], [0, 0, 1, 1], [], []>} : vector<128x128xbf16>, vector<128x64xbf16>, vector<128x64xf32> -> vector<128x64xf32>
    %71 = arith.truncf %70 : vector<128x64xf32> to vector<128x64xbf16>
    %c0_25 = arith.constant 0 : index
    %c64 = arith.constant 64 : index
    %72 = vector.load %arg14[%c0_25, %c64] : memref<128x256xbf16, #tpu.memory_space<vmem>>, vector<128x64xbf16>
    tpu.vector_store %arg14[%c0_25, %c64], %71 {strides = array<i32>} : memref<128x256xbf16, #tpu.memory_space<vmem>>, vector<128x64xbf16>,
    %73 = vector.extract_strided_slice %29 {offsets = [0, 128], sizes = [128, 64], strides = [1, 1]} : vector<128x768xbf16> to vector<128x64xbf16>
    %74 = vector.extract_strided_slice %29 {offsets = [0, 384], sizes = [128, 64], strides = [1, 1]} : vector<128x768xbf16> to vector<128x64xbf16>
    %75 = vector.extract_strided_slice %29 {offsets = [0, 640], sizes = [128, 64], strides = [1, 1]} : vector<128x768xbf16> to vector<128x64xbf16>
    %cst_26 = arith.constant dense<0.000000e+00> : vector<128x128xf32>
    %76 = tpu.matmul %73, %74, %cst_26 {dimension_numbers = #tpu.dot_dimension_numbers<[1], [1], [0], [0], [0, 0, 1, 0], [], []>} : vector<128x64xbf16>, vector<128x64xbf16>, vector<128x128xf32> -> vector<128x128xf32>
    %cst_27 = arith.constant -1.000000e+30 : f32
    %77 = vector.broadcast %cst_27 : f32 to vector<128x128xf32>
    %78 = arith.select %32, %76, %77 : vector<128x128xi1>, vector<128x128xf32>
    %cst_28 = arith.constant dense<0xFF800000> : vector<128xf32>
    %79 = vector.multi_reduction <maximumf>, %78, %cst_28 [1] : vector<128x128xf32> to vector<128xf32>
    %80 = vector.shape_cast %79 : vector<128xf32> to vector<128x1xf32>
    %81 = vector.broadcast %80 : vector<128x1xf32> to vector<128x128xf32>
    %82 = arith.subf %78, %81 : vector<128x128xf32>
    %83 = math.exp %82 : vector<128x128xf32>
    %cst_29 = arith.constant dense<0.000000e+00> : vector<128xf32>
    %84 = vector.multi_reduction <add>, %83, %cst_29 [1] : vector<128x128xf32> to vector<128xf32>
    %85 = vector.shape_cast %84 : vector<128xf32> to vector<128x1xf32>
    %86 = tpu.reciprocal %85 {approx = true} : vector<128x1xf32> -> vector<128x1xf32>
    %87 = vector.broadcast %86 : vector<128x1xf32> to vector<128x128xf32>
    %88 = arith.mulf %83, %87 : vector<128x128xf32>
    %89 = arith.truncf %88 : vector<128x128xf32> to vector<128x128xbf16>
    %cst_30 = arith.constant dense<0.000000e+00> : vector<128x64xf32>
    %90 = tpu.matmul %89, %75, %cst_30 {dimension_numbers = #tpu.dot_dimension_numbers<[1], [0], [0], [1], [0, 0, 1, 1], [], []>} : vector<128x128xbf16>, vector<128x64xbf16>, vector<128x64xf32> -> vector<128x64xf32>
    %91 = arith.truncf %90 : vector<128x64xf32> to vector<128x64xbf16>
    %c0_31 = arith.constant 0 : index
    %c128 = arith.constant 128 : index
    %92 = vector.load %arg14[%c0_31, %c128] : memref<128x256xbf16, #tpu.memory_space<vmem>>, vector<128x64xbf16>
    tpu.vector_store %arg14[%c0_31, %c128], %91 {strides = array<i32>} : memref<128x256xbf16, #tpu.memory_space<vmem>>, vector<128x64xbf16>,
    %93 = vector.extract_strided_slice %29 {offsets = [0, 192], sizes = [128, 64], strides = [1, 1]} : vector<128x768xbf16> to vector<128x64xbf16>
    %94 = vector.extract_strided_slice %29 {offsets = [0, 448], sizes = [128, 64], strides = [1, 1]} : vector<128x768xbf16> to vector<128x64xbf16>
    %95 = vector.extract_strided_slice %29 {offsets = [0, 704], sizes = [128, 64], strides = [1, 1]} : vector<128x768xbf16> to vector<128x64xbf16>
    %cst_32 = arith.constant dense<0.000000e+00> : vector<128x128xf32>
    %96 = tpu.matmul %93, %94, %cst_32 {dimension_numbers = #tpu.dot_dimension_numbers<[1], [1], [0], [0], [0, 0, 1, 0], [], []>} : vector<128x64xbf16>, vector<128x64xbf16>, vector<128x128xf32> -> vector<128x128xf32>
    %cst_33 = arith.constant -1.000000e+30 : f32
    %97 = vector.broadcast %cst_33 : f32 to vector<128x128xf32>
    %98 = arith.select %32, %96, %97 : vector<128x128xi1>, vector<128x128xf32>
    %cst_34 = arith.constant dense<0xFF800000> : vector<128xf32>
    %99 = vector.multi_reduction <maximumf>, %98, %cst_34 [1] : vector<128x128xf32> to vector<128xf32>
    %100 = vector.shape_cast %99 : vector<128xf32> to vector<128x1xf32>
    %101 = vector.broadcast %100 : vector<128x1xf32> to vector<128x128xf32>
    %102 = arith.subf %98, %101 : vector<128x128xf32>
    %103 = math.exp %102 : vector<128x128xf32>
    %cst_35 = arith.constant dense<0.000000e+00> : vector<128xf32>
    %104 = vector.multi_reduction <add>, %103, %cst_35 [1] : vector<128x128xf32> to vector<128xf32>
    %105 = vector.shape_cast %104 : vector<128xf32> to vector<128x1xf32>
    %106 = tpu.reciprocal %105 {approx = true} : vector<128x1xf32> -> vector<128x1xf32>
    %107 = vector.broadcast %106 : vector<128x1xf32> to vector<128x128xf32>
    %108 = arith.mulf %103, %107 : vector<128x128xf32>
    %109 = arith.truncf %108 : vector<128x128xf32> to vector<128x128xbf16>
    %cst_36 = arith.constant dense<0.000000e+00> : vector<128x64xf32>
    %110 = tpu.matmul %109, %95, %cst_36 {dimension_numbers = #tpu.dot_dimension_numbers<[1], [0], [0], [1], [0, 0, 1, 1], [], []>} : vector<128x128xbf16>, vector<128x64xbf16>, vector<128x64xf32> -> vector<128x64xf32>
    %111 = arith.truncf %110 : vector<128x64xf32> to vector<128x64xbf16>
    %c0_37 = arith.constant 0 : index
    %c192 = arith.constant 192 : index
    %112 = vector.load %arg14[%c0_37, %c192] : memref<128x256xbf16, #tpu.memory_space<vmem>>, vector<128x64xbf16>
    tpu.vector_store %arg14[%c0_37, %c192], %111 {strides = array<i32>} : memref<128x256xbf16, #tpu.memory_space<vmem>>, vector<128x64xbf16>,
    %c0_38 = arith.constant 0 : index
    %c0_39 = arith.constant 0 : index
    %113 = vector.load %arg14[%c0_38, %c0_39] : memref<128x256xbf16, #tpu.memory_space<vmem>>, vector<128x256xbf16>
    %c0_40 = arith.constant 0 : index
    %c0_41 = arith.constant 0 : index
    %114 = vector.load %arg5[%c0_40, %c0_41] : memref<256x64xbf16, #tpu.memory_space<vmem>>, vector<256x64xbf16>
    %cst_42 = arith.constant dense<0.000000e+00> : vector<128x64xf32>
    %115 = tpu.matmul %113, %114, %cst_42 {dimension_numbers = #tpu.dot_dimension_numbers<[1], [0], [0], [1], [0, 0, 1, 1], [], []>} : vector<128x256xbf16>, vector<256x64xbf16>, vector<128x64xf32> -> vector<128x64xf32>
    %116 = arith.addf %1, %115 : vector<128x64xf32>
    %c0_43 = arith.constant 0 : index
    %c0_44 = arith.constant 0 : index
    %117 = vector.load %arg6[%c0_43, %c0_44] : memref<1x64xf32, #tpu.memory_space<vmem>>, vector<1x64xf32>
    %118 = vector.broadcast %117 : vector<1x64xf32> to vector<128x64xf32>
    %119 = arith.addf %116, %118 : vector<128x64xf32>
    %c0_45 = arith.constant 0 : index
    %c0_46 = arith.constant 0 : index
    %120 = vector.load %arg7[%c0_45, %c0_46] : memref<1x64xf32, #tpu.memory_space<vmem>>, vector<1x64xf32>
    %c0_47 = arith.constant 0 : index
    %c0_48 = arith.constant 0 : index
    %121 = vector.load %arg8[%c0_47, %c0_48] : memref<1x64xf32, #tpu.memory_space<vmem>>, vector<1x64xf32>
    %cst_49 = arith.constant dense<0.000000e+00> : vector<128xf32>
    %122 = vector.multi_reduction <add>, %119, %cst_49 [1] : vector<128x64xf32> to vector<128xf32>
    %123 = vector.shape_cast %122 : vector<128xf32> to vector<128x1xf32>
    %cst_50 = arith.constant 6.400000e+01 : f32
    %124 = vector.broadcast %cst_50 : f32 to vector<128x1xf32>
    %125 = arith.divf %123, %124 : vector<128x1xf32>
    %126 = vector.broadcast %125 : vector<128x1xf32> to vector<128x64xf32>
    %127 = arith.subf %119, %126 : vector<128x64xf32>
    %128 = arith.mulf %127, %127 : vector<128x64xf32>
    %cst_51 = arith.constant dense<0.000000e+00> : vector<128xf32>
    %129 = vector.multi_reduction <add>, %128, %cst_51 [1] : vector<128x64xf32> to vector<128xf32>
    %130 = vector.shape_cast %129 : vector<128xf32> to vector<128x1xf32>
    %cst_52 = arith.constant 6.400000e+01 : f32
    %131 = vector.broadcast %cst_52 : f32 to vector<128x1xf32>
    %132 = arith.divf %130, %131 : vector<128x1xf32>
    %133 = vector.broadcast %125 : vector<128x1xf32> to vector<128x64xf32>
    %134 = arith.subf %119, %133 : vector<128x64xf32>
    %cst_53 = arith.constant 9.99999974E-6 : f32
    %135 = vector.broadcast %cst_53 : f32 to vector<128x1xf32>
    %136 = arith.addf %132, %135 : vector<128x1xf32>
    %137 = math.rsqrt %136 : vector<128x1xf32>
    %138 = vector.broadcast %137 : vector<128x1xf32> to vector<128x64xf32>
    %139 = arith.mulf %134, %138 : vector<128x64xf32>
    %140 = vector.broadcast %120 : vector<1x64xf32> to vector<128x64xf32>
    %141 = arith.mulf %139, %140 : vector<128x64xf32>
    %142 = vector.broadcast %121 : vector<1x64xf32> to vector<128x64xf32>
    %143 = arith.addf %141, %142 : vector<128x64xf32>
    %144 = arith.truncf %143 : vector<128x64xf32> to vector<128x64xbf16>
    %c0_54 = arith.constant 0 : index
    %c0_55 = arith.constant 0 : index
    %145 = vector.load %arg9[%c0_54, %c0_55] : memref<64x256xbf16, #tpu.memory_space<vmem>>, vector<64x256xbf16>
    %cst_56 = arith.constant dense<0.000000e+00> : vector<128x256xf32>
    %146 = tpu.matmul %144, %145, %cst_56 {dimension_numbers = #tpu.dot_dimension_numbers<[1], [0], [0], [1], [0, 0, 1, 1], [], []>} : vector<128x64xbf16>, vector<64x256xbf16>, vector<128x256xf32> -> vector<128x256xf32>
    %c0_57 = arith.constant 0 : index
    %c0_58 = arith.constant 0 : index
    %147 = vector.load %arg10[%c0_57, %c0_58] : memref<1x256xf32, #tpu.memory_space<vmem>>, vector<1x256xf32>
    %148 = vector.broadcast %147 : vector<1x256xf32> to vector<128x256xf32>
    %149 = arith.addf %146, %148 : vector<128x256xf32>
    %cst_59 = arith.constant 5.000000e-01 : f32
    %150 = vector.broadcast %cst_59 : f32 to vector<128x256xf32>
    %151 = arith.mulf %150, %149 : vector<128x256xf32>
    %cst_60 = arith.constant 0.707106769 : f32
    %152 = vector.broadcast %cst_60 : f32 to vector<128x256xf32>
    %153 = arith.mulf %149, %152 : vector<128x256xf32>
    %154 = math.erf %153 : vector<128x256xf32>
    %cst_61 = arith.constant 1.000000e+00 : f32
    %155 = vector.broadcast %cst_61 : f32 to vector<128x256xf32>
    %156 = arith.addf %155, %154 : vector<128x256xf32>
    %157 = arith.mulf %151, %156 : vector<128x256xf32>
    %158 = arith.truncf %157 : vector<128x256xf32> to vector<128x256xbf16>
    %c0_62 = arith.constant 0 : index
    %c0_63 = arith.constant 0 : index
    %159 = vector.load %arg11[%c0_62, %c0_63] : memref<256x64xbf16, #tpu.memory_space<vmem>>, vector<256x64xbf16>
    %cst_64 = arith.constant dense<0.000000e+00> : vector<128x64xf32>
    %160 = tpu.matmul %158, %159, %cst_64 {dimension_numbers = #tpu.dot_dimension_numbers<[1], [0], [0], [1], [0, 0, 1, 1], [], []>} : vector<128x256xbf16>, vector<256x64xbf16>, vector<128x64xf32> -> vector<128x64xf32>
    %c0_65 = arith.constant 0 : index
    %c0_66 = arith.constant 0 : index
    %161 = vector.load %arg12[%c0_65, %c0_66] : memref<1x64xf32, #tpu.memory_space<vmem>>, vector<1x64xf32>
    %162 = vector.broadcast %161 : vector<1x64xf32> to vector<128x64xf32>
    %163 = arith.addf %160, %162 : vector<128x64xf32>
    %164 = arith.addf %119, %163 : vector<128x64xf32>
    %c0_67 = arith.constant 0 : index
    %c0_68 = arith.constant 0 : index
    %c0_69 = arith.constant 0 : index
    %165 = vector.load %arg13[%c0_67, %c0_68, %c0_69] : memref<1x128x64xf32, #tpu.memory_space<vmem>>, vector<1x128x64xf32>
    %166 = vector.shape_cast %165 : vector<1x128x64xf32> to vector<128x64xf32>
    %167 = vector.shape_cast %164 : vector<128x64xf32> to vector<1x128x64xf32>
    tpu.vector_store %arg13[%c0_67, %c0_68, %c0_69], %167 {strides = array<i32>} : memref<1x128x64xf32, #tpu.memory_space<vmem>>, vector<1x128x64xf32>,
    return
  }
  func.func @transform_0(%arg0: i32) -> (i32, i32, i32) {
    %c0_i32 = arith.constant 0 : i32
    %c0_i32_0 = arith.constant 0 : i32
    %c0_i32_1 = arith.constant 0 : i32
    return %arg0, %c0_i32, %c0_i32_0 : i32, i32, i32
  }
  func.func @transform_1(%arg0: i32) -> (i32, i32) {
    %c0_i32 = arith.constant 0 : i32
    %c0_i32_0 = arith.constant 0 : i32
    %c0_i32_1 = arith.constant 0 : i32
    return %c0_i32, %c0_i32_0 : i32, i32
  }
  func.func @transform_2(%arg0: i32) -> (i32, i32) {
    %c0_i32 = arith.constant 0 : i32
    %c0_i32_0 = arith.constant 0 : i32
    %c0_i32_1 = arith.constant 0 : i32
    return %c0_i32, %c0_i32_0 : i32, i32
  }
  func.func @transform_3(%arg0: i32) -> (i32, i32) {
    %c0_i32 = arith.constant 0 : i32
    %c0_i32_0 = arith.constant 0 : i32
    %c0_i32_1 = arith.constant 0 : i32
    return %c0_i32, %c0_i32_0 : i32, i32
  }
  func.func @transform_4(%arg0: i32) -> (i32, i32) {
    %c0_i32 = arith.constant 0 : i32
    %c0_i32_0 = arith.constant 0 : i32
    %c0_i32_1 = arith.constant 0 : i32
    return %c0_i32, %c0_i32_0 : i32, i32
  }
  func.func @transform_5(%arg0: i32) -> (i32, i32) {
    %c0_i32 = arith.constant 0 : i32
    %c0_i32_0 = arith.constant 0 : i32
    %c0_i32_1 = arith.constant 0 : i32
    return %c0_i32, %c0_i32_0 : i32, i32
  }
  func.func @transform_6(%arg0: i32) -> (i32, i32) {
    %c0_i32 = arith.constant 0 : i32
    %c0_i32_0 = arith.constant 0 : i32
    %c0_i32_1 = arith.constant 0 : i32
    return %c0_i32, %c0_i32_0 : i32, i32
  }
  func.func @transform_7(%arg0: i32) -> (i32, i32) {
    %c0_i32 = arith.constant 0 : i32
    %c0_i32_0 = arith.constant 0 : i32
    %c0_i32_1 = arith.constant 0 : i32
    return %c0_i32, %c0_i32_0 : i32, i32
  }
  func.func @transform_8(%arg0: i32) -> (i32, i32) {
    %c0_i32 = arith.constant 0 : i32
    %c0_i32_0 = arith.constant 0 : i32
    %c0_i32_1 = arith.constant 0 : i32
    return %c0_i32, %c0_i32_0 : i32, i32
  }
  func.func @transform_9(%arg0: i32) -> (i32, i32) {
    %c0_i32 = arith.constant 0 : i32
    %c0_i32_0 = arith.constant 0 : i32
    %c0_i32_1 = arith.constant 0 : i32
    return %c0_i32, %c0_i32_0 : i32, i32
  }
  func.func @transform_10(%arg0: i32) -> (i32, i32) {
    %c0_i32 = arith.constant 0 : i32
    %c0_i32_0 = arith.constant 0 : i32
    %c0_i32_1 = arith.constant 0 : i32
    return %c0_i32, %c0_i32_0 : i32, i32
  }
  func.func @transform_11(%arg0: i32) -> (i32, i32) {
    %c0_i32 = arith.constant 0 : i32
    %c0_i32_0 = arith.constant 0 : i32
    %c0_i32_1 = arith.constant 0 : i32
    return %c0_i32, %c0_i32_0 : i32, i32
  }
  func.func @transform_12(%arg0: i32) -> (i32, i32, i32) {
    %c0_i32 = arith.constant 0 : i32
    %c0_i32_0 = arith.constant 0 : i32
    %c0_i32_1 = arith.constant 0 : i32
    return %arg0, %c0_i32, %c0_i32_0 : i32, i32, i32
  }
}

</mosaic_0001>

<llo_original>
// kernel: gpt_block.1
$region0: #{gpt_block.1}
  #allocation0 [shape = 'u32[]', space=smem, size = 0x4, offset = 0x4, fixed_abs, tag = 'smem constant byte address 0x4 - core index']
  #allocation1 [shape = 'u32[144,128]{1,0:T(1,128)}', space=vmem, size = 0x12000, scoped, tag = 'internal scratch']
  #allocation2 [shape = 'bf16[128,256]{1,0:T(16,128)(2,1)}', space=vmem, size = 0x10000, scoped, tag = 'scratch operand']
  %s0 = inlined_call_operand.vmem [shape: f32[2,128,64], index: 0, kind: input, shape index: {}]
  %s1 = inlined_call_operand.vmem [shape: f32[1,64], index: 1, kind: input, shape index: {}]
  %s2 = inlined_call_operand.vmem [shape: f32[1,64], index: 2, kind: input, shape index: {}]
  %s3 = inlined_call_operand.vmem [shape: bf16[64,768], index: 3, kind: input, shape index: {}]
  %s4 = inlined_call_operand.vmem [shape: bf16[256,64], index: 4, kind: input, shape index: {}]
  %s5 = inlined_call_operand.vmem [shape: f32[1,64], index: 5, kind: input, shape index: {}]
  %s6 = inlined_call_operand.vmem [shape: f32[1,64], index: 6, kind: input, shape index: {}]
  %s7 = inlined_call_operand.vmem [shape: f32[1,64], index: 7, kind: input, shape index: {}]
  %s8 = inlined_call_operand.vmem [shape: bf16[64,256], index: 8, kind: input, shape index: {}]
  %s9 = inlined_call_operand.vmem [shape: f32[1,256], index: 9, kind: input, shape index: {}]
  %s10 = inlined_call_operand.vmem [shape: bf16[256,64], index: 10, kind: input, shape index: {}]
  %s11 = inlined_call_operand.vmem [shape: f32[1,64], index: 11, kind: input, shape index: {}]
  %s12 = inlined_call_operand.vmem [shape: f32[2,128,64], index: 12, kind: output, shape index: {}]
  %s13 = sld [smem:[#allocation0]]
  $region81: #{gpt_block.1} parent=0
    _
  %s15 = ssub.s32 1, %s13
  %s16 = scalar_select 0, %s15, %s13
  loop: start=0, step=1, limit=4
  $region2: #{gpt_block.1} parent=0 // loop_pre_header
    _
  $region3: #{gpt_block.1} parent=0 // loop_header
    %s18 = sphi 0, %s22
    %p19 = scmp.ge.s32.totalorder %s18, 4
    %s28 = sphi 0, %s30
    %s31 = sphi 0, %s28
    %s32 = sphi 0, %s31
    %s48 = sphi 0, %s32
    %s52 = sphi 0, %s52
    %s54 = sphi 0, %s52
    %s55 = sphi 0, %s54
    %s69 = sphi 0, %s55
    %s73 = sphi 0, %s73
    %s75 = sphi 0, %s73
    %s76 = sphi 0, %s75
    %s90 = sphi 0, %s76
    %s94 = sphi 0, %s94
    %s96 = sphi 0, %s94
    %s97 = sphi 0, %s96
    %s111 = sphi 0, %s97
    %s115 = sphi 0, %s115
    %s117 = sphi 0, %s115
    %s118 = sphi 0, %s117
    %s132 = sphi 0, %s118
    %s136 = sphi 0, %s136
    %s138 = sphi 0, %s136
    %s139 = sphi 0, %s138
    %s153 = sphi 0, %s139
    %s157 = sphi 0, %s157
    %s159 = sphi 0, %s157
    %s160 = sphi 0, %s159
    %s174 = sphi 0, %s160
    %s178 = sphi 0, %s178
    %s180 = sphi 0, %s178
    %s181 = sphi 0, %s180
    %s195 = sphi 0, %s181
    %s199 = sphi 0, %s199
    %s201 = sphi 0, %s199
    %s202 = sphi 0, %s201
    %s216 = sphi 0, %s202
    %s220 = sphi 0, %s220
    %s222 = sphi 0, %s220
    %s223 = sphi 0, %s222
    %s237 = sphi 0, %s223
    %s241 = sphi 0, %s241
    %s243 = sphi 0, %s241
    %s244 = sphi 0, %s243
    %s258 = sphi 0, %s244
    %s262 = sphi 0, %s262
    %s264 = sphi 0, %s262
    %s265 = sphi 0, %s264
    %s279 = sphi 0, %s265
    %s285 = sphi 0, %s287
    %s288 = sphi 0, %s285
    %s289 = sphi 0, %s288
    %s305 = sphi 0, %s289
  $region4: #{gpt_block.1} parent=0 // loop_header_branch
    %21 = sbr.rel (%p19) target = $region8
  $region5: #{gpt_block.1} parent=0 // loop_body
    %s23 = ssub.s32 %s18, 1
    %s24 = ssub.s32 %s18, 2
    %s25 = sadd.s32 %s18, 1
    %s26 = ssub.s32 %s18, %s25
    %p27 = scmp.eq.s32.totalorder %s26, 0
    %s29 = sadd.s32 %s28, 1
    %s30 = scalar_select %p27, %s28, %s29
    %p33 = pneg %p27
    %p34 = scmp.eq.s32.totalorder %s18, 1
    %p35 = por %p33, %p34
    %p36 = scmp.ne.s32.totalorder %s28, %s31
    %p37 = scmp.eq.s32.totalorder %s18, 0
    %p38 = por %p36, %p37
    %p39 = scmp.ne.s32.totalorder %s28, %s31
    %p40 = scmp.eq.s32.totalorder %s23, 1
    %p41 = por %p39, %p40
    %p42 = scmp.ne.s32.totalorder %s31, %s32
    %p43 = scmp.eq.s32.totalorder %s23, 0
    %p44 = por %p42, %p43
    %p45 = scmp.ne.s32.totalorder %s31, %s32
    %p46 = scmp.eq.s32.totalorder %s24, 1
    %p47 = por %p45, %p46
    %p49 = scmp.ne.s32.totalorder %s32, %s48
    %p50 = scmp.eq.s32.totalorder %s24, 0
    %p51 = por %p49, %p50
    %s53 = sadd.s32 %s52, 1
    %p56 = scmp.eq.s32.totalorder %s18, 1
    %p57 = scmp.ne.s32.totalorder %s52, %s54
    %p58 = scmp.eq.s32.totalorder %s18, 0
    %p59 = por %p57, %p58
    %p60 = scmp.ne.s32.totalorder %s52, %s54
    %p61 = scmp.eq.s32.totalorder %s23, 1
    %p62 = por %p60, %p61
    %p63 = scmp.ne.s32.totalorder %s54, %s55
    %p64 = scmp.eq.s32.totalorder %s23, 0
    %p65 = por %p63, %p64
    %p66 = scmp.ne.s32.totalorder %s54, %s55
    %p67 = scmp.eq.s32.totalorder %s24, 1
    %p68 = por %p66, %p67
    %p70 = scmp.ne.s32.totalorder %s55, %s69
    %p71 = scmp.eq.s32.totalorder %s24, 0
    %p72 = por %p70, %p71
    %s74 = sadd.s32 %s73, 1
    %p77 = scmp.eq.s32.totalorder %s18, 1
    %p78 = scmp.ne.s32.totalorder %s73, %s75
    %p79 = scmp.eq.s32.totalorder %s18, 0
    %p80 = por %p78, %p79
    %p81 = scmp.ne.s32.totalorder %s73, %s75
    %p82 = scmp.eq.s32.totalorder %s23, 1
    %p83 = por %p81, %p82
    %p84 = scmp.ne.s32.totalorder %s75, %s76
    %p85 = scmp.eq.s32.totalorder %s23, 0
    %p86 = por %p84, %p85
    %p87 = scmp.ne.s32.totalorder %s75, %s76
    %p88 = scmp.eq.s32.totalorder %s24, 1
    %p89 = por %p87, %p88
    %p91 = scmp.ne.s32.totalorder %s76, %s90
    %p92 = scmp.eq.s32.totalorder %s24, 0
    %p93 = por %p91, %p92
    %s95 = sadd.s32 %s94, 1
    %p98 = scmp.eq.s32.totalorder %s18, 1
    %p99 = scmp.ne.s32.totalorder %s94, %s96
    %p100 = scmp.eq.s32.totalorder %s18, 0
    %p101 = por %p99, %p100
    %p102 = scmp.ne.s32.totalorder %s94, %s96
    %p103 = scmp.eq.s32.totalorder %s23, 1
    %p104 = por %p102, %p103
    %p105 = scmp.ne.s32.totalorder %s96, %s97
    %p106 = scmp.eq.s32.totalorder %s23, 0
    %p107 = por %p105, %p106
    %p108 = scmp.ne.s32.totalorder %s96, %s97
    %p109 = scmp.eq.s32.totalorder %s24, 1
    %p110 = por %p108, %p109
    %p112 = scmp.ne.s32.totalorder %s97, %s111
    %p113 = scmp.eq.s32.totalorder %s24, 0
    %p114 = por %p112, %p113
    %s116 = sadd.s32 %s115, 1
    %p119 = scmp.eq.s32.totalorder %s18, 1
    %p120 = scmp.ne.s32.totalorder %s115, %s117
    %p121 = scmp.eq.s32.totalorder %s18, 0
    %p122 = por %p120, %p121
    %p123 = scmp.ne.s32.totalorder %s115, %s117
    %p124 = scmp.eq.s32.totalorder %s23, 1
    %p125 = por %p123, %p124
    %p126 = scmp.ne.s32.totalorder %s117, %s118
    %p127 = scmp.eq.s32.totalorder %s23, 0
    %p128 = por %p126, %p127
    %p129 = scmp.ne.s32.totalorder %s117, %s118
    %p130 = scmp.eq.s32.totalorder %s24, 1
    %p131 = por %p129, %p130
    %p133 = scmp.ne.s32.totalorder %s118, %s132
    %p134 = scmp.eq.s32.totalorder %s24, 0
    %p135 = por %p133, %p134
    %s137 = sadd.s32 %s136, 1
    %p140 = scmp.eq.s32.totalorder %s18, 1
    %p141 = scmp.ne.s32.totalorder %s136, %s138
    %p142 = scmp.eq.s32.totalorder %s18, 0
    %p143 = por %p141, %p142
    %p144 = scmp.ne.s32.totalorder %s136, %s138
    %p145 = scmp.eq.s32.totalorder %s23, 1
    %p146 = por %p144, %p145
    %p147 = scmp.ne.s32.totalorder %s138, %s139
    %p148 = scmp.eq.s32.totalorder %s23, 0
    %p149 = por %p147, %p148
    %p150 = scmp.ne.s32.totalorder %s138, %s139
    %p151 = scmp.eq.s32.totalorder %s24, 1
    %p152 = por %p150, %p151
    %p154 = scmp.ne.s32.totalorder %s139, %s153
    %p155 = scmp.eq.s32.totalorder %s24, 0
    %p156 = por %p154, %p155
    %s158 = sadd.s32 %s157, 1
    %p161 = scmp.eq.s32.totalorder %s18, 1
    %p162 = scmp.ne.s32.totalorder %s157, %s159
    %p163 = scmp.eq.s32.totalorder %s18, 0
    %p164 = por %p162, %p163
    %p165 = scmp.ne.s32.totalorder %s157, %s159
    %p166 = scmp.eq.s32.totalorder %s23, 1
    %p167 = por %p165, %p166
    %p168 = scmp.ne.s32.totalorder %s159, %s160
    %p169 = scmp.eq.s32.totalorder %s23, 0
    %p170 = por %p168, %p169
    %p171 = scmp.ne.s32.totalorder %s159, %s160
    %p172 = scmp.eq.s32.totalorder %s24, 1
    %p173 = por %p171, %p172
    %p175 = scmp.ne.s32.totalorder %s160, %s174
    %p176 = scmp.eq.s32.totalorder %s24, 0
    %p177 = por %p175, %p176
    %s179 = sadd.s32 %s178, 1
    %p182 = scmp.eq.s32.totalorder %s18, 1
    %p183 = scmp.ne.s32.totalorder %s178, %s180
    %p184 = scmp.eq.s32.totalorder %s18, 0
    %p185 = por %p183, %p184
    %p186 = scmp.ne.s32.totalorder %s178, %s180
    %p187 = scmp.eq.s32.totalorder %s23, 1
    %p188 = por %p186, %p187
    %p189 = scmp.ne.s32.totalorder %s180, %s181
    %p190 = scmp.eq.s32.totalorder %s23, 0
    %p191 = por %p189, %p190
    %p192 = scmp.ne.s32.totalorder %s180, %s181
    %p193 = scmp.eq.s32.totalorder %s24, 1
    %p194 = por %p192, %p193
    %p196 = scmp.ne.s32.totalorder %s181, %s195
    %p197 = scmp.eq.s32.totalorder %s24, 0
    %p198 = por %p196, %p197
    %s200 = sadd.s32 %s199, 1
    %p203 = scmp.eq.s32.totalorder %s18, 1
    %p204 = scmp.ne.s32.totalorder %s199, %s201
    %p205 = scmp.eq.s32.totalorder %s18, 0
    %p206 = por %p204, %p205
    %p207 = scmp.ne.s32.totalorder %s199, %s201
    %p208 = scmp.eq.s32.totalorder %s23, 1
    %p209 = por %p207, %p208
    %p210 = scmp.ne.s32.totalorder %s201, %s202
    %p211 = scmp.eq.s32.totalorder %s23, 0
    %p212 = por %p210, %p211
    %p213 = scmp.ne.s32.totalorder %s201, %s202
    %p214 = scmp.eq.s32.totalorder %s24, 1
    %p215 = por %p213, %p214
    %p217 = scmp.ne.s32.totalorder %s202, %s216
    %p218 = scmp.eq.s32.totalorder %s24, 0
    %p219 = por %p217, %p218
    %s221 = sadd.s32 %s220, 1
    %p224 = scmp.eq.s32.totalorder %s18, 1
    %p225 = scmp.ne.s32.totalorder %s220, %s222
    %p226 = scmp.eq.s32.totalorder %s18, 0
    %p227 = por %p225, %p226
    %p228 = scmp.ne.s32.totalorder %s220, %s222
    %p229 = scmp.eq.s32.totalorder %s23, 1
    %p230 = por %p228, %p229
    %p231 = scmp.ne.s32.totalorder %s222, %s223
    %p232 = scmp.eq.s32.totalorder %s23, 0
    %p233 = por %p231, %p232
    %p234 = scmp.ne.s32.totalorder %s222, %s223
    %p235 = scmp.eq.s32.totalorder %s24, 1
    %p236 = por %p234, %p235
    %p238 = scmp.ne.s32.totalorder %s223, %s237
    %p239 = scmp.eq.s32.totalorder %s24, 0
    %p240 = por %p238, %p239
    %s242 = sadd.s32 %s241, 1
    %p245 = scmp.eq.s32.totalorder %s18, 1
    %p246 = scmp.ne.s32.totalorder %s241, %s243
    %p247 = scmp.eq.s32.totalorder %s18, 0
    %p248 = por %p246, %p247
    %p249 = scmp.ne.s32.totalorder %s241, %s243
    %p250 = scmp.eq.s32.totalorder %s23, 1
    %p251 = por %p249, %p250
    %p252 = scmp.ne.s32.totalorder %s243, %s244
    %p253 = scmp.eq.s32.totalorder %s23, 0
    %p254 = por %p252, %p253
    %p255 = scmp.ne.s32.totalorder %s243, %s244
    %p256 = scmp.eq.s32.totalorder %s24, 1
    %p257 = por %p255, %p256
    %p259 = scmp.ne.s32.totalorder %s244, %s258
    %p260 = scmp.eq.s32.totalorder %s24, 0
    %p261 = por %p259, %p260
    %s263 = sadd.s32 %s262, 1
    %p266 = scmp.eq.s32.totalorder %s18, 1
    %p267 = scmp.ne.s32.totalorder %s262, %s264
    %p268 = scmp.eq.s32.totalorder %s18, 0
    %p269 = por %p267, %p268
    %p270 = scmp.ne.s32.totalorder %s262, %s264
    %p271 = scmp.eq.s32.totalorder %s23, 1
    %p272 = por %p270, %p271
    %p273 = scmp.ne.s32.totalorder %s264, %s265
    %p274 = scmp.eq.s32.totalorder %s23, 0
    %p275 = por %p273, %p274
    %p276 = scmp.ne.s32.totalorder %s264, %s265
    %p277 = scmp.eq.s32.totalorder %s24, 1
    %p278 = por %p276, %p277
    %p280 = scmp.ne.s32.totalorder %s265, %s279
    %p281 = scmp.eq.s32.totalorder %s24, 0
    %p282 = por %p280, %p281
    %s283 = ssub.s32 %s18, %s25
    %p284 = scmp.eq.s32.totalorder %s283, 0
    %s286 = sadd.s32 %s285, 1
    %s287 = scalar_select %p284, %s285, %s286
    %p290 = pneg %p284
    %p291 = scmp.eq.s32.totalorder %s18, 1
    %p292 = por %p290, %p291
    %p293 = scmp.ne.s32.totalorder %s285, %s288
    %p294 = scmp.eq.s32.totalorder %s18, 0
    %p295 = por %p293, %p294
    %p296 = scmp.ne.s32.totalorder %s285, %s288
    %p297 = scmp.eq.s32.totalorder %s23, 1
    %p298 = por %p296, %p297
    %p299 = scmp.ne.s32.totalorder %s288, %s289
    %p300 = scmp.eq.s32.totalorder %s23, 0
    %p301 = por %p299, %p300
    %p302 = scmp.ne.s32.totalorder %s288, %s289
    %p303 = scmp.eq.s32.totalorder %s24, 1
    %p304 = por %p302, %p303
    %p306 = scmp.ne.s32.totalorder %s289, %s305
    %p307 = scmp.eq.s32.totalorder %s24, 0
    %p308 = por %p306, %p307
    %p309 = scmp.le.s32.totalorder 1, %s18
    %p310 = scmp.lt.s32.totalorder %s18, 3
    %p311 = pnand %p309, %p310
    %p312 = pneg %p311
    // Predicated region
    $region9: #{gpt_block.1} parent=5 // pred_check
      _
    $region10: #{gpt_block.1} parent=5 // pred_check_branch
      %314 = sbr.rel (%p311) target = $region12
    $region11: #{gpt_block.1} parent=5 // pred_region
      %s315 = ssub.s32 %s18, 1
      // Predicated region
      $region13: #{gpt_block.1} parent=11 // pred_check
        %p316 = pneg %p65
      $region14: #{gpt_block.1} parent=11 // pred_check_branch
        %318 = sbr.rel (%p316) target = $region16
      $region15: #{gpt_block.1} parent=11 // pred_region
        _
      $region16: #{gpt_block.1} parent=11 // pred_fallthru
        _
      // Predicated region
      $region17: #{gpt_block.1} parent=11 // pred_check
        %p319 = pneg %p86
      $region18: #{gpt_block.1} parent=11 // pred_check_branch
        %321 = sbr.rel (%p319) target = $region20
      $region19: #{gpt_block.1} parent=11 // pred_region
        _
      $region20: #{gpt_block.1} parent=11 // pred_fallthru
        _
      // Predicated region
      $region21: #{gpt_block.1} parent=11 // pred_check
        %p322 = pneg %p107
      $region22: #{gpt_block.1} parent=11 // pred_check_branch
        %324 = sbr.rel (%p322) target = $region24
      $region23: #{gpt_block.1} parent=11 // pred_region
        _
      $region24: #{gpt_block.1} parent=11 // pred_fallthru
        _
      // Predicated region
      $region25: #{gpt_block.1} parent=11 // pred_check
        %p325 = pneg %p128
      $region26: #{gpt_block.1} parent=11 // pred_check_branch
        %327 = sbr.rel (%p325) target = $region28
      $region27: #{gpt_block.1} parent=11 // pred_region
        _
      $region28: #{gpt_block.1} parent=11 // pred_fallthru
        _
      // Predicated region
      $region29: #{gpt_block.1} parent=11 // pred_check
        %p328 = pneg %p149
      $region30: #{gpt_block.1} parent=11 // pred_check_branch
        %330 = sbr.rel (%p328) target = $region32
      $region31: #{gpt_block.1} parent=11 // pred_region
        _
      $region32: #{gpt_block.1} parent=11 // pred_fallthru
        _
      // Predicated region
      $region33: #{gpt_block.1} parent=11 // pred_check
        %p331 = pneg %p170
      $region34: #{gpt_block.1} parent=11 // pred_check_branch
        %333 = sbr.rel (%p331) target = $region36
      $region35: #{gpt_block.1} parent=11 // pred_region
        _
      $region36: #{gpt_block.1} parent=11 // pred_fallthru
        _
      // Predicated region
      $region37: #{gpt_block.1} parent=11 // pred_check
        %p334 = pneg %p191
      $region38: #{gpt_block.1} parent=11 // pred_check_branch
        %336 = sbr.rel (%p334) target = $region40
      $region39: #{gpt_block.1} parent=11 // pred_region
        _
      $region40: #{gpt_block.1} parent=11 // pred_fallthru
        _
      // Predicated region
      $region41: #{gpt_block.1} parent=11 // pred_check
        %p337 = pneg %p212
      $region42: #{gpt_block.1} parent=11 // pred_check_branch
        %339 = sbr.rel (%p337) target = $region44
      $region43: #{gpt_block.1} parent=11 // pred_region
        _
      $region44: #{gpt_block.1} parent=11 // pred_fallthru
        _
      // Predicated region
      $region45: #{gpt_block.1} parent=11 // pred_check
        %p340 = pneg %p233
      $region46: #{gpt_block.1} parent=11 // pred_check_branch
        %342 = sbr.rel (%p340) target = $region48
      $region47: #{gpt_block.1} parent=11 // pred_region
        _
      $region48: #{gpt_block.1} parent=11 // pred_fallthru
        _
      // Predicated region
      $region49: #{gpt_block.1} parent=11 // pred_check
        %p343 = pneg %p254
      $region50: #{gpt_block.1} parent=11 // pred_check_branch
        %345 = sbr.rel (%p343) target = $region52
      $region51: #{gpt_block.1} parent=11 // pred_region
        _
      $region52: #{gpt_block.1} parent=11 // pred_fallthru
        _
      // Predicated region
      $region53: #{gpt_block.1} parent=11 // pred_check
        %p346 = pneg %p275
      $region54: #{gpt_block.1} parent=11 // pred_check_branch
        %348 = sbr.rel (%p346) target = $region56
      $region55: #{gpt_block.1} parent=11 // pred_region
        _
      $region56: #{gpt_block.1} parent=11 // pred_fallthru
        _
    $region12: #{gpt_block.1} parent=5 // pred_fallthru
      _
    %p349 = scmp.lt.s32.totalorder %s18, 2
    // Predicated region
    $region57: #{gpt_block.1} parent=5 // pred_check
      %p350 = pneg %p349
    $region58: #{gpt_block.1} parent=5 // pred_check_branch
      %352 = sbr.rel (%p350) target = $region60
    $region59: #{gpt_block.1} parent=5 // pred_region
      // Predicated region
      $region61: #{gpt_block.1} parent=59 // pred_check
        %p353 = pneg %p38
      $region62: #{gpt_block.1} parent=59 // pred_check_branch
        %355 = sbr.rel (%p353) target = $region64
      $region63: #{gpt_block.1} parent=59 // pred_region
        %p356 = scmp.lt.s32.totalorder %s18, 1
        %s357 = scalar_select %p356, %s18, 1
        %s358 = smul.addr %s357, 16
        %s359 = smul.addr %s358, 8
        %s360 = scalar_lea.vmem %s0, %s359
      $region64: #{gpt_block.1} parent=59 // pred_fallthru
        _
    $region60: #{gpt_block.1} parent=5 // pred_fallthru
      _
    %p361 = scmp.le.s32.totalorder 1, %s18
    %p362 = scmp.lt.s32.totalorder %s18, 3
    %p363 = pnand %p361, %p362
    %p364 = pneg %p363
    // Predicated region
    $region65: #{gpt_block.1} parent=5 // pred_check
      _
    $region66: #{gpt_block.1} parent=5 // pred_check_branch
      %366 = sbr.rel (%p363) target = $region68
    $region67: #{gpt_block.1} parent=5 // pred_region
      %s367 = ssub.s32 %s18, 1
      %p368 = scmp.lt.s32.totalorder %s23, 1
      %s369 = scalar_select %p368, %s23, 1
      %s370 = smul.addr %s369, 16
      %s371 = smul.addr %s370, 8
      %s372 = scalar_lea.vmem %s0, %s371
      %p373 = pneg %p44
      %p374 = pneg %p41
      %p375 = pneg %p65
      %p376 = pneg %p62
      %p377 = pneg %p86
      %p378 = pneg %p83
      %p379 = pneg %p107
      %p380 = pneg %p104
      %p381 = pneg %p128
      %p382 = pneg %p125
      %p383 = pneg %p149
      %p384 = pneg %p146
      %p385 = pneg %p170
      %p386 = pneg %p167
      %p387 = pneg %p191
      %p388 = pneg %p188
      %p389 = pneg %p212
      %p390 = pneg %p209
      %p391 = pneg %p233
      %p392 = pneg %p230
      %p393 = pneg %p254
      %p394 = pneg %p251
      %p395 = pneg %p275
      %p396 = pneg %p272
      %p397 = pneg %p301
      %p398 = pneg %p298
      %p399 = scmp.lt.s32.totalorder %s23, 1
      %s400 = scalar_select %p399, %s23, 1
      %s401 = smul.addr %s400, 16
      %s402 = smul.addr %s401, 8
      %s403 = scalar_lea.vmem %s12, %s402
      %p404 = scmp.lt.s32.totalorder %s23, 1
      %s405 = scalar_select %p404, %s23, 1
      %s406 = smul.addr %s405, 16
      %s407 = smul.addr %s406, 8
      %s408 = scalar_lea.vmem %s0, %s407
      %p409 = scmp.lt.s32.totalorder %s23, 1
      %s410 = scalar_select %p409, %s23, 1
      %s411 = smul.addr %s410, 16
      %s412 = smul.addr %s411, 8
      %s413 = scalar_lea.vmem %s12, %s412
      %v415 = vld [vmem:[%s408] sm:$0xff]
      %v416 = vld [vmem:[%s408 + $0x8] sm:$0xff]
      %v417 = vld [vmem:[%s408 + $0x10] sm:$0xff]
      %v418 = vld [vmem:[%s408 + $0x18] sm:$0xff]
      %v419 = vld [vmem:[%s408 + $0x20] sm:$0xff]
      %v420 = vld [vmem:[%s408 + $0x28] sm:$0xff]
      %v421 = vld [vmem:[%s408 + $0x30] sm:$0xff]
      %v422 = vld [vmem:[%s408 + $0x38] sm:$0xff]
      %v423 = vld [vmem:[%s408 + $0x40] sm:$0xff]
      %v424 = vld [vmem:[%s408 + $0x48] sm:$0xff]
      %v425 = vld [vmem:[%s408 + $0x50] sm:$0xff]
      %v426 = vld [vmem:[%s408 + $0x58] sm:$0xff]
      %v427 = vld [vmem:[%s408 + $0x60] sm:$0xff]
      %v428 = vld [vmem:[%s408 + $0x68] sm:$0xff]
      %v429 = vld [vmem:[%s408 + $0x70] sm:$0xff]
      %v430 = vld [vmem:[%s408 + $0x78] sm:$0xff]
      %v431 = vld [vmem:[%s1] sm:$0x1]
      %v432 = vld [vmem:[%s2] sm:$0x1]
      %vm433 = vcmask 523264
      %v434 = vsel %vm433, %v415, 0.0
      %435 = vadd.xlane.f32.xlu0 %v434
      %v436 = vpop.xlane.xlu0 %435
      %v437 = vsel %vm433, %v416, 0.0
      %438 = vadd.xlane.f32.xlu0 %v437
      %v439 = vpop.xlane.xlu0 %438
      %v440 = vsel %vm433, %v417, 0.0
      %441 = vadd.xlane.f32.xlu0 %v440
      %v442 = vpop.xlane.xlu0 %441
      %v443 = vsel %vm433, %v418, 0.0
      %444 = vadd.xlane.f32.xlu0 %v443
      %v445 = vpop.xlane.xlu0 %444
      %v446 = vsel %vm433, %v419, 0.0
      %447 = vadd.xlane.f32.xlu0 %v446
      %v448 = vpop.xlane.xlu0 %447
      %v449 = vsel %vm433, %v420, 0.0
      %450 = vadd.xlane.f32.xlu0 %v449
      %v451 = vpop.xlane.xlu0 %450
      %v452 = vsel %vm433, %v421, 0.0
      %453 = vadd.xlane.f32.xlu0 %v452
      %v454 = vpop.xlane.xlu0 %453
      %v455 = vsel %vm433, %v422, 0.0
      %456 = vadd.xlane.f32.xlu0 %v455
      %v457 = vpop.xlane.xlu0 %456
      %v458 = vsel %vm433, %v423, 0.0
      %459 = vadd.xlane.f32.xlu0 %v458
      %v460 = vpop.xlane.xlu0 %459
      %v461 = vsel %vm433, %v424, 0.0
      %462 = vadd.xlane.f32.xlu0 %v461
      %v463 = vpop.xlane.xlu0 %462
      %v464 = vsel %vm433, %v425, 0.0
      %465 = vadd.xlane.f32.xlu0 %v464
      %v466 = vpop.xlane.xlu0 %465
      %v467 = vsel %vm433, %v426, 0.0
      %468 = vadd.xlane.f32.xlu0 %v467
      %v469 = vpop.xlane.xlu0 %468
      %v470 = vsel %vm433, %v427, 0.0
      %471 = vadd.xlane.f32.xlu0 %v470
      %v472 = vpop.xlane.xlu0 %471
      %v473 = vsel %vm433, %v428, 0.0
      %474 = vadd.xlane.f32.xlu0 %v473
      %v475 = vpop.xlane.xlu0 %474
      %v476 = vsel %vm433, %v429, 0.0
      %477 = vadd.xlane.f32.xlu0 %v476
      %v478 = vpop.xlane.xlu0 %477
      %v479 = vsel %vm433, %v430, 0.0
      %480 = vadd.xlane.f32.xlu0 %v479
      %v481 = vpop.xlane.xlu0 %480
      %v482 = vrcp.pop 64.0
      %v483 = vmul.f32 %v436, %v482
      %v484 = vmul.f32 %v439, %v482
      %v485 = vmul.f32 %v442, %v482
      %v486 = vmul.f32 %v445, %v482
      %v487 = vmul.f32 %v448, %v482
      %v488 = vmul.f32 %v451, %v482
      %v489 = vmul.f32 %v454, %v482
      %v490 = vmul.f32 %v457, %v482
      %v491 = vmul.f32 %v460, %v482
      %v492 = vmul.f32 %v463, %v482
      %v493 = vmul.f32 %v466, %v482
      %v494 = vmul.f32 %v469, %v482
      %v495 = vmul.f32 %v472, %v482
      %v496 = vmul.f32 %v475, %v482
      %v497 = vmul.f32 %v478, %v482
      %v498 = vmul.f32 %v481, %v482
      %v499 = vsub.f32 %v415, %v483
      %v500 = vsub.f32 %v416, %v484
      %v501 = vsub.f32 %v417, %v485
      %v502 = vsub.f32 %v418, %v486
      %v503 = vsub.f32 %v419, %v487
      %v504 = vsub.f32 %v420, %v488
      %v505 = vsub.f32 %v421, %v489
      %v506 = vsub.f32 %v422, %v490
      %v507 = vsub.f32 %v423, %v491
      %v508 = vsub.f32 %v424, %v492
      %v509 = vsub.f32 %v425, %v493
      %v510 = vsub.f32 %v426, %v494
      %v511 = vsub.f32 %v427, %v495
      %v512 = vsub.f32 %v428, %v496
      %v513 = vsub.f32 %v429, %v497
      %v514 = vsub.f32 %v430, %v498
      %v515 = vmul.f32 %v499, %v499
      %v516 = vmul.f32 %v500, %v500
      %v517 = vmul.f32 %v501, %v501
      %v518 = vmul.f32 %v502, %v502
      %v519 = vmul.f32 %v503, %v503
      %v520 = vmul.f32 %v504, %v504
      %v521 = vmul.f32 %v505, %v505
      %v522 = vmul.f32 %v506, %v506
      %v523 = vmul.f32 %v507, %v507
      %v524 = vmul.f32 %v508, %v508
      %v525 = vmul.f32 %v509, %v509
      %v526 = vmul.f32 %v510, %v510
      %v527 = vmul.f32 %v511, %v511
      %v528 = vmul.f32 %v512, %v512
      %v529 = vmul.f32 %v513, %v513
      %v530 = vmul.f32 %v514, %v514
      %v531 = vsel %vm433, %v515, 0.0
      %532 = vadd.xlane.f32.xlu0 %v531
      %v533 = vpop.xlane.xlu0 %532
      %v534 = vsel %vm433, %v516, 0.0
      %535 = vadd.xlane.f32.xlu0 %v534
      %v536 = vpop.xlane.xlu0 %535
      %v537 = vsel %vm433, %v517, 0.0
      %538 = vadd.xlane.f32.xlu0 %v537
      %v539 = vpop.xlane.xlu0 %538
      %v540 = vsel %vm433, %v518, 0.0
      %541 = vadd.xlane.f32.xlu0 %v540
      %v542 = vpop.xlane.xlu0 %541
      %v543 = vsel %vm433, %v519, 0.0
      %544 = vadd.xlane.f32.xlu0 %v543
      %v545 = vpop.xlane.xlu0 %544
      %v546 = vsel %vm433, %v520, 0.0
      %547 = vadd.xlane.f32.xlu0 %v546
      %v548 = vpop.xlane.xlu0 %547
      %v549 = vsel %vm433, %v521, 0.0
      %550 = vadd.xlane.f32.xlu0 %v549
      %v551 = vpop.xlane.xlu0 %550
      %v552 = vsel %vm433, %v522, 0.0
      %553 = vadd.xlane.f32.xlu0 %v552
      %v554 = vpop.xlane.xlu0 %553
      %v555 = vsel %vm433, %v523, 0.0
      %556 = vadd.xlane.f32.xlu0 %v555
      %v557 = vpop.xlane.xlu0 %556
      %v558 = vsel %vm433, %v524, 0.0
      %559 = vadd.xlane.f32.xlu0 %v558
      %v560 = vpop.xlane.xlu0 %559
      %v561 = vsel %vm433, %v525, 0.0
      %562 = vadd.xlane.f32.xlu0 %v561
      %v563 = vpop.xlane.xlu0 %562
      %v564 = vsel %vm433, %v526, 0.0
      %565 = vadd.xlane.f32.xlu0 %v564
      %v566 = vpop.xlane.xlu0 %565
      %v567 = vsel %vm433, %v527, 0.0
      %568 = vadd.xlane.f32.xlu0 %v567
      %v569 = vpop.xlane.xlu0 %568
      %v570 = vsel %vm433, %v528, 0.0
      %571 = vadd.xlane.f32.xlu0 %v570
      %v572 = vpop.xlane.xlu0 %571
      %v573 = vsel %vm433, %v529, 0.0
      %574 = vadd.xlane.f32.xlu0 %v573
      %v575 = vpop.xlane.xlu0 %574
      %v576 = vsel %vm433, %v530, 0.0
      %577 = vadd.xlane.f32.xlu0 %v576
      %v578 = vpop.xlane.xlu0 %577
      %v579 = vmul.f32 %v533, %v482
      %v580 = vmul.f32 %v536, %v482
      %v581 = vmul.f32 %v539, %v482
      %v582 = vmul.f32 %v542, %v482
      %v583 = vmul.f32 %v545, %v482
      %v584 = vmul.f32 %v548, %v482
      %v585 = vmul.f32 %v551, %v482
      %v586 = vmul.f32 %v554, %v482
      %v587 = vmul.f32 %v557, %v482
      %v588 = vmul.f32 %v560, %v482
      %v589 = vmul.f32 %v563, %v482
      %v590 = vmul.f32 %v566, %v482
      %v591 = vmul.f32 %v569, %v482
      %v592 = vmul.f32 %v572, %v482
      %v593 = vmul.f32 %v575, %v482
      %v594 = vmul.f32 %v578, %v482
      %v595 = vadd.f32 %v579, 1e-05
      %v596 = vadd.f32 %v580, 1e-05
      %v597 = vadd.f32 %v581, 1e-05
      %v598 = vadd.f32 %v582, 1e-05
      %v599 = vadd.f32 %v583, 1e-05
      %v600 = vadd.f32 %v584, 1e-05
      %v601 = vadd.f32 %v585, 1e-05
      %v602 = vadd.f32 %v586, 1e-05
      %v603 = vadd.f32 %v587, 1e-05
      %v604 = vadd.f32 %v588, 1e-05
      %v605 = vadd.f32 %v589, 1e-05
      %v606 = vadd.f32 %v590, 1e-05
      %v607 = vadd.f32 %v591, 1e-05
      %v608 = vadd.f32 %v592, 1e-05
      %v609 = vadd.f32 %v593, 1e-05
      %v610 = vadd.f32 %v594, 1e-05
      %v611 = vrsqrt.pop %v595
      %v612 = vrsqrt.pop %v596
      %v613 = vrsqrt.pop %v597
      %v614 = vrsqrt.pop %v598
      %v615 = vrsqrt.pop %v599
      %v616 = vrsqrt.pop %v600
      %v617 = vrsqrt.pop %v601
      %v618 = vrsqrt.pop %v602
      %v619 = vrsqrt.pop %v603
      %v620 = vrsqrt.pop %v604
      %v621 = vrsqrt.pop %v605
      %v622 = vrsqrt.pop %v606
      %v623 = vrsqrt.pop %v607
      %v624 = vrsqrt.pop %v608
      %v625 = vrsqrt.pop %v609
      %v626 = vrsqrt.pop %v610
      %v627 = vmul.f32 %v499, %v611
      %v628 = vmul.f32 %v500, %v612
      %v629 = vmul.f32 %v501, %v613
      %v630 = vmul.f32 %v502, %v614
      %v631 = vmul.f32 %v503, %v615
      %v632 = vmul.f32 %v504, %v616
      %v633 = vmul.f32 %v505, %v617
      %v634 = vmul.f32 %v506, %v618
      %v635 = vmul.f32 %v507, %v619
      %v636 = vmul.f32 %v508, %v620
      %v637 = vmul.f32 %v509, %v621
      %v638 = vmul.f32 %v510, %v622
      %v639 = vmul.f32 %v511, %v623
      %v640 = vmul.f32 %v512, %v624
      %v641 = vmul.f32 %v513, %v625
      %v642 = vmul.f32 %v514, %v626
      %v644 = vlaneseq
      %v645 = vshrl.u32 %v644, 7
      %v646 = vsub.s32 0, %v645
      %v647 = vrot.slane %v431, %v646
      %v649 = vmul.f32 %v627, %v647
      %v650 = vmul.f32 %v628, %v647
      %v651 = vmul.f32 %v629, %v647
      %v652 = vmul.f32 %v630, %v647
      %v653 = vmul.f32 %v631, %v647
      %v654 = vmul.f32 %v632, %v647
      %v655 = vmul.f32 %v633, %v647
      %v656 = vmul.f32 %v634, %v647
      %v657 = vmul.f32 %v635, %v647
      %v658 = vmul.f32 %v636, %v647
      %v659 = vmul.f32 %v637, %v647
      %v660 = vmul.f32 %v638, %v647
      %v661 = vmul.f32 %v639, %v647
      %v662 = vmul.f32 %v640, %v647
      %v663 = vmul.f32 %v641, %v647
      %v664 = vmul.f32 %v642, %v647
      %v666 = vlaneseq
      %v667 = vshrl.u32 %v666, 7
      %v668 = vsub.s32 0, %v667
      %v669 = vrot.slane %v432, %v668
      %v671 = vadd.f32 %v649, %v669
      %v672 = vadd.f32 %v650, %v669
      %v673 = vadd.f32 %v651, %v669
      %v674 = vadd.f32 %v652, %v669
      %v675 = vadd.f32 %v653, %v669
      %v676 = vadd.f32 %v654, %v669
      %v677 = vadd.f32 %v655, %v669
      %v678 = vadd.f32 %v656, %v669
      %v679 = vadd.f32 %v657, %v669
      %v680 = vadd.f32 %v658, %v669
      %v681 = vadd.f32 %v659, %v669
      %v682 = vadd.f32 %v660, %v669
      %v683 = vadd.f32 %v661, %v669
      %v684 = vadd.f32 %v662, %v669
      %v685 = vadd.f32 %v663, %v669
      %v686 = vadd.f32 %v664, %v669
      %v687 = vpack.c.bf16 %v672, %v671
      %v688 = vpack.c.bf16 %v674, %v673
      %v689 = vpack.c.bf16 %v676, %v675
      %v690 = vpack.c.bf16 %v678, %v677
      %v691 = vpack.c.bf16 %v680, %v679
      %v692 = vpack.c.bf16 %v682, %v681
      %v693 = vpack.c.bf16 %v684, %v683
      %v694 = vpack.c.bf16 %v686, %v685
      %v695 = vld [vmem:[%s3] sm:$0xff]
      %v696 = vld [vmem:[%s3 + $0x8] sm:$0xff]
      %v697 = vld [vmem:[%s3 + $0x10] sm:$0xff]
      %v698 = vld [vmem:[%s3 + $0x18] sm:$0xff]
      %v699 = vld [vmem:[%s3 + $0x20] sm:$0xff]
      %v700 = vld [vmem:[%s3 + $0x28] sm:$0xff]
      %v701 = vld [vmem:[%s3 + $0x30] sm:$0xff]
      %v702 = vld [vmem:[%s3 + $0x38] sm:$0xff]
      %v703 = vld [vmem:[%s3 + $0x40] sm:$0xff]
      %v704 = vld [vmem:[%s3 + $0x48] sm:$0xff]
      %v705 = vld [vmem:[%s3 + $0x50] sm:$0xff]
      %v706 = vld [vmem:[%s3 + $0x58] sm:$0xff]
      %v707 = vld [vmem:[%s3 + $0x60] sm:$0xff]
      %v708 = vld [vmem:[%s3 + $0x68] sm:$0xff]
      %v709 = vld [vmem:[%s3 + $0x70] sm:$0xff]
      %v710 = vld [vmem:[%s3 + $0x78] sm:$0xff]
      %v711 = vld [vmem:[%s3 + $0x80] sm:$0xff]
      %v712 = vld [vmem:[%s3 + $0x88] sm:$0xff]
      %v713 = vld [vmem:[%s3 + $0x90] sm:$0xff]
      %v714 = vld [vmem:[%s3 + $0x98] sm:$0xff]
      %v715 = vld [vmem:[%s3 + $0xa0] sm:$0xff]
      %v716 = vld [vmem:[%s3 + $0xa8] sm:$0xff]
      %v717 = vld [vmem:[%s3 + $0xb0] sm:$0xff]
      %v718 = vld [vmem:[%s3 + $0xb8] sm:$0xff]
      %v743 = vunpack.c.l.b16 %v695
      %v744 = vunpack.c.h.b16 %v695
      %v745 = vunpack.c.l.b16 %v696
      %v746 = vunpack.c.h.b16 %v696
      %v747 = vunpack.c.l.b16 %v697
      %v748 = vunpack.c.h.b16 %v697
      %v749 = vunpack.c.l.b16 %v698
      %v750 = vunpack.c.h.b16 %v698
      %v751 = vunpack.c.l.b16 %v699
      %v752 = vunpack.c.h.b16 %v699
      %v753 = vunpack.c.l.b16 %v700
      %v754 = vunpack.c.h.b16 %v700
      %v755 = vunpack.c.l.b16 %v701
      %v756 = vunpack.c.h.b16 %v701
      %v757 = vunpack.c.l.b16 %v702
      %v758 = vunpack.c.h.b16 %v702
      %v759 = vunpack.c.l.b16 %v703
      %v760 = vunpack.c.h.b16 %v703
      %v761 = vunpack.c.l.b16 %v704
      %v762 = vunpack.c.h.b16 %v704
      %v763 = vunpack.c.l.b16 %v705
      %v764 = vunpack.c.h.b16 %v705
      %v765 = vunpack.c.l.b16 %v706
      %v766 = vunpack.c.h.b16 %v706
      %v767 = vunpack.c.l.b16 %v707
      %v768 = vunpack.c.h.b16 %v707
      %v769 = vunpack.c.l.b16 %v708
      %v770 = vunpack.c.h.b16 %v708
      %v771 = vunpack.c.l.b16 %v709
      %v772 = vunpack.c.h.b16 %v709
      %v773 = vunpack.c.l.b16 %v710
      %v774 = vunpack.c.h.b16 %v710
      %v775 = vunpack.c.l.b16 %v711
      %v776 = vunpack.c.h.b16 %v711
      %v777 = vunpack.c.l.b16 %v712
      %v778 = vunpack.c.h.b16 %v712
      %v779 = vunpack.c.l.b16 %v713
      %v780 = vunpack.c.h.b16 %v713
      %v781 = vunpack.c.l.b16 %v714
      %v782 = vunpack.c.h.b16 %v714
      %v783 = vunpack.c.l.b16 %v715
      %v784 = vunpack.c.h.b16 %v715
      %v785 = vunpack.c.l.b16 %v716
      %v786 = vunpack.c.h.b16 %v716
      %v787 = vunpack.c.l.b16 %v717
      %v788 = vunpack.c.h.b16 %v717
      %v789 = vunpack.c.l.b16 %v718
      %v790 = vunpack.c.h.b16 %v718
      %v791 = vpack.c.b16 %v749, %v743
      %v792 = vpack.c.b16 %v750, %v744
      %v793 = vpack.c.b16 %v751, %v745
      %v794 = vpack.c.b16 %v752, %v746
      %v795 = vpack.c.b16 %v753, %v747
      %v796 = vpack.c.b16 %v754, %v748
      %v797 = vpack.c.b16 %v761, %v755
      %v798 = vpack.c.b16 %v762, %v756
      %v799 = vpack.c.b16 %v763, %v757
      %v800 = vpack.c.b16 %v764, %v758
      %v801 = vpack.c.b16 %v765, %v759
      %v802 = vpack.c.b16 %v766, %v760
      %v803 = vpack.c.b16 %v773, %v767
      %v804 = vpack.c.b16 %v774, %v768
      %v805 = vpack.c.b16 %v775, %v769
      %v806 = vpack.c.b16 %v776, %v770
      %v807 = vpack.c.b16 %v777, %v771
      %v808 = vpack.c.b16 %v778, %v772
      %v809 = vpack.c.b16 %v785, %v779
      %v810 = vpack.c.b16 %v786, %v780
      %v811 = vpack.c.b16 %v787, %v781
      %v812 = vpack.c.b16 %v788, %v782
      %v813 = vpack.c.b16 %v789, %v783
      %v814 = vpack.c.b16 %v790, %v784
      %v840 = vsel %vm433, %v687, 0
      %v843 = vsel %vm433, %v688, 0
      %v846 = vsel %vm433, %v689, 0
      %v849 = vsel %vm433, %v690, 0
      %v852 = vsel %vm433, %v691, 0
      %v855 = vsel %vm433, %v692, 0
      %v858 = vsel %vm433, %v693, 0
      %v861 = vsel %vm433, %v694, 0
      %863 = vmatprep.subr.bf16.mxu0 %v792
      %864 = vmatpush1.bf16.msra.mxu0 %v791
      %865 = vmatprep.subr.bf16.mxu0 %v798
      %866 = vmatpush1.bf16.msra.mxu0 %v797
      %867 = vmatprep.subr.bf16.mxu0 %v804
      %868 = vmatpush1.bf16.msra.mxu0 %v803
      %869 = vmatprep.subr.bf16.mxu0 %v810
      %870 = vmatpush1.bf16.msra.mxu0 %v809
      %871 = vmatprep.subr.bf16.mxu0 0
      %872 = vmatpush1.bf16.msra.mxu0 0
      %873 = vmatprep.subr.bf16.mxu0 0
      %874 = vmatpush1.bf16.msra.mxu0 0
      %875 = vmatprep.subr.bf16.mxu0 0
      %876 = vmatpush1.bf16.msra.mxu0 0
      %877 = vmatprep.subr.bf16.mxu0 0
      %878 = vmatpush1.bf16.msra.mxu0 0
      %879 = vmatprep.subr.bf16.mxu0 0
      %880 = vmatpush1.bf16.msra.mxu0 0
      %881 = vmatprep.subr.bf16.mxu0 0
      %882 = vmatpush1.bf16.msra.mxu0 0
      %883 = vmatprep.subr.bf16.mxu0 0
      %884 = vmatpush1.bf16.msra.mxu0 0
      %885 = vmatprep.subr.bf16.mxu0 0
      %886 = vmatpush1.bf16.msra.mxu0 0
      %887 = vmatprep.subr.bf16.mxu0 0
      %888 = vmatpush1.bf16.msra.mxu0 0
      %889 = vmatprep.subr.bf16.mxu0 0
      %890 = vmatpush1.bf16.msra.mxu0 0
      %891 = vmatprep.subr.bf16.mxu0 0
      %892 = vmatpush1.bf16.msra.mxu0 0
      %893 = vmatprep.subr.bf16.mxu0 0
      %894 = vmatpush1.bf16.msra.mxu0 0
      %895 = vmatprep.mubr.bf16.mxu0 0
      %896 = vmatmul.mubr.bf16.gmra.mrb[0].mxu0 %v840
      %v897 = vpop.f32.mrb[0].mxu0
      %v898 = vadd.f32 0.0, %v897
      %v899 = vpop.f32.mrb[0].mxu0
      %v900 = vadd.f32 0.0, %v899
      %v901 = vpop.f32.mrb[0].mxu0
      %v902 = vadd.f32 0.0, %v901
      %v903 = vpop.f32.mrb[0].mxu0
      %v904 = vadd.f32 0.0, %v903
      %905 = vmatprep.mubr.bf16.mxu0 0
      %906 = vmatmul.mubr.bf16.gmra.mrb[0].mxu0 %v843
      %v907 = vpop.f32.mrb[0].mxu0
      %v908 = vadd.f32 0.0, %v907
      %v909 = vpop.f32.mrb[0].mxu0
      %v910 = vadd.f32 0.0, %v909
      %v911 = vpop.f32.mrb[0].mxu0
      %v912 = vadd.f32 0.0, %v911
      %v913 = vpop.f32.mrb[0].mxu0
      %v914 = vadd.f32 0.0, %v913
      %915 = vmatprep.mubr.bf16.mxu0 0
      %916 = vmatmul.mubr.bf16.gmra.mrb[0].mxu0 %v846
      %v917 = vpop.f32.mrb[0].mxu0
      %v918 = vadd.f32 0.0, %v917
      %v919 = vpop.f32.mrb[0].mxu0
      %v920 = vadd.f32 0.0, %v919
      %v921 = vpop.f32.mrb[0].mxu0
      %v922 = vadd.f32 0.0, %v921
      %v923 = vpop.f32.mrb[0].mxu0
      %v924 = vadd.f32 0.0, %v923
      %925 = vmatprep.mubr.bf16.mxu0 0
      %926 = vmatmul.mubr.bf16.gmra.mrb[0].mxu0 %v849
      %v927 = vpop.f32.mrb[0].mxu0
      %v928 = vadd.f32 0.0, %v927
      %v929 = vpop.f32.mrb[0].mxu0
      %v930 = vadd.f32 0.0, %v929
      %v931 = vpop.f32.mrb[0].mxu0
      %v932 = vadd.f32 0.0, %v931
      %v933 = vpop.f32.mrb[0].mxu0
      %v934 = vadd.f32 0.0, %v933
      %935 = vmatprep.mubr.bf16.mxu0 0
      %936 = vmatmul.mubr.bf16.gmra.mrb[0].mxu0 %v852
      %v937 = vpop.f32.mrb[0].mxu0
      %v938 = vadd.f32 0.0, %v937
      %v939 = vpop.f32.mrb[0].mxu0
      %v940 = vadd.f32 0.0, %v939
      %v941 = vpop.f32.mrb[0].mxu0
      %v942 = vadd.f32 0.0, %v941
      %v943 = vpop.f32.mrb[0].mxu0
      %v944 = vadd.f32 0.0, %v943
      %945 = vmatprep.mubr.bf16.mxu0 0
      %946 = vmatmul.mubr.bf16.gmra.mrb[0].mxu0 %v855
      %v947 = vpop.f32.mrb[0].mxu0
      %v948 = vadd.f32 0.0, %v947
      %v949 = vpop.f32.mrb[0].mxu0
      %v950 = vadd.f32 0.0, %v949
      %v951 = vpop.f32.mrb[0].mxu0
      %v952 = vadd.f32 0.0, %v951
      %v953 = vpop.f32.mrb[0].mxu0
      %v954 = vadd.f32 0.0, %v953
      %955 = vmatprep.mubr.bf16.mxu0 0
      %956 = vmatmul.mubr.bf16.gmra.mrb[0].mxu0 %v858
      %v957 = vpop.f32.mrb[0].mxu0
      %v958 = vadd.f32 0.0, %v957
      %v959 = vpop.f32.mrb[0].mxu0
      %v960 = vadd.f32 0.0, %v959
      %v961 = vpop.f32.mrb[0].mxu0
      %v962 = vadd.f32 0.0, %v961
      %v963 = vpop.f32.mrb[0].mxu0
      %v964 = vadd.f32 0.0, %v963
      %965 = vmatprep.mubr.bf16.mxu0 0
      %966 = vmatmul.mubr.bf16.gmra.mrb[0].mxu0 %v861
      %v967 = vpop.f32.mrb[0].mxu0
      %v968 = vadd.f32 0.0, %v967
      %v969 = vpop.f32.mrb[0].mxu0
      %v970 = vadd.f32 0.0, %v969
      %v971 = vpop.f32.mrb[0].mxu0
      %v972 = vadd.f32 0.0, %v971
      %v973 = vpop.f32.mrb[0].mxu0
      %v974 = vadd.f32 0.0, %v973
      %975 = vdwg.mxu0
      %976 = vmatprep.subr.bf16.mxu0 %v794
      %977 = vmatpush1.bf16.msra.mxu0 %v793
      %978 = vmatprep.subr.bf16.mxu0 %v800
      %979 = vmatpush1.bf16.msra.mxu0 %v799
      %980 = vmatprep.subr.bf16.mxu0 %v806
      %981 = vmatpush1.bf16.msra.mxu0 %v805
      %982 = vmatprep.subr.bf16.mxu0 %v812
      %983 = vmatpush1.bf16.msra.mxu0 %v811
      %984 = vmatprep.subr.bf16.mxu0 0
      %985 = vmatpush1.bf16.msra.mxu0 0
      %986 = vmatprep.subr.bf16.mxu0 0
      %987 = vmatpush1.bf16.msra.mxu0 0
      %988 = vmatprep.subr.bf16.mxu0 0
      %989 = vmatpush1.bf16.msra.mxu0 0
      %990 = vmatprep.subr.bf16.mxu0 0
      %991 = vmatpush1.bf16.msra.mxu0 0
      %992 = vmatprep.subr.bf16.mxu0 0
      %993 = vmatpush1.bf16.msra.mxu0 0
      %994 = vmatprep.subr.bf16.mxu0 0
      %995 = vmatpush1.bf16.msra.mxu0 0
      %996 = vmatprep.subr.bf16.mxu0 0
      %997 = vmatpush1.bf16.msra.mxu0 0
      %998 = vmatprep.subr.bf16.mxu0 0
      %999 = vmatpush1.bf16.msra.mxu0 0
      %1000 = vmatprep.subr.bf16.mxu0 0
      %1001 = vmatpush1.bf16.msra.mxu0 0
      %1002 = vmatprep.subr.bf16.mxu0 0
      %1003 = vmatpush1.bf16.msra.mxu0 0
      %1004 = vmatprep.subr.bf16.mxu0 0
      %1005 = vmatpush1.bf16.msra.mxu0 0
      %1006 = vmatprep.subr.bf16.mxu0 0
      %1007 = vmatpush1.bf16.msra.mxu0 0
      %1008 = vmatprep.mubr.bf16.mxu0 0
      %1009 = vmatmul.mubr.bf16.gmra.mrb[0].mxu0 %v840
      %v1010 = vpop.f32.mrb[0].mxu0
      %v1011 = vadd.f32 0.0, %v1010
      %v1012 = vpop.f32.mrb[0].mxu0
      %v1013 = vadd.f32 0.0, %v1012
      %v1014 = vpop.f32.mrb[0].mxu0
      %v1015 = vadd.f32 0.0, %v1014
      %v1016 = vpop.f32.mrb[0].mxu0
      %v1017 = vadd.f32 0.0, %v1016
      %1018 = vmatprep.mubr.bf16.mxu0 0
      %1019 = vmatmul.mubr.bf16.gmra.mrb[0].mxu0 %v843
      %v1020 = vpop.f32.mrb[0].mxu0
      %v1021 = vadd.f32 0.0, %v1020
      %v1022 = vpop.f32.mrb[0].mxu0
      %v1023 = vadd.f32 0.0, %v1022
      %v1024 = vpop.f32.mrb[0].mxu0
      %v1025 = vadd.f32 0.0, %v1024
      %v1026 = vpop.f32.mrb[0].mxu0
      %v1027 = vadd.f32 0.0, %v1026
      %1028 = vmatprep.mubr.bf16.mxu0 0
      %1029 = vmatmul.mubr.bf16.gmra.mrb[0].mxu0 %v846
      %v1030 = vpop.f32.mrb[0].mxu0
      %v1031 = vadd.f32 0.0, %v1030
      %v1032 = vpop.f32.mrb[0].mxu0
      %v1033 = vadd.f32 0.0, %v1032
      %v1034 = vpop.f32.mrb[0].mxu0
      %v1035 = vadd.f32 0.0, %v1034
      %v1036 = vpop.f32.mrb[0].mxu0
      %v1037 = vadd.f32 0.0, %v1036
      %1038 = vmatprep.mubr.bf16.mxu0 0
      %1039 = vmatmul.mubr.bf16.gmra.mrb[0].mxu0 %v849
      %v1040 = vpop.f32.mrb[0].mxu0
      %v1041 = vadd.f32 0.0, %v1040
      %v1042 = vpop.f32.mrb[0].mxu0
      %v1043 = vadd.f32 0.0, %v1042
      %v1044 = vpop.f32.mrb[0].mxu0
      %v1045 = vadd.f32 0.0, %v1044
      %v1046 = vpop.f32.mrb[0].mxu0
      %v1047 = vadd.f32 0.0, %v1046
      %1048 = vmatprep.mubr.bf16.mxu0 0
      %1049 = vmatmul.mubr.bf16.gmra.mrb[0].mxu0 %v852
      %v1050 = vpop.f32.mrb[0].mxu0
      %v1051 = vadd.f32 0.0, %v1050
      %v1052 = vpop.f32.mrb[0].mxu0
      %v1053 = vadd.f32 0.0, %v1052
      %v1054 = vpop.f32.mrb[0].mxu0
      %v1055 = vadd.f32 0.0, %v1054
      %v1056 = vpop.f32.mrb[0].mxu0
      %v1057 = vadd.f32 0.0, %v1056
      %1058 = vmatprep.mubr.bf16.mxu0 0
      %1059 = vmatmul.mubr.bf16.gmra.mrb[0].mxu0 %v855
      %v1060 = vpop.f32.mrb[0].mxu0
      %v1061 = vadd.f32 0.0, %v1060
      %v1062 = vpop.f32.mrb[0].mxu0
      %v1063 = vadd.f32 0.0, %v1062
      %v1064 = vpop.f32.mrb[0].mxu0
      %v1065 = vadd.f32 0.0, %v1064
      %v1066 = vpop.f32.mrb[0].mxu0
      %v1067 = vadd.f32 0.0, %v1066
      %1068 = vmatprep.mubr.bf16.mxu0 0
      %1069 = vmatmul.mubr.bf16.gmra.mrb[0].mxu0 %v858
      %v1070 = vpop.f32.mrb[0].mxu0
      %v1071 = vadd.f32 0.0, %v1070
      %v1072 = vpop.f32.mrb[0].mxu0
      %v1073 = vadd.f32 0.0, %v1072
      %v1074 = vpop.f32.mrb[0].mxu0
      %v1075 = vadd.f32 0.0, %v1074
      %v1076 = vpop.f32.mrb[0].mxu0
      %v1077 = vadd.f32 0.0, %v1076
      %1078 = vmatprep.mubr.bf16.mxu0 0
      %1079 = vmatmul.mubr.bf16.gmra.mrb[0].mxu0 %v861
      %v1080 = vpop.f32.mrb[0].mxu0
      %v1081 = vadd.f32 0.0, %v1080
      %v1082 = vpop.f32.mrb[0].mxu0
      %v1083 = vadd.f32 0.0, %v1082
      %v1084 = vpop.f32.mrb[0].mxu0
      %v1085 = vadd.f32 0.0, %v1084
      %v1086 = vpop.f32.mrb[0].mxu0
      %v1087 = vadd.f32 0.0, %v1086
      %1088 = vdwg.mxu0
      %1089 = vmatprep.subr.bf16.mxu0 %v796
      %1090 = vmatpush1.bf16.msra.mxu0 %v795
      %1091 = vmatprep.subr.bf16.mxu0 %v802
      %1092 = vmatpush1.bf16.msra.mxu0 %v801
      %1093 = vmatprep.subr.bf16.mxu0 %v808
      %1094 = vmatpush1.bf16.msra.mxu0 %v807
      %1095 = vmatprep.subr.bf16.mxu0 %v814
      %1096 = vmatpush1.bf16.msra.mxu0 %v813
      %1097 = vmatprep.subr.bf16.mxu0 0
      %1098 = vmatpush1.bf16.msra.mxu0 0
      %1099 = vmatprep.subr.bf16.mxu0 0
      %1100 = vmatpush1.bf16.msra.mxu0 0
      %1101 = vmatprep.subr.bf16.mxu0 0
      %1102 = vmatpush1.bf16.msra.mxu0 0
      %1103 = vmatprep.subr.bf16.mxu0 0
      %1104 = vmatpush1.bf16.msra.mxu0 0
      %1105 = vmatprep.subr.bf16.mxu0 0
      %1106 = vmatpush1.bf16.msra.mxu0 0
      %1107 = vmatprep.subr.bf16.mxu0 0
      %1108 = vmatpush1.bf16.msra.mxu0 0
      %1109 = vmatprep.subr.bf16.mxu0 0
      %1110 = vmatpush1.bf16.msra.mxu0 0
      %1111 = vmatprep.subr.bf16.mxu0 0
      %1112 = vmatpush1.bf16.msra.mxu0 0
      %1113 = vmatprep.subr.bf16.mxu0 0
      %1114 = vmatpush1.bf16.msra.mxu0 0
      %1115 = vmatprep.subr.bf16.mxu0 0
      %1116 = vmatpush1.bf16.msra.mxu0 0
      %1117 = vmatprep.subr.bf16.mxu0 0
      %1118 = vmatpush1.bf16.msra.mxu0 0
      %1119 = vmatprep.subr.bf16.mxu0 0
      %1120 = vmatpush1.bf16.msra.mxu0 0
      %1121 = vmatprep.mubr.bf16.mxu0 0
      %1122 = vmatmul.mubr.bf16.gmra.mrb[0].mxu0 %v840
      %v1123 = vpop.f32.mrb[0].mxu0
      %v1124 = vadd.f32 0.0, %v1123
      %v1125 = vpop.f32.mrb[0].mxu0
      %v1126 = vadd.f32 0.0, %v1125
      %v1127 = vpop.f32.mrb[0].mxu0
      %v1128 = vadd.f32 0.0, %v1127
      %v1129 = vpop.f32.mrb[0].mxu0
      %v1130 = vadd.f32 0.0, %v1129
      %1131 = vmatprep.mubr.bf16.mxu0 0
      %1132 = vmatmul.mubr.bf16.gmra.mrb[0].mxu0 %v843
      %v1133 = vpop.f32.mrb[0].mxu0
      %v1134 = vadd.f32 0.0, %v1133
      %v1135 = vpop.f32.mrb[0].mxu0
      %v1136 = vadd.f32 0.0, %v1135
      %v1137 = vpop.f32.mrb[0].mxu0
      %v1138 = vadd.f32 0.0, %v1137
      %v1139 = vpop.f32.mrb[0].mxu0
      %v1140 = vadd.f32 0.0, %v1139
      %1141 = vmatprep.mubr.bf16.mxu0 0
      %1142 = vmatmul.mubr.bf16.gmra.mrb[0].mxu0 %v846
      %v1143 = vpop.f32.mrb[0].mxu0
      %v1144 = vadd.f32 0.0, %v1143
      %v1145 = vpop.f32.mrb[0].mxu0
      %v1146 = vadd.f32 0.0, %v1145
      %v1147 = vpop.f32.mrb[0].mxu0
      %v1148 = vadd.f32 0.0, %v1147
      %v1149 = vpop.f32.mrb[0].mxu0
      %v1150 = vadd.f32 0.0, %v1149
      %1151 = vmatprep.mubr.bf16.mxu0 0
      %1152 = vmatmul.mubr.bf16.gmra.mrb[0].mxu0 %v849
      %v1153 = vpop.f32.mrb[0].mxu0
      %v1154 = vadd.f32 0.0, %v1153
      %v1155 = vpop.f32.mrb[0].mxu0
      %v1156 = vadd.f32 0.0, %v1155
      %v1157 = vpop.f32.mrb[0].mxu0
      %v1158 = vadd.f32 0.0, %v1157
      %v1159 = vpop.f32.mrb[0].mxu0
      %v1160 = vadd.f32 0.0, %v1159
      %1161 = vmatprep.mubr.bf16.mxu0 0
      %1162 = vmatmul.mubr.bf16.gmra.mrb[0].mxu0 %v852
      %v1163 = vpop.f32.mrb[0].mxu0
      %v1164 = vadd.f32 0.0, %v1163
      %v1165 = vpop.f32.mrb[0].mxu0
      %v1166 = vadd.f32 0.0, %v1165
      %v1167 = vpop.f32.mrb[0].mxu0
      %v1168 = vadd.f32 0.0, %v1167
      %v1169 = vpop.f32.mrb[0].mxu0
      %v1170 = vadd.f32 0.0, %v1169
      %1171 = vmatprep.mubr.bf16.mxu0 0
      %1172 = vmatmul.mubr.bf16.gmra.mrb[0].mxu0 %v855
      %v1173 = vpop.f32.mrb[0].mxu0
      %v1174 = vadd.f32 0.0, %v1173
      %v1175 = vpop.f32.mrb[0].mxu0
      %v1176 = vadd.f32 0.0, %v1175
      %v1177 = vpop.f32.mrb[0].mxu0
      %v1178 = vadd.f32 0.0, %v1177
      %v1179 = vpop.f32.mrb[0].mxu0
      %v1180 = vadd.f32 0.0, %v1179
      %1181 = vmatprep.mubr.bf16.mxu0 0
      %1182 = vmatmul.mubr.bf16.gmra.mrb[0].mxu0 %v858
      %v1183 = vpop.f32.mrb[0].mxu0
      %v1184 = vadd.f32 0.0, %v1183
      %v1185 = vpop.f32.mrb[0].mxu0
      %v1186 = vadd.f32 0.0, %v1185
      %v1187 = vpop.f32.mrb[0].mxu0
      %v1188 = vadd.f32 0.0, %v1187
      %v1189 = vpop.f32.mrb[0].mxu0
      %v1190 = vadd.f32 0.0, %v1189
      %1191 = vmatprep.mubr.bf16.mxu0 0
      %1192 = vmatmul.mubr.bf16.gmra.mrb[0].mxu0 %v861
      %v1193 = vpop.f32.mrb[0].mxu0
      %v1194 = vadd.f32 0.0, %v1193
      %v1195 = vpop.f32.mrb[0].mxu0
      %v1196 = vadd.f32 0.0, %v1195
      %v1197 = vpop.f32.mrb[0].mxu0
      %v1198 = vadd.f32 0.0, %v1197
      %v1199 = vpop.f32.mrb[0].mxu0
      %v1200 = vadd.f32 0.0, %v1199
      %1201 = vdwg.mxu0
      %v1202 = vpack.c.bf16 %v902, %v898
      %v1203 = vpack.c.bf16 %v904, %v900
      %v1204 = vpack.c.bf16 %v1015, %v1011
      %v1205 = vpack.c.bf16 %v1017, %v1013
      %v1206 = vpack.c.bf16 %v1128, %v1124
      %v1207 = vpack.c.bf16 %v1130, %v1126
      %v1208 = vpack.c.bf16 %v912, %v908
      %v1209 = vpack.c.bf16 %v914, %v910
      %v1210 = vpack.c.bf16 %v1025, %v1021
      %v1211 = vpack.c.bf16 %v1027, %v1023
      %v1212 = vpack.c.bf16 %v1138, %v1134
      %v1213 = vpack.c.bf16 %v1140, %v1136
      %v1214 = vpack.c.bf16 %v922, %v918
      %v1215 = vpack.c.bf16 %v924, %v920
      %v1216 = vpack.c.bf16 %v1035, %v1031
      %v1217 = vpack.c.bf16 %v1037, %v1033
      %v1218 = vpack.c.bf16 %v1148, %v1144
      %v1219 = vpack.c.bf16 %v1150, %v1146
      %v1220 = vpack.c.bf16 %v932, %v928
      %v1221 = vpack.c.bf16 %v934, %v930
      %v1222 = vpack.c.bf16 %v1045, %v1041
      %v1223 = vpack.c.bf16 %v1047, %v1043
      %v1224 = vpack.c.bf16 %v1158, %v1154
      %v1225 = vpack.c.bf16 %v1160, %v1156
      %v1226 = vpack.c.bf16 %v942, %v938
      %v1227 = vpack.c.bf16 %v944, %v940
      %v1228 = vpack.c.bf16 %v1055, %v1051
      %v1229 = vpack.c.bf16 %v1057, %v1053
      %v1230 = vpack.c.bf16 %v1168, %v1164
      %v1231 = vpack.c.bf16 %v1170, %v1166
      %v1232 = vpack.c.bf16 %v952, %v948
      %v1233 = vpack.c.bf16 %v954, %v950
      %v1234 = vpack.c.bf16 %v1065, %v1061
      %v1235 = vpack.c.bf16 %v1067, %v1063
      %v1236 = vpack.c.bf16 %v1178, %v1174
      %v1237 = vpack.c.bf16 %v1180, %v1176
      %v1238 = vpack.c.bf16 %v962, %v958
      %v1239 = vpack.c.bf16 %v964, %v960
      %v1240 = vpack.c.bf16 %v1075, %v1071
      %v1241 = vpack.c.bf16 %v1077, %v1073
      %v1242 = vpack.c.bf16 %v1188, %v1184
      %v1243 = vpack.c.bf16 %v1190, %v1186
      %v1244 = vpack.c.bf16 %v972, %v968
      %v1245 = vpack.c.bf16 %v974, %v970
      %v1246 = vpack.c.bf16 %v1085, %v1081
      %v1247 = vpack.c.bf16 %v1087, %v1083
      %v1248 = vpack.c.bf16 %v1198, %v1194
      %v1249 = vpack.c.bf16 %v1200, %v1196
      %v1250 = vlaneseq
      %v1251 = vshrl.u32 %v1250, 7
      %v1252 = vadd.s32 %v1251, 8
      %v1253 = vadd.s32 %v1251, 16
      %v1254 = vadd.s32 %v1251, 24
      %v1255 = vadd.s32 %v1251, 32
      %v1256 = vadd.s32 %v1251, 40
      %v1257 = vadd.s32 %v1251, 48
      %v1258 = vadd.s32 %v1251, 56
      %v1259 = vadd.s32 %v1251, 64
      %v1260 = vadd.s32 %v1251, 72
      %v1261 = vadd.s32 %v1251, 80
      %v1262 = vadd.s32 %v1251, 88
      %v1263 = vadd.s32 %v1251, 96
      %v1264 = vadd.s32 %v1251, 104
      %v1265 = vadd.s32 %v1251, 112
      %v1266 = vadd.s32 %v1251, 120
      %v1267 = vlaneseq
      %v1268 = vand.u32 %v1267, 127
      %vm1269 = vcmp.le.s32.totalorder %v1268, %v1251
      %vm1270 = vcmp.le.s32.totalorder %v1268, %v1252
      %vm1271 = vcmp.le.s32.totalorder %v1268, %v1253
      %vm1272 = vcmp.le.s32.totalorder %v1268, %v1254
      %vm1273 = vcmp.le.s32.totalorder %v1268, %v1255
      %vm1274 = vcmp.le.s32.totalorder %v1268, %v1256
      %vm1275 = vcmp.le.s32.totalorder %v1268, %v1257
      %vm1276 = vcmp.le.s32.totalorder %v1268, %v1258
      %vm1277 = vcmp.le.s32.totalorder %v1268, %v1259
      %vm1278 = vcmp.le.s32.totalorder %v1268, %v1260
      %vm1279 = vcmp.le.s32.totalorder %v1268, %v1261
      %vm1280 = vcmp.le.s32.totalorder %v1268, %v1262
      %vm1281 = vcmp.le.s32.totalorder %v1268, %v1263
      %vm1282 = vcmp.le.s32.totalorder %v1268, %v1264
      %vm1283 = vcmp.le.s32.totalorder %v1268, %v1265
      %vm1284 = vcmp.le.s32.totalorder %v1268, %v1266
      %v1286 = vsel %vm433, %v1202, 0
      %v1289 = vsel %vm433, %v1208, 0
      %v1292 = vsel %vm433, %v1214, 0
      %v1295 = vsel %vm433, %v1220, 0
      %v1298 = vsel %vm433, %v1226, 0
      %v1301 = vsel %vm433, %v1232, 0
      %v1304 = vsel %vm433, %v1238, 0
      %v1307 = vsel %vm433, %v1244, 0
      %v1310 = vsel %vm433, %v1204, 0
      %v1313 = vsel %vm433, %v1210, 0
      %v1316 = vsel %vm433, %v1216, 0
      %v1319 = vsel %vm433, %v1222, 0
      %v1322 = vsel %vm433, %v1228, 0
      %v1325 = vsel %vm433, %v1234, 0
      %v1328 = vsel %vm433, %v1240, 0
      %v1331 = vsel %vm433, %v1246, 0
      %1333 = vmatprep.subr.bf16.mxu0 0
      %1334 = vmatpush1.bf16.xpose.msra.mxu0 %v1310
      %1335 = vmatprep.subr.bf16.mxu0 0
      %1336 = vmatpush1.bf16.xpose.msra.mxu0 %v1313
      %1337 = vmatprep.subr.bf16.mxu0 0
      %1338 = vmatpush1.bf16.xpose.msra.mxu0 %v1316
      %1339 = vmatprep.subr.bf16.mxu0 0
      %1340 = vmatpush1.bf16.xpose.msra.mxu0 %v1319
      %1341 = vmatprep.subr.bf16.mxu0 0
      %1342 = vmatpush1.bf16.xpose.msra.mxu0 %v1322
      %1343 = vmatprep.subr.bf16.mxu0 0
      %1344 = vmatpush1.bf16.xpose.msra.mxu0 %v1325
      %1345 = vmatprep.subr.bf16.mxu0 0
      %1346 = vmatpush1.bf16.xpose.msra.mxu0 %v1328
      %1347 = vmatprep.subr.bf16.mxu0 0
      %1348 = vmatpush1.bf16.xpose.msra.mxu0 %v1331
      %1349 = vmatprep.subr.bf16.mxu0 0
      %1350 = vmatpush1.bf16.xpose.msra.mxu0 0
      %1351 = vmatprep.subr.bf16.mxu0 0
      %1352 = vmatpush1.bf16.xpose.msra.mxu0 0
      %1353 = vmatprep.subr.bf16.mxu0 0
      %1354 = vmatpush1.bf16.xpose.msra.mxu0 0
      %1355 = vmatprep.subr.bf16.mxu0 0
      %1356 = vmatpush1.bf16.xpose.msra.mxu0 0
      %1357 = vmatprep.subr.bf16.mxu0 0
      %1358 = vmatpush1.bf16.xpose.msra.mxu0 0
      %1359 = vmatprep.subr.bf16.mxu0 0
      %1360 = vmatpush1.bf16.xpose.msra.mxu0 0
      %1361 = vmatprep.subr.bf16.mxu0 0
      %1362 = vmatpush1.bf16.xpose.msra.mxu0 0
      %1363 = vmatprep.subr.bf16.mxu0 0
      %1364 = vmatpush1.bf16.xpose.msra.mxu0 0
      %1365 = vmatprep.mubr.bf16.mxu0 0
      %1366 = vmatmul.mubr.bf16.gmra.mrb[0].mxu0 %v1286
      %v1367 = vpop.f32.mrb[0].mxu0
      %v1368 = vadd.f32 0.0, %v1367
      %v1369 = vpop.f32.mrb[0].mxu0
      %v1370 = vpop.f32.mrb[0].mxu0
      %v1371 = vadd.f32 0.0, %v1370
      %v1372 = vpop.f32.mrb[0].mxu0
      %1373 = vmatprep.mubr.bf16.mxu0 0
      %1374 = vmatmul.mubr.bf16.gmra.mrb[0].mxu0 %v1289
      %v1375 = vpop.f32.mrb[0].mxu0
      %v1376 = vadd.f32 0.0, %v1375
      %v1377 = vpop.f32.mrb[0].mxu0
      %v1378 = vpop.f32.mrb[0].mxu0
      %v1379 = vadd.f32 0.0, %v1378
      %v1380 = vpop.f32.mrb[0].mxu0
      %1381 = vmatprep.mubr.bf16.mxu0 0
      %1382 = vmatmul.mubr.bf16.gmra.mrb[0].mxu0 %v1292
      %v1383 = vpop.f32.mrb[0].mxu0
      %v1384 = vadd.f32 0.0, %v1383
      %v1385 = vpop.f32.mrb[0].mxu0
      %v1386 = vpop.f32.mrb[0].mxu0
      %v1387 = vadd.f32 0.0, %v1386
      %v1388 = vpop.f32.mrb[0].mxu0
      %1389 = vmatprep.mubr.bf16.mxu0 0
      %1390 = vmatmul.mubr.bf16.gmra.mrb[0].mxu0 %v1295
      %v1391 = vpop.f32.mrb[0].mxu0
      %v1392 = vadd.f32 0.0, %v1391
      %v1393 = vpop.f32.mrb[0].mxu0
      %v1394 = vpop.f32.mrb[0].mxu0
      %v1395 = vadd.f32 0.0, %v1394
      %v1396 = vpop.f32.mrb[0].mxu0
      %1397 = vmatprep.mubr.bf16.mxu0 0
      %1398 = vmatmul.mubr.bf16.gmra.mrb[0].mxu0 %v1298
      %v1399 = vpop.f32.mrb[0].mxu0
      %v1400 = vadd.f32 0.0, %v1399
      %v1401 = vpop.f32.mrb[0].mxu0
      %v1402 = vpop.f32.mrb[0].mxu0
      %v1403 = vadd.f32 0.0, %v1402
      %v1404 = vpop.f32.mrb[0].mxu0
      %1405 = vmatprep.mubr.bf16.mxu0 0
      %1406 = vmatmul.mubr.bf16.gmra.mrb[0].mxu0 %v1301
      %v1407 = vpop.f32.mrb[0].mxu0
      %v1408 = vadd.f32 0.0, %v1407
      %v1409 = vpop.f32.mrb[0].mxu0
      %v1410 = vpop.f32.mrb[0].mxu0
      %v1411 = vadd.f32 0.0, %v1410
      %v1412 = vpop.f32.mrb[0].mxu0
      %1413 = vmatprep.mubr.bf16.mxu0 0
      %1414 = vmatmul.mubr.bf16.gmra.mrb[0].mxu0 %v1304
      %v1415 = vpop.f32.mrb[0].mxu0
      %v1416 = vadd.f32 0.0, %v1415
      %v1417 = vpop.f32.mrb[0].mxu0
      %v1418 = vpop.f32.mrb[0].mxu0
      %v1419 = vadd.f32 0.0, %v1418
      %v1420 = vpop.f32.mrb[0].mxu0
      %1421 = vmatprep.mubr.bf16.mxu0 0
      %1422 = vmatmul.mubr.bf16.gmra.mrb[0].mxu0 %v1307
      %v1423 = vpop.f32.mrb[0].mxu0
      %v1424 = vadd.f32 0.0, %v1423
      %v1425 = vpop.f32.mrb[0].mxu0
      %v1426 = vpop.f32.mrb[0].mxu0
      %v1427 = vadd.f32 0.0, %v1426
      %v1428 = vpop.f32.mrb[0].mxu0
      %1429 = vdwg.mxu0
      %v1430 = vsel %vm1269, %v1368, -1e+30
      %v1431 = vsel %vm1270, %v1371, -1e+30
      %v1432 = vsel %vm1271, %v1376, -1e+30
      %v1433 = vsel %vm1272, %v1379, -1e+30
      %v1434 = vsel %vm1273, %v1384, -1e+30
      %v1435 = vsel %vm1274, %v1387, -1e+30
      %v1436 = vsel %vm1275, %v1392, -1e+30
      %v1437 = vsel %vm1276, %v1395, -1e+30
      %v1438 = vsel %vm1277, %v1400, -1e+30
      %v1439 = vsel %vm1278, %v1403, -1e+30
      %v1440 = vsel %vm1279, %v1408, -1e+30
      %v1441 = vsel %vm1280, %v1411, -1e+30
      %v1442 = vsel %vm1281, %v1416, -1e+30
      %v1443 = vsel %vm1282, %v1419, -1e+30
      %v1444 = vsel %vm1283, %v1424, -1e+30
      %v1445 = vsel %vm1284, %v1427, -1e+30
      %1446 = vmax.xlane.f32.xlu0 %v1430
      %v1447 = vpop.xlane.xlu0 %1446
      %1448 = vmax.xlane.f32.xlu0 %v1431
      %v1449 = vpop.xlane.xlu0 %1448
      %1450 = vmax.xlane.f32.xlu0 %v1432
      %v1451 = vpop.xlane.xlu0 %1450
      %1452 = vmax.xlane.f32.xlu0 %v1433
      %v1453 = vpop.xlane.xlu0 %1452
      %1454 = vmax.xlane.f32.xlu0 %v1434
      %v1455 = vpop.xlane.xlu0 %1454
      %1456 = vmax.xlane.f32.xlu0 %v1435
      %v1457 = vpop.xlane.xlu0 %1456
      %1458 = vmax.xlane.f32.xlu0 %v1436
      %v1459 = vpop.xlane.xlu0 %1458
      %1460 = vmax.xlane.f32.xlu0 %v1437
      %v1461 = vpop.xlane.xlu0 %1460
      %1462 = vmax.xlane.f32.xlu0 %v1438
      %v1463 = vpop.xlane.xlu0 %1462
      %1464 = vmax.xlane.f32.xlu0 %v1439
      %v1465 = vpop.xlane.xlu0 %1464
      %1466 = vmax.xlane.f32.xlu0 %v1440
      %v1467 = vpop.xlane.xlu0 %1466
      %1468 = vmax.xlane.f32.xlu0 %v1441
      %v1469 = vpop.xlane.xlu0 %1468
      %1470 = vmax.xlane.f32.xlu0 %v1442
      %v1471 = vpop.xlane.xlu0 %1470
      %1472 = vmax.xlane.f32.xlu0 %v1443
      %v1473 = vpop.xlane.xlu0 %1472
      %1474 = vmax.xlane.f32.xlu0 %v1444
      %v1475 = vpop.xlane.xlu0 %1474
      %1476 = vmax.xlane.f32.xlu0 %v1445
      %v1477 = vpop.xlane.xlu0 %1476
      %v1478 = vsub.f32 %v1430, %v1447
      %v1479 = vsub.f32 %v1431, %v1449
      %v1480 = vsub.f32 %v1432, %v1451
      %v1481 = vsub.f32 %v1433, %v1453
      %v1482 = vsub.f32 %v1434, %v1455
      %v1483 = vsub.f32 %v1435, %v1457
      %v1484 = vsub.f32 %v1436, %v1459
      %v1485 = vsub.f32 %v1437, %v1461
      %v1486 = vsub.f32 %v1438, %v1463
      %v1487 = vsub.f32 %v1439, %v1465
      %v1488 = vsub.f32 %v1440, %v1467
      %v1489 = vsub.f32 %v1441, %v1469
      %v1490 = vsub.f32 %v1442, %v1471
      %v1491 = vsub.f32 %v1443, %v1473
      %v1492 = vsub.f32 %v1444, %v1475
      %v1493 = vsub.f32 %v1445, %v1477
      %v1494 = vmul.f32 %v1478, 1.442695
      %v1495 = vpow.pop %v1494
      %v1496 = vmul.f32 %v1479, 1.442695
      %v1497 = vpow.pop %v1496
      %v1498 = vmul.f32 %v1480, 1.442695
      %v1499 = vpow.pop %v1498
      %v1500 = vmul.f32 %v1481, 1.442695
      %v1501 = vpow.pop %v1500
      %v1502 = vmul.f32 %v1482, 1.442695
      %v1503 = vpow.pop %v1502
      %v1504 = vmul.f32 %v1483, 1.442695
      %v1505 = vpow.pop %v1504
      %v1506 = vmul.f32 %v1484, 1.442695
      %v1507 = vpow.pop %v1506
      %v1508 = vmul.f32 %v1485, 1.442695
      %v1509 = vpow.pop %v1508
      %v1510 = vmul.f32 %v1486, 1.442695
      %v1511 = vpow.pop %v1510
      %v1512 = vmul.f32 %v1487, 1.442695
      %v1513 = vpow.pop %v1512
      %v1514 = vmul.f32 %v1488, 1.442695
      %v1515 = vpow.pop %v1514
      %v1516 = vmul.f32 %v1489, 1.442695
      %v1517 = vpow.pop %v1516
      %v1518 = vmul.f32 %v1490, 1.442695
      %v1519 = vpow.pop %v1518
      %v1520 = vmul.f32 %v1491, 1.442695
      %v1521 = vpow.pop %v1520
      %v1522 = vmul.f32 %v1492, 1.442695
      %v1523 = vpow.pop %v1522
      %v1524 = vmul.f32 %v1493, 1.442695
      %v1525 = vpow.pop %v1524
      %1526 = vadd.xlane.f32.xlu0 %v1495
      %v1527 = vpop.xlane.xlu0 %1526
      %1528 = vadd.xlane.f32.xlu0 %v1497
      %v1529 = vpop.xlane.xlu0 %1528
      %1530 = vadd.xlane.f32.xlu0 %v1499
      %v1531 = vpop.xlane.xlu0 %1530
      %1532 = vadd.xlane.f32.xlu0 %v1501
      %v1533 = vpop.xlane.xlu0 %1532
      %1534 = vadd.xlane.f32.xlu0 %v1503
      %v1535 = vpop.xlane.xlu0 %1534
      %1536 = vadd.xlane.f32.xlu0 %v1505
      %v1537 = vpop.xlane.xlu0 %1536
      %1538 = vadd.xlane.f32.xlu0 %v1507
      %v1539 = vpop.xlane.xlu0 %1538
      %1540 = vadd.xlane.f32.xlu0 %v1509
      %v1541 = vpop.xlane.xlu0 %1540
      %1542 = vadd.xlane.f32.xlu0 %v1511
      %v1543 = vpop.xlane.xlu0 %1542
      %1544 = vadd.xlane.f32.xlu0 %v1513
      %v1545 = vpop.xlane.xlu0 %1544
      %1546 = vadd.xlane.f32.xlu0 %v1515
      %v1547 = vpop.xlane.xlu0 %1546
      %1548 = vadd.xlane.f32.xlu0 %v1517
      %v1549 = vpop.xlane.xlu0 %1548
      %1550 = vadd.xlane.f32.xlu0 %v1519
      %v1551 = vpop.xlane.xlu0 %1550
      %1552 = vadd.xlane.f32.xlu0 %v1521
      %v1553 = vpop.xlane.xlu0 %1552
      %1554 = vadd.xlane.f32.xlu0 %v1523
      %v1555 = vpop.xlane.xlu0 %1554
      %1556 = vadd.xlane.f32.xlu0 %v1525
      %v1557 = vpop.xlane.xlu0 %1556
      %v1558 = vrcp.pop %v1527
      %v1559 = vrcp.pop %v1529
      %v1560 = vrcp.pop %v1531
      %v1561 = vrcp.pop %v1533
      %v1562 = vrcp.pop %v1535
      %v1563 = vrcp.pop %v1537
      %v1564 = vrcp.pop %v1539
      %v1565 = vrcp.pop %v1541
      %v1566 = vrcp.pop %v1543
      %v1567 = vrcp.pop %v1545
      %v1568 = vrcp.pop %v1547
      %v1569 = vrcp.pop %v1549
      %v1570 = vrcp.pop %v1551
      %v1571 = vrcp.pop %v1553
      %v1572 = vrcp.pop %v1555
      %v1573 = vrcp.pop %v1557
      %v1574 = vmul.f32 %v1495, %v1558
      %v1575 = vmul.f32 %v1497, %v1559
      %v1576 = vmul.f32 %v1499, %v1560
      %v1577 = vmul.f32 %v1501, %v1561
      %v1578 = vmul.f32 %v1503, %v1562
      %v1579 = vmul.f32 %v1505, %v1563
      %v1580 = vmul.f32 %v1507, %v1564
      %v1581 = vmul.f32 %v1509, %v1565
      %v1582 = vmul.f32 %v1511, %v1566
      %v1583 = vmul.f32 %v1513, %v1567
      %v1584 = vmul.f32 %v1515, %v1568
      %v1585 = vmul.f32 %v1517, %v1569
      %v1586 = vmul.f32 %v1519, %v1570
      %v1587 = vmul.f32 %v1521, %v1571
      %v1588 = vmul.f32 %v1523, %v1572
      %v1589 = vmul.f32 %v1525, %v1573
      %v1590 = vpack.c.bf16 %v1575, %v1574
      %v1591 = vpack.c.bf16 %v1577, %v1576
      %v1592 = vpack.c.bf16 %v1579, %v1578
      %v1593 = vpack.c.bf16 %v1581, %v1580
      %v1594 = vpack.c.bf16 %v1583, %v1582
      %v1595 = vpack.c.bf16 %v1585, %v1584
      %v1596 = vpack.c.bf16 %v1587, %v1586
      %v1597 = vpack.c.bf16 %v1589, %v1588
      %1598 = vmatprep.subr.bf16.mxu0 0
      %1599 = vmatpush1.bf16.msra.mxu0 %v1206
      %1600 = vmatprep.subr.bf16.mxu0 0
      %1601 = vmatpush1.bf16.msra.mxu0 %v1212
      %1602 = vmatprep.subr.bf16.mxu0 0
      %1603 = vmatpush1.bf16.msra.mxu0 %v1218
      %1604 = vmatprep.subr.bf16.mxu0 0
      %1605 = vmatpush1.bf16.msra.mxu0 %v1224
      %1606 = vmatprep.subr.bf16.mxu0 0
      %1607 = vmatpush1.bf16.msra.mxu0 %v1230
      %1608 = vmatprep.subr.bf16.mxu0 0
      %1609 = vmatpush1.bf16.msra.mxu0 %v1236
      %1610 = vmatprep.subr.bf16.mxu0 0
      %1611 = vmatpush1.bf16.msra.mxu0 %v1242
      %1612 = vmatprep.subr.bf16.mxu0 0
      %1613 = vmatpush1.bf16.msra.mxu0 %v1248
      %1614 = vmatprep.subr.bf16.mxu0 0
      %1615 = vmatpush1.bf16.msra.mxu0 0
      %1616 = vmatprep.subr.bf16.mxu0 0
      %1617 = vmatpush1.bf16.msra.mxu0 0
      %1618 = vmatprep.subr.bf16.mxu0 0
      %1619 = vmatpush1.bf16.msra.mxu0 0
      %1620 = vmatprep.subr.bf16.mxu0 0
      %1621 = vmatpush1.bf16.msra.mxu0 0
      %1622 = vmatprep.subr.bf16.mxu0 0
      %1623 = vmatpush1.bf16.msra.mxu0 0
      %1624 = vmatprep.subr.bf16.mxu0 0
      %1625 = vmatpush1.bf16.msra.mxu0 0
      %1626 = vmatprep.subr.bf16.mxu0 0
      %1627 = vmatpush1.bf16.msra.mxu0 0
      %1628 = vmatprep.subr.bf16.mxu0 0
      %1629 = vmatpush1.bf16.msra.mxu0 0
      %1630 = vmatprep.mubr.bf16.mxu0 0
      %1631 = vmatmul.mubr.bf16.gmra.mrb[0].mxu0 %v1590
      %v1632 = vpop.f32.mrb[0].mxu0
      %v1633 = vadd.f32 0.0, %v1632
      %v1634 = vpop.f32.mrb[0].mxu0
      %v1635 = vpop.f32.mrb[0].mxu0
      %v1636 = vadd.f32 0.0, %v1635
      %v1637 = vpop.f32.mrb[0].mxu0
      %1638 = vmatprep.mubr.bf16.mxu0 0
      %1639 = vmatmul.mubr.bf16.gmra.mrb[0].mxu0 %v1591
      %v1640 = vpop.f32.mrb[0].mxu0
      %v1641 = vadd.f32 0.0, %v1640
      %v1642 = vpop.f32.mrb[0].mxu0
      %v1643 = vpop.f32.mrb[0].mxu0
      %v1644 = vadd.f32 0.0, %v1643
      %v1645 = vpop.f32.mrb[0].mxu0
      %1646 = vmatprep.mubr.bf16.mxu0 0
      %1647 = vmatmul.mubr.bf16.gmra.mrb[0].mxu0 %v1592
      %v1648 = vpop.f32.mrb[0].mxu0
      %v1649 = vadd.f32 0.0, %v1648
      %v1650 = vpop.f32.mrb[0].mxu0
      %v1651 = vpop.f32.mrb[0].mxu0
      %v1652 = vadd.f32 0.0, %v1651
      %v1653 = vpop.f32.mrb[0].mxu0
      %1654 = vmatprep.mubr.bf16.mxu0 0
      %1655 = vmatmul.mubr.bf16.gmra.mrb[0].mxu0 %v1593
      %v1656 = vpop.f32.mrb[0].mxu0
      %v1657 = vadd.f32 0.0, %v1656
      %v1658 = vpop.f32.mrb[0].mxu0
      %v1659 = vpop.f32.mrb[0].mxu0
      %v1660 = vadd.f32 0.0, %v1659
      %v1661 = vpop.f32.mrb[0].mxu0
      %1662 = vmatprep.mubr.bf16.mxu0 0
      %1663 = vmatmul.mubr.bf16.gmra.mrb[0].mxu0 %v1594
      %v1664 = vpop.f32.mrb[0].mxu0
      %v1665 = vadd.f32 0.0, %v1664
      %v1666 = vpop.f32.mrb[0].mxu0
      %v1667 = vpop.f32.mrb[0].mxu0
      %v1668 = vadd.f32 0.0, %v1667
      %v1669 = vpop.f32.mrb[0].mxu0
      %1670 = vmatprep.mubr.bf16.mxu0 0
      %1671 = vmatmul.mubr.bf16.gmra.mrb[0].mxu0 %v1595
      %v1672 = vpop.f32.mrb[0].mxu0
      %v1673 = vadd.f32 0.0, %v1672
      %v1674 = vpop.f32.mrb[0].mxu0
      %v1675 = vpop.f32.mrb[0].mxu0
      %v1676 = vadd.f32 0.0, %v1675
      %v1677 = vpop.f32.mrb[0].mxu0
      %1678 = vmatprep.mubr.bf16.mxu0 0
      %1679 = vmatmul.mubr.bf16.gmra.mrb[0].mxu0 %v1596
      %v1680 = vpop.f32.mrb[0].mxu0
      %v1681 = vadd.f32 0.0, %v1680
      %v1682 = vpop.f32.mrb[0].mxu0
      %v1683 = vpop.f32.mrb[0].mxu0
      %v1684 = vadd.f32 0.0, %v1683
      %v1685 = vpop.f32.mrb[0].mxu0
      %1686 = vmatprep.mubr.bf16.mxu0 0
      %1687 = vmatmul.mubr.bf16.gmra.mrb[0].mxu0 %v1597
      %v1688 = vpop.f32.mrb[0].mxu0
      %v1689 = vadd.f32 0.0, %v1688
      %v1690 = vpop.f32.mrb[0].mxu0
      %v1691 = vpop.f32.mrb[0].mxu0
      %v1692 = vadd.f32 0.0, %v1691
      %v1693 = vpop.f32.mrb[0].mxu0
      %1694 = vdwg.mxu0
      %v1695 = vpack.c.bf16 %v1636, %v1633
      %v1696 = vpack.c.bf16 %v1644, %v1641
      %v1697 = vpack.c.bf16 %v1652, %v1649
      %v1698 = vpack.c.bf16 %v1660, %v1657
      %v1699 = vpack.c.bf16 %v1668, %v1665
      %v1700 = vpack.c.bf16 %v1676, %v1673
      %v1701 = vpack.c.bf16 %v1684, %v1681
      %v1702 = vpack.c.bf16 %v1692, %v1689
      %1703 = vst.msk [vmem:[#allocation2] sm:$0xff] %vm433, %v1695
      %1704 = vst.msk [vmem:[#allocation2 + $0x10] sm:$0xff] %vm433, %v1696
      %1705 = vst.msk [vmem:[#allocation2 + $0x20] sm:$0xff] %vm433, %v1697
      %1706 = vst.msk [vmem:[#allocation2 + $0x30] sm:$0xff] %vm433, %v1698
      %1707 = vst.msk [vmem:[#allocation2 + $0x40] sm:$0xff] %vm433, %v1699
      %1708 = vst.msk [vmem:[#allocation2 + $0x50] sm:$0xff] %vm433, %v1700
      %1709 = vst.msk [vmem:[#allocation2 + $0x60] sm:$0xff] %vm433, %v1701
      %1710 = vst.msk [vmem:[#allocation2 + $0x70] sm:$0xff] %vm433, %v1702
      %1719 = vrot.lane.b32.xlu0 %v1202, 64
      %v1720 = vpop.permute.xlu0 %1719
      %1721 = vrot.lane.b32.xlu0 %v1208, 64
      %v1722 = vpop.permute.xlu0 %1721
      %1723 = vrot.lane.b32.xlu0 %v1214, 64
      %v1724 = vpop.permute.xlu0 %1723
      %1725 = vrot.lane.b32.xlu0 %v1220, 64
      %v1726 = vpop.permute.xlu0 %1725
      %1727 = vrot.lane.b32.xlu0 %v1226, 64
      %v1728 = vpop.permute.xlu0 %1727
      %1729 = vrot.lane.b32.xlu0 %v1232, 64
      %v1730 = vpop.permute.xlu0 %1729
      %1731 = vrot.lane.b32.xlu0 %v1238, 64
      %v1732 = vpop.permute.xlu0 %1731
      %1733 = vrot.lane.b32.xlu0 %v1244, 64
      %v1734 = vpop.permute.xlu0 %1733
      %1743 = vrot.lane.b32.xlu0 %v1204, 64
      %v1744 = vpop.permute.xlu0 %1743
      %1745 = vrot.lane.b32.xlu0 %v1210, 64
      %v1746 = vpop.permute.xlu0 %1745
      %1747 = vrot.lane.b32.xlu0 %v1216, 64
      %v1748 = vpop.permute.xlu0 %1747
      %1749 = vrot.lane.b32.xlu0 %v1222, 64
      %v1750 = vpop.permute.xlu0 %1749
      %1751 = vrot.lane.b32.xlu0 %v1228, 64
      %v1752 = vpop.permute.xlu0 %1751
      %1753 = vrot.lane.b32.xlu0 %v1234, 64
      %v1754 = vpop.permute.xlu0 %1753
      %1755 = vrot.lane.b32.xlu0 %v1240, 64
      %v1756 = vpop.permute.xlu0 %1755
      %1757 = vrot.lane.b32.xlu0 %v1246, 64
      %v1758 = vpop.permute.xlu0 %1757
      %v1760 = vsel %vm433, %v1720, 0
      %v1763 = vsel %vm433, %v1722, 0
      %v1766 = vsel %vm433, %v1724, 0
      %v1769 = vsel %vm433, %v1726, 0
      %v1772 = vsel %vm433, %v1728, 0
      %v1775 = vsel %vm433, %v1730, 0
      %v1778 = vsel %vm433, %v1732, 0
      %v1781 = vsel %vm433, %v1734, 0
      %v1784 = vsel %vm433, %v1744, 0
      %v1787 = vsel %vm433, %v1746, 0
      %v1790 = vsel %vm433, %v1748, 0
      %v1793 = vsel %vm433, %v1750, 0
      %v1796 = vsel %vm433, %v1752, 0
      %v1799 = vsel %vm433, %v1754, 0
      %v1802 = vsel %vm433, %v1756, 0
      %v1805 = vsel %vm433, %v1758, 0
      %1807 = vmatprep.subr.bf16.mxu0 0
      %1808 = vmatpush1.bf16.xpose.msra.mxu0 %v1784
      %1809 = vmatprep.subr.bf16.mxu0 0
      %1810 = vmatpush1.bf16.xpose.msra.mxu0 %v1787
      %1811 = vmatprep.subr.bf16.mxu0 0
      %1812 = vmatpush1.bf16.xpose.msra.mxu0 %v1790
      %1813 = vmatprep.subr.bf16.mxu0 0
      %1814 = vmatpush1.bf16.xpose.msra.mxu0 %v1793
      %1815 = vmatprep.subr.bf16.mxu0 0
      %1816 = vmatpush1.bf16.xpose.msra.mxu0 %v1796
      %1817 = vmatprep.subr.bf16.mxu0 0
      %1818 = vmatpush1.bf16.xpose.msra.mxu0 %v1799
      %1819 = vmatprep.subr.bf16.mxu0 0
      %1820 = vmatpush1.bf16.xpose.msra.mxu0 %v1802
      %1821 = vmatprep.subr.bf16.mxu0 0
      %1822 = vmatpush1.bf16.xpose.msra.mxu0 %v1805
      %1823 = vmatprep.subr.bf16.mxu0 0
      %1824 = vmatpush1.bf16.xpose.msra.mxu0 0
      %1825 = vmatprep.subr.bf16.mxu0 0
      %1826 = vmatpush1.bf16.xpose.msra.mxu0 0
      %1827 = vmatprep.subr.bf16.mxu0 0
      %1828 = vmatpush1.bf16.xpose.msra.mxu0 0
      %1829 = vmatprep.subr.bf16.mxu0 0
      %1830 = vmatpush1.bf16.xpose.msra.mxu0 0
      %1831 = vmatprep.subr.bf16.mxu0 0
      %1832 = vmatpush1.bf16.xpose.msra.mxu0 0
      %1833 = vmatprep.subr.bf16.mxu0 0
      %1834 = vmatpush1.bf16.xpose.msra.mxu0 0
      %1835 = vmatprep.subr.bf16.mxu0 0
      %1836 = vmatpush1.bf16.xpose.msra.mxu0 0
      %1837 = vmatprep.subr.bf16.mxu0 0
      %1838 = vmatpush1.bf16.xpose.msra.mxu0 0
      %1839 = vmatprep.mubr.bf16.mxu0 0
      %1840 = vmatmul.mubr.bf16.gmra.mrb[0].mxu0 %v1760
      %v1841 = vpop.f32.mrb[0].mxu0
      %v1842 = vadd.f32 0.0, %v1841
      %v1843 = vpop.f32.mrb[0].mxu0
      %v1844 = vpop.f32.mrb[0].mxu0
      %v1845 = vadd.f32 0.0, %v1844
      %v1846 = vpop.f32.mrb[0].mxu0
      %1847 = vmatprep.mubr.bf16.mxu0 0
      %1848 = vmatmul.mubr.bf16.gmra.mrb[0].mxu0 %v1763
      %v1849 = vpop.f32.mrb[0].mxu0
      %v1850 = vadd.f32 0.0, %v1849
      %v1851 = vpop.f32.mrb[0].mxu0
      %v1852 = vpop.f32.mrb[0].mxu0
      %v1853 = vadd.f32 0.0, %v1852
      %v1854 = vpop.f32.mrb[0].mxu0
      %1855 = vmatprep.mubr.bf16.mxu0 0
      %1856 = vmatmul.mubr.bf16.gmra.mrb[0].mxu0 %v1766
      %v1857 = vpop.f32.mrb[0].mxu0
      %v1858 = vadd.f32 0.0, %v1857
      %v1859 = vpop.f32.mrb[0].mxu0
      %v1860 = vpop.f32.mrb[0].mxu0
      %v1861 = vadd.f32 0.0, %v1860
      %v1862 = vpop.f32.mrb[0].mxu0
      %1863 = vmatprep.mubr.bf16.mxu0 0
      %1864 = vmatmul.mubr.bf16.gmra.mrb[0].mxu0 %v1769
      %v1865 = vpop.f32.mrb[0].mxu0
      %v1866 = vadd.f32 0.0, %v1865
      %v1867 = vpop.f32.mrb[0].mxu0
      %v1868 = vpop.f32.mrb[0].mxu0
      %v1869 = vadd.f32 0.0, %v1868
      %v1870 = vpop.f32.mrb[0].mxu0
      %1871 = vmatprep.mubr.bf16.mxu0 0
      %1872 = vmatmul.mubr.bf16.gmra.mrb[0].mxu0 %v1772
      %v1873 = vpop.f32.mrb[0].mxu0
      %v1874 = vadd.f32 0.0, %v1873
      %v1875 = vpop.f32.mrb[0].mxu0
      %v1876 = vpop.f32.mrb[0].mxu0
      %v1877 = vadd.f32 0.0, %v1876
      %v1878 = vpop.f32.mrb[0].mxu0
      %1879 = vmatprep.mubr.bf16.mxu0 0
      %1880 = vmatmul.mubr.bf16.gmra.mrb[0].mxu0 %v1775
      %v1881 = vpop.f32.mrb[0].mxu0
      %v1882 = vadd.f32 0.0, %v1881
      %v1883 = vpop.f32.mrb[0].mxu0
      %v1884 = vpop.f32.mrb[0].mxu0
      %v1885 = vadd.f32 0.0, %v1884
      %v1886 = vpop.f32.mrb[0].mxu0
      %1887 = vmatprep.mubr.bf16.mxu0 0
      %1888 = vmatmul.mubr.bf16.gmra.mrb[0].mxu0 %v1778
      %v1889 = vpop.f32.mrb[0].mxu0
      %v1890 = vadd.f32 0.0, %v1889
      %v1891 = vpop.f32.mrb[0].mxu0
      %v1892 = vpop.f32.mrb[0].mxu0
      %v1893 = vadd.f32 0.0, %v1892
      %v1894 = vpop.f32.mrb[0].mxu0
      %1895 = vmatprep.mubr.bf16.mxu0 0
      %1896 = vmatmul.mubr.bf16.gmra.mrb[0].mxu0 %v1781
      %v1897 = vpop.f32.mrb[0].mxu0
      %v1898 = vadd.f32 0.0, %v1897
      %v1899 = vpop.f32.mrb[0].mxu0
      %v1900 = vpop.f32.mrb[0].mxu0
      %v1901 = vadd.f32 0.0, %v1900
      %v1902 = vpop.f32.mrb[0].mxu0
      %1903 = vdwg.mxu0
      %v1904 = vsel %vm1269, %v1842, -1e+30
      %v1905 = vsel %vm1270, %v1845, -1e+30
      %v1906 = vsel %vm1271, %v1850, -1e+30
      %v1907 = vsel %vm1272, %v1853, -1e+30
      %v1908 = vsel %vm1273, %v1858, -1e+30
      %v1909 = vsel %vm1274, %v1861, -1e+30
      %v1910 = vsel %vm1275, %v1866, -1e+30
      %v1911 = vsel %vm1276, %v1869, -1e+30
      %v1912 = vsel %vm1277, %v1874, -1e+30
      %v1913 = vsel %vm1278, %v1877, -1e+30
      %v1914 = vsel %vm1279, %v1882, -1e+30
      %v1915 = vsel %vm1280, %v1885, -1e+30
      %v1916 = vsel %vm1281, %v1890, -1e+30
      %v1917 = vsel %vm1282, %v1893, -1e+30
      %v1918 = vsel %vm1283, %v1898, -1e+30
      %v1919 = vsel %vm1284, %v1901, -1e+30
      %1920 = vmax.xlane.f32.xlu0 %v1904
      %v1921 = vpop.xlane.xlu0 %1920
      %1922 = vmax.xlane.f32.xlu0 %v1905
      %v1923 = vpop.xlane.xlu0 %1922
      %1924 = vmax.xlane.f32.xlu0 %v1906
      %v1925 = vpop.xlane.xlu0 %1924
      %1926 = vmax.xlane.f32.xlu0 %v1907
      %v1927 = vpop.xlane.xlu0 %1926
      %1928 = vmax.xlane.f32.xlu0 %v1908
      %v1929 = vpop.xlane.xlu0 %1928
      %1930 = vmax.xlane.f32.xlu0 %v1909
      %v1931 = vpop.xlane.xlu0 %1930
      %1932 = vmax.xlane.f32.xlu0 %v1910
      %v1933 = vpop.xlane.xlu0 %1932
      %1934 = vmax.xlane.f32.xlu0 %v1911
      %v1935 = vpop.xlane.xlu0 %1934
      %1936 = vmax.xlane.f32.xlu0 %v1912
      %v1937 = vpop.xlane.xlu0 %1936
      %1938 = vmax.xlane.f32.xlu0 %v1913
      %v1939 = vpop.xlane.xlu0 %1938
      %1940 = vmax.xlane.f32.xlu0 %v1914
      %v1941 = vpop.xlane.xlu0 %1940
      %1942 = vmax.xlane.f32.xlu0 %v1915
      %v1943 = vpop.xlane.xlu0 %1942
      %1944 = vmax.xlane.f32.xlu0 %v1916
      %v1945 = vpop.xlane.xlu0 %1944
      %1946 = vmax.xlane.f32.xlu0 %v1917
      %v1947 = vpop.xlane.xlu0 %1946
      %1948 = vmax.xlane.f32.xlu0 %v1918
      %v1949 = vpop.xlane.xlu0 %1948
      %1950 = vmax.xlane.f32.xlu0 %v1919
      %v1951 = vpop.xlane.xlu0 %1950
      %v1952 = vsub.f32 %v1904, %v1921
      %v1953 = vsub.f32 %v1905, %v1923
      %v1954 = vsub.f32 %v1906, %v1925
      %v1955 = vsub.f32 %v1907, %v1927
      %v1956 = vsub.f32 %v1908, %v1929
      %v1957 = vsub.f32 %v1909, %v1931
      %v1958 = vsub.f32 %v1910, %v1933
      %v1959 = vsub.f32 %v1911, %v1935
      %v1960 = vsub.f32 %v1912, %v1937
      %v1961 = vsub.f32 %v1913, %v1939
      %v1962 = vsub.f32 %v1914, %v1941
      %v1963 = vsub.f32 %v1915, %v1943
      %v1964 = vsub.f32 %v1916, %v1945
      %v1965 = vsub.f32 %v1917, %v1947
      %v1966 = vsub.f32 %v1918, %v1949
      %v1967 = vsub.f32 %v1919, %v1951
      %v1968 = vmul.f32 %v1952, 1.442695
      %v1969 = vpow.pop %v1968
      %v1970 = vmul.f32 %v1953, 1.442695
      %v1971 = vpow.pop %v1970
      %v1972 = vmul.f32 %v1954, 1.442695
      %v1973 = vpow.pop %v1972
      %v1974 = vmul.f32 %v1955, 1.442695
      %v1975 = vpow.pop %v1974
      %v1976 = vmul.f32 %v1956, 1.442695
      %v1977 = vpow.pop %v1976
      %v1978 = vmul.f32 %v1957, 1.442695
      %v1979 = vpow.pop %v1978
      %v1980 = vmul.f32 %v1958, 1.442695
      %v1981 = vpow.pop %v1980
      %v1982 = vmul.f32 %v1959, 1.442695
      %v1983 = vpow.pop %v1982
      %v1984 = vmul.f32 %v1960, 1.442695
      %v1985 = vpow.pop %v1984
      %v1986 = vmul.f32 %v1961, 1.442695
      %v1987 = vpow.pop %v1986
      %v1988 = vmul.f32 %v1962, 1.442695
      %v1989 = vpow.pop %v1988
      %v1990 = vmul.f32 %v1963, 1.442695
      %v1991 = vpow.pop %v1990
      %v1992 = vmul.f32 %v1964, 1.442695
      %v1993 = vpow.pop %v1992
      %v1994 = vmul.f32 %v1965, 1.442695
      %v1995 = vpow.pop %v1994
      %v1996 = vmul.f32 %v1966, 1.442695
      %v1997 = vpow.pop %v1996
      %v1998 = vmul.f32 %v1967, 1.442695
      %v1999 = vpow.pop %v1998
      %2000 = vadd.xlane.f32.xlu0 %v1969
      %v2001 = vpop.xlane.xlu0 %2000
      %2002 = vadd.xlane.f32.xlu0 %v1971
      %v2003 = vpop.xlane.xlu0 %2002
      %2004 = vadd.xlane.f32.xlu0 %v1973
      %v2005 = vpop.xlane.xlu0 %2004
      %2006 = vadd.xlane.f32.xlu0 %v1975
      %v2007 = vpop.xlane.xlu0 %2006
      %2008 = vadd.xlane.f32.xlu0 %v1977
      %v2009 = vpop.xlane.xlu0 %2008
      %2010 = vadd.xlane.f32.xlu0 %v1979
      %v2011 = vpop.xlane.xlu0 %2010
      %2012 = vadd.xlane.f32.xlu0 %v1981
      %v2013 = vpop.xlane.xlu0 %2012
      %2014 = vadd.xlane.f32.xlu0 %v1983
      %v2015 = vpop.xlane.xlu0 %2014
      %2016 = vadd.xlane.f32.xlu0 %v1985
      %v2017 = vpop.xlane.xlu0 %2016
      %2018 = vadd.xlane.f32.xlu0 %v1987
      %v2019 = vpop.xlane.xlu0 %2018
      %2020 = vadd.xlane.f32.xlu0 %v1989
      %v2021 = vpop.xlane.xlu0 %2020
      %2022 = vadd.xlane.f32.xlu0 %v1991
      %v2023 = vpop.xlane.xlu0 %2022
      %2024 = vadd.xlane.f32.xlu0 %v1993
      %v2025 = vpop.xlane.xlu0 %2024
      %2026 = vadd.xlane.f32.xlu0 %v1995
      %v2027 = vpop.xlane.xlu0 %2026
      %2028 = vadd.xlane.f32.xlu0 %v1997
      %v2029 = vpop.xlane.xlu0 %2028
      %2030 = vadd.xlane.f32.xlu0 %v1999
      %v2031 = vpop.xlane.xlu0 %2030
      %v2032 = vrcp.pop %v2001
      %v2033 = vrcp.pop %v2003
      %v2034 = vrcp.pop %v2005
      %v2035 = vrcp.pop %v2007
      %v2036 = vrcp.pop %v2009
      %v2037 = vrcp.pop %v2011
      %v2038 = vrcp.pop %v2013
      %v2039 = vrcp.pop %v2015
      %v2040 = vrcp.pop %v2017
      %v2041 = vrcp.pop %v2019
      %v2042 = vrcp.pop %v2021
      %v2043 = vrcp.pop %v2023
      %v2044 = vrcp.pop %v2025
      %v2045 = vrcp.pop %v2027
      %v2046 = vrcp.pop %v2029
      %v2047 = vrcp.pop %v2031
      %v2048 = vmul.f32 %v1969, %v2032
      %v2049 = vmul.f32 %v1971, %v2033
      %v2050 = vmul.f32 %v1973, %v2034
      %v2051 = vmul.f32 %v1975, %v2035
      %v2052 = vmul.f32 %v1977, %v2036
      %v2053 = vmul.f32 %v1979, %v2037
      %v2054 = vmul.f32 %v1981, %v2038
      %v2055 = vmul.f32 %v1983, %v2039
      %v2056 = vmul.f32 %v1985, %v2040
      %v2057 = vmul.f32 %v1987, %v2041
      %v2058 = vmul.f32 %v1989, %v2042
      %v2059 = vmul.f32 %v1991, %v2043
      %v2060 = vmul.f32 %v1993, %v2044
      %v2061 = vmul.f32 %v1995, %v2045
      %v2062 = vmul.f32 %v1997, %v2046
      %v2063 = vmul.f32 %v1999, %v2047
      %v2064 = vpack.c.bf16 %v2049, %v2048
      %v2065 = vpack.c.bf16 %v2051, %v2050
      %v2066 = vpack.c.bf16 %v2053, %v2052
      %v2067 = vpack.c.bf16 %v2055, %v2054
      %v2068 = vpack.c.bf16 %v2057, %v2056
      %v2069 = vpack.c.bf16 %v2059, %v2058
      %v2070 = vpack.c.bf16 %v2061, %v2060
      %v2071 = vpack.c.bf16 %v2063, %v2062
      %2080 = vrot.lane.b32.xlu0 %v1206, 64
      %v2081 = vpop.permute.xlu0 %2080
      %2082 = vrot.lane.b32.xlu0 %v1212, 64
      %v2083 = vpop.permute.xlu0 %2082
      %2084 = vrot.lane.b32.xlu0 %v1218, 64
      %v2085 = vpop.permute.xlu0 %2084
      %2086 = vrot.lane.b32.xlu0 %v1224, 64
      %v2087 = vpop.permute.xlu0 %2086
      %2088 = vrot.lane.b32.xlu0 %v1230, 64
      %v2089 = vpop.permute.xlu0 %2088
      %2090 = vrot.lane.b32.xlu0 %v1236, 64
      %v2091 = vpop.permute.xlu0 %2090
      %2092 = vrot.lane.b32.xlu0 %v1242, 64
      %v2093 = vpop.permute.xlu0 %2092
      %2094 = vrot.lane.b32.xlu0 %v1248, 64
      %v2095 = vpop.permute.xlu0 %2094
      %2104 = vmatprep.subr.bf16.mxu0 0
      %2105 = vmatpush1.bf16.msra.mxu0 %v2081
      %2106 = vmatprep.subr.bf16.mxu0 0
      %2107 = vmatpush1.bf16.msra.mxu0 %v2083
      %2108 = vmatprep.subr.bf16.mxu0 0
      %2109 = vmatpush1.bf16.msra.mxu0 %v2085
      %2110 = vmatprep.subr.bf16.mxu0 0
      %2111 = vmatpush1.bf16.msra.mxu0 %v2087
      %2112 = vmatprep.subr.bf16.mxu0 0
      %2113 = vmatpush1.bf16.msra.mxu0 %v2089
      %2114 = vmatprep.subr.bf16.mxu0 0
      %2115 = vmatpush1.bf16.msra.mxu0 %v2091
      %2116 = vmatprep.subr.bf16.mxu0 0
      %2117 = vmatpush1.bf16.msra.mxu0 %v2093
      %2118 = vmatprep.subr.bf16.mxu0 0
      %2119 = vmatpush1.bf16.msra.mxu0 %v2095
      %2120 = vmatprep.subr.bf16.mxu0 0
      %2121 = vmatpush1.bf16.msra.mxu0 0
      %2122 = vmatprep.subr.bf16.mxu0 0
      %2123 = vmatpush1.bf16.msra.mxu0 0
      %2124 = vmatprep.subr.bf16.mxu0 0
      %2125 = vmatpush1.bf16.msra.mxu0 0
      %2126 = vmatprep.subr.bf16.mxu0 0
      %2127 = vmatpush1.bf16.msra.mxu0 0
      %2128 = vmatprep.subr.bf16.mxu0 0
      %2129 = vmatpush1.bf16.msra.mxu0 0
      %2130 = vmatprep.subr.bf16.mxu0 0
      %2131 = vmatpush1.bf16.msra.mxu0 0
      %2132 = vmatprep.subr.bf16.mxu0 0
      %2133 = vmatpush1.bf16.msra.mxu0 0
      %2134 = vmatprep.subr.bf16.mxu0 0
      %2135 = vmatpush1.bf16.msra.mxu0 0
      %2136 = vmatprep.mubr.bf16.mxu0 0
      %2137 = vmatmul.mubr.bf16.gmra.mrb[0].mxu0 %v2064
      %v2138 = vpop.f32.mrb[0].mxu0
      %v2139 = vadd.f32 0.0, %v2138
      %v2140 = vpop.f32.mrb[0].mxu0
      %v2141 = vpop.f32.mrb[0].mxu0
      %v2142 = vadd.f32 0.0, %v2141
      %v2143 = vpop.f32.mrb[0].mxu0
      %2144 = vmatprep.mubr.bf16.mxu0 0
      %2145 = vmatmul.mubr.bf16.gmra.mrb[0].mxu0 %v2065
      %v2146 = vpop.f32.mrb[0].mxu0
      %v2147 = vadd.f32 0.0, %v2146
      %v2148 = vpop.f32.mrb[0].mxu0
      %v2149 = vpop.f32.mrb[0].mxu0
      %v2150 = vadd.f32 0.0, %v2149
      %v2151 = vpop.f32.mrb[0].mxu0
      %2152 = vmatprep.mubr.bf16.mxu0 0
      %2153 = vmatmul.mubr.bf16.gmra.mrb[0].mxu0 %v2066
      %v2154 = vpop.f32.mrb[0].mxu0
      %v2155 = vadd.f32 0.0, %v2154
      %v2156 = vpop.f32.mrb[0].mxu0
      %v2157 = vpop.f32.mrb[0].mxu0
      %v2158 = vadd.f32 0.0, %v2157
      %v2159 = vpop.f32.mrb[0].mxu0
      %2160 = vmatprep.mubr.bf16.mxu0 0
      %2161 = vmatmul.mubr.bf16.gmra.mrb[0].mxu0 %v2067
      %v2162 = vpop.f32.mrb[0].mxu0
      %v2163 = vadd.f32 0.0, %v2162
      %v2164 = vpop.f32.mrb[0].mxu0
      %v2165 = vpop.f32.mrb[0].mxu0
      %v2166 = vadd.f32 0.0, %v2165
      %v2167 = vpop.f32.mrb[0].mxu0
      %2168 = vmatprep.mubr.bf16.mxu0 0
      %2169 = vmatmul.mubr.bf16.gmra.mrb[0].mxu0 %v2068
      %v2170 = vpop.f32.mrb[0].mxu0
      %v2171 = vadd.f32 0.0, %v2170
      %v2172 = vpop.f32.mrb[0].mxu0
      %v2173 = vpop.f32.mrb[0].mxu0
      %v2174 = vadd.f32 0.0, %v2173
      %v2175 = vpop.f32.mrb[0].mxu0
      %2176 = vmatprep.mubr.bf16.mxu0 0
      %2177 = vmatmul.mubr.bf16.gmra.mrb[0].mxu0 %v2069
      %v2178 = vpop.f32.mrb[0].mxu0
      %v2179 = vadd.f32 0.0, %v2178
      %v2180 = vpop.f32.mrb[0].mxu0
      %v2181 = vpop.f32.mrb[0].mxu0
      %v2182 = vadd.f32 0.0, %v2181
      %v2183 = vpop.f32.mrb[0].mxu0
      %2184 = vmatprep.mubr.bf16.mxu0 0
      %2185 = vmatmul.mubr.bf16.gmra.mrb[0].mxu0 %v2070
      %v2186 = vpop.f32.mrb[0].mxu0
      %v2187 = vadd.f32 0.0, %v2186
      %v2188 = vpop.f32.mrb[0].mxu0
      %v2189 = vpop.f32.mrb[0].mxu0
      %v2190 = vadd.f32 0.0, %v2189
      %v2191 = vpop.f32.mrb[0].mxu0
      %2192 = vmatprep.mubr.bf16.mxu0 0
      %2193 = vmatmul.mubr.bf16.gmra.mrb[0].mxu0 %v2071
      %v2194 = vpop.f32.mrb[0].mxu0
      %v2195 = vadd.f32 0.0, %v2194
      %v2196 = vpop.f32.mrb[0].mxu0
      %v2197 = vpop.f32.mrb[0].mxu0
      %v2198 = vadd.f32 0.0, %v2197
      %v2199 = vpop.f32.mrb[0].mxu0
      %2200 = vdwg.mxu0
      %v2201 = vpack.c.bf16 %v2142, %v2139
      %v2202 = vpack.c.bf16 %v2150, %v2147
      %v2203 = vpack.c.bf16 %v2158, %v2155
      %v2204 = vpack.c.bf16 %v2166, %v2163
      %v2205 = vpack.c.bf16 %v2174, %v2171
      %v2206 = vpack.c.bf16 %v2182, %v2179
      %v2207 = vpack.c.bf16 %v2190, %v2187
      %v2208 = vpack.c.bf16 %v2198, %v2195
      %2217 = vrot.lane.b32.xlu0 %v2201, 64
      %v2218 = vpop.permute.xlu0 %2217
      %2219 = vrot.lane.b32.xlu0 %v2202, 64
      %v2220 = vpop.permute.xlu0 %2219
      %2221 = vrot.lane.b32.xlu0 %v2203, 64
      %v2222 = vpop.permute.xlu0 %2221
      %2223 = vrot.lane.b32.xlu0 %v2204, 64
      %v2224 = vpop.permute.xlu0 %2223
      %2225 = vrot.lane.b32.xlu0 %v2205, 64
      %v2226 = vpop.permute.xlu0 %2225
      %2227 = vrot.lane.b32.xlu0 %v2206, 64
      %v2228 = vpop.permute.xlu0 %2227
      %2229 = vrot.lane.b32.xlu0 %v2207, 64
      %v2230 = vpop.permute.xlu0 %2229
      %2231 = vrot.lane.b32.xlu0 %v2208, 64
      %v2232 = vpop.permute.xlu0 %2231
      %vm2241 = vcmask 1048064
      %2242 = vst.msk [vmem:[#allocation2] sm:$0xff] %vm2241, %v2218
      %2243 = vst.msk [vmem:[#allocation2 + $0x10] sm:$0xff] %vm2241, %v2220
      %2244 = vst.msk [vmem:[#allocation2 + $0x20] sm:$0xff] %vm2241, %v2222
      %2245 = vst.msk [vmem:[#allocation2 + $0x30] sm:$0xff] %vm2241, %v2224
      %2246 = vst.msk [vmem:[#allocation2 + $0x40] sm:$0xff] %vm2241, %v2226
      %2247 = vst.msk [vmem:[#allocation2 + $0x50] sm:$0xff] %vm2241, %v2228
      %2248 = vst.msk [vmem:[#allocation2 + $0x60] sm:$0xff] %vm2241, %v2230
      %2249 = vst.msk [vmem:[#allocation2 + $0x70] sm:$0xff] %vm2241, %v2232
      %v2251 = vsel %vm433, %v1203, 0
      %v2254 = vsel %vm433, %v1209, 0
      %v2257 = vsel %vm433, %v1215, 0
      %v2260 = vsel %vm433, %v1221, 0
      %v2263 = vsel %vm433, %v1227, 0
      %v2266 = vsel %vm433, %v1233, 0
      %v2269 = vsel %vm433, %v1239, 0
      %v2272 = vsel %vm433, %v1245, 0
      %v2275 = vsel %vm433, %v1205, 0
      %v2278 = vsel %vm433, %v1211, 0
      %v2281 = vsel %vm433, %v1217, 0
      %v2284 = vsel %vm433, %v1223, 0
      %v2287 = vsel %vm433, %v1229, 0
      %v2290 = vsel %vm433, %v1235, 0
      %v2293 = vsel %vm433, %v1241, 0
      %v2296 = vsel %vm433, %v1247, 0
      %2298 = vmatprep.subr.bf16.mxu0 0
      %2299 = vmatpush1.bf16.xpose.msra.mxu0 %v2275
      %2300 = vmatprep.subr.bf16.mxu0 0
      %2301 = vmatpush1.bf16.xpose.msra.mxu0 %v2278
      %2302 = vmatprep.subr.bf16.mxu0 0
      %2303 = vmatpush1.bf16.xpose.msra.mxu0 %v2281
      %2304 = vmatprep.subr.bf16.mxu0 0
      %2305 = vmatpush1.bf16.xpose.msra.mxu0 %v2284
      %2306 = vmatprep.subr.bf16.mxu0 0
      %2307 = vmatpush1.bf16.xpose.msra.mxu0 %v2287
      %2308 = vmatprep.subr.bf16.mxu0 0
      %2309 = vmatpush1.bf16.xpose.msra.mxu0 %v2290
      %2310 = vmatprep.subr.bf16.mxu0 0
      %2311 = vmatpush1.bf16.xpose.msra.mxu0 %v2293
      %2312 = vmatprep.subr.bf16.mxu0 0
      %2313 = vmatpush1.bf16.xpose.msra.mxu0 %v2296
      %2314 = vmatprep.subr.bf16.mxu0 0
      %2315 = vmatpush1.bf16.xpose.msra.mxu0 0
      %2316 = vmatprep.subr.bf16.mxu0 0
      %2317 = vmatpush1.bf16.xpose.msra.mxu0 0
      %2318 = vmatprep.subr.bf16.mxu0 0
      %2319 = vmatpush1.bf16.xpose.msra.mxu0 0
      %2320 = vmatprep.subr.bf16.mxu0 0
      %2321 = vmatpush1.bf16.xpose.msra.mxu0 0
      %2322 = vmatprep.subr.bf16.mxu0 0
      %2323 = vmatpush1.bf16.xpose.msra.mxu0 0
      %2324 = vmatprep.subr.bf16.mxu0 0
      %2325 = vmatpush1.bf16.xpose.msra.mxu0 0
      %2326 = vmatprep.subr.bf16.mxu0 0
      %2327 = vmatpush1.bf16.xpose.msra.mxu0 0
      %2328 = vmatprep.subr.bf16.mxu0 0
      %2329 = vmatpush1.bf16.xpose.msra.mxu0 0
      %2330 = vmatprep.mubr.bf16.mxu0 0
      %2331 = vmatmul.mubr.bf16.gmra.mrb[0].mxu0 %v2251
      %v2332 = vpop.f32.mrb[0].mxu0
      %v2333 = vadd.f32 0.0, %v2332
      %v2334 = vpop.f32.mrb[0].mxu0
      %v2335 = vpop.f32.mrb[0].mxu0
      %v2336 = vadd.f32 0.0, %v2335
      %v2337 = vpop.f32.mrb[0].mxu0
      %2338 = vmatprep.mubr.bf16.mxu0 0
      %2339 = vmatmul.mubr.bf16.gmra.mrb[0].mxu0 %v2254
      %v2340 = vpop.f32.mrb[0].mxu0
      %v2341 = vadd.f32 0.0, %v2340
      %v2342 = vpop.f32.mrb[0].mxu0
      %v2343 = vpop.f32.mrb[0].mxu0
      %v2344 = vadd.f32 0.0, %v2343
      %v2345 = vpop.f32.mrb[0].mxu0
      %2346 = vmatprep.mubr.bf16.mxu0 0
      %2347 = vmatmul.mubr.bf16.gmra.mrb[0].mxu0 %v2257
      %v2348 = vpop.f32.mrb[0].mxu0
      %v2349 = vadd.f32 0.0, %v2348
      %v2350 = vpop.f32.mrb[0].mxu0
      %v2351 = vpop.f32.mrb[0].mxu0
      %v2352 = vadd.f32 0.0, %v2351
      %v2353 = vpop.f32.mrb[0].mxu0
      %2354 = vmatprep.mubr.bf16.mxu0 0
      %2355 = vmatmul.mubr.bf16.gmra.mrb[0].mxu0 %v2260
      %v2356 = vpop.f32.mrb[0].mxu0
      %v2357 = vadd.f32 0.0, %v2356
      %v2358 = vpop.f32.mrb[0].mxu0
      %v2359 = vpop.f32.mrb[0].mxu0
      %v2360 = vadd.f32 0.0, %v2359
      %v2361 = vpop.f32.mrb[0].mxu0
      %2362 = vmatprep.mubr.bf16.mxu0 0
      %2363 = vmatmul.mubr.bf16.gmra.mrb[0].mxu0 %v2263
      %v2364 = vpop.f32.mrb[0].mxu0
      %v2365 = vadd.f32 0.0, %v2364
      %v2366 = vpop.f32.mrb[0].mxu0
      %v2367 = vpop.f32.mrb[0].mxu0
      %v2368 = vadd.f32 0.0, %v2367
      %v2369 = vpop.f32.mrb[0].mxu0
      %2370 = vmatprep.mubr.bf16.mxu0 0
      %2371 = vmatmul.mubr.bf16.gmra.mrb[0].mxu0 %v2266
      %v2372 = vpop.f32.mrb[0].mxu0
      %v2373 = vadd.f32 0.0, %v2372
      %v2374 = vpop.f32.mrb[0].mxu0
      %v2375 = vpop.f32.mrb[0].mxu0
      %v2376 = vadd.f32 0.0, %v2375
      %v2377 = vpop.f32.mrb[0].mxu0
      %2378 = vmatprep.mubr.bf16.mxu0 0
      %2379 = vmatmul.mubr.bf16.gmra.mrb[0].mxu0 %v2269
      %v2380 = vpop.f32.mrb[0].mxu0
      %v2381 = vadd.f32 0.0, %v2380
      %v2382 = vpop.f32.mrb[0].mxu0
      %v2383 = vpop.f32.mrb[0].mxu0
      %v2384 = vadd.f32 0.0, %v2383
      %v2385 = vpop.f32.mrb[0].mxu0
      %2386 = vmatprep.mubr.bf16.mxu0 0
      %2387 = vmatmul.mubr.bf16.gmra.mrb[0].mxu0 %v2272
      %v2388 = vpop.f32.mrb[0].mxu0
      %v2389 = vadd.f32 0.0, %v2388
      %v2390 = vpop.f32.mrb[0].mxu0
      %v2391 = vpop.f32.mrb[0].mxu0
      %v2392 = vadd.f32 0.0, %v2391
      %v2393 = vpop.f32.mrb[0].mxu0
      %2394 = vdwg.mxu0
      %v2395 = vsel %vm1269, %v2333, -1e+30
      %v2396 = vsel %vm1270, %v2336, -1e+30
      %v2397 = vsel %vm1271, %v2341, -1e+30
      %v2398 = vsel %vm1272, %v2344, -1e+30
      %v2399 = vsel %vm1273, %v2349, -1e+30
      %v2400 = vsel %vm1274, %v2352, -1e+30
      %v2401 = vsel %vm1275, %v2357, -1e+30
      %v2402 = vsel %vm1276, %v2360, -1e+30
      %v2403 = vsel %vm1277, %v2365, -1e+30
      %v2404 = vsel %vm1278, %v2368, -1e+30
      %v2405 = vsel %vm1279, %v2373, -1e+30
      %v2406 = vsel %vm1280, %v2376, -1e+30
      %v2407 = vsel %vm1281, %v2381, -1e+30
      %v2408 = vsel %vm1282, %v2384, -1e+30
      %v2409 = vsel %vm1283, %v2389, -1e+30
      %v2410 = vsel %vm1284, %v2392, -1e+30
      %2411 = vmax.xlane.f32.xlu0 %v2395
      %v2412 = vpop.xlane.xlu0 %2411
      %2413 = vmax.xlane.f32.xlu0 %v2396
      %v2414 = vpop.xlane.xlu0 %2413
      %2415 = vmax.xlane.f32.xlu0 %v2397
      %v2416 = vpop.xlane.xlu0 %2415
      %2417 = vmax.xlane.f32.xlu0 %v2398
      %v2418 = vpop.xlane.xlu0 %2417
      %2419 = vmax.xlane.f32.xlu0 %v2399
      %v2420 = vpop.xlane.xlu0 %2419
      %2421 = vmax.xlane.f32.xlu0 %v2400
      %v2422 = vpop.xlane.xlu0 %2421
      %2423 = vmax.xlane.f32.xlu0 %v2401
      %v2424 = vpop.xlane.xlu0 %2423
      %2425 = vmax.xlane.f32.xlu0 %v2402
      %v2426 = vpop.xlane.xlu0 %2425
      %2427 = vmax.xlane.f32.xlu0 %v2403
      %v2428 = vpop.xlane.xlu0 %2427
      %2429 = vmax.xlane.f32.xlu0 %v2404
      %v2430 = vpop.xlane.xlu0 %2429
      %2431 = vmax.xlane.f32.xlu0 %v2405
      %v2432 = vpop.xlane.xlu0 %2431
      %2433 = vmax.xlane.f32.xlu0 %v2406
      %v2434 = vpop.xlane.xlu0 %2433
      %2435 = vmax.xlane.f32.xlu0 %v2407
      %v2436 = vpop.xlane.xlu0 %2435
      %2437 = vmax.xlane.f32.xlu0 %v2408
      %v2438 = vpop.xlane.xlu0 %2437
      %2439 = vmax.xlane.f32.xlu0 %v2409
      %v2440 = vpop.xlane.xlu0 %2439
      %2441 = vmax.xlane.f32.xlu0 %v2410
      %v2442 = vpop.xlane.xlu0 %2441
      %v2443 = vsub.f32 %v2395, %v2412
      %v2444 = vsub.f32 %v2396, %v2414
      %v2445 = vsub.f32 %v2397, %v2416
      %v2446 = vsub.f32 %v2398, %v2418
      %v2447 = vsub.f32 %v2399, %v2420
      %v2448 = vsub.f32 %v2400, %v2422
      %v2449 = vsub.f32 %v2401, %v2424
      %v2450 = vsub.f32 %v2402, %v2426
      %v2451 = vsub.f32 %v2403, %v2428
      %v2452 = vsub.f32 %v2404, %v2430
      %v2453 = vsub.f32 %v2405, %v2432
      %v2454 = vsub.f32 %v2406, %v2434
      %v2455 = vsub.f32 %v2407, %v2436
      %v2456 = vsub.f32 %v2408, %v2438
      %v2457 = vsub.f32 %v2409, %v2440
      %v2458 = vsub.f32 %v2410, %v2442
      %v2459 = vmul.f32 %v2443, 1.442695
      %v2460 = vpow.pop %v2459
      %v2461 = vmul.f32 %v2444, 1.442695
      %v2462 = vpow.pop %v2461
      %v2463 = vmul.f32 %v2445, 1.442695
      %v2464 = vpow.pop %v2463
      %v2465 = vmul.f32 %v2446, 1.442695
      %v2466 = vpow.pop %v2465
      %v2467 = vmul.f32 %v2447, 1.442695
      %v2468 = vpow.pop %v2467
      %v2469 = vmul.f32 %v2448, 1.442695
      %v2470 = vpow.pop %v2469
      %v2471 = vmul.f32 %v2449, 1.442695
      %v2472 = vpow.pop %v2471
      %v2473 = vmul.f32 %v2450, 1.442695
      %v2474 = vpow.pop %v2473
      %v2475 = vmul.f32 %v2451, 1.442695
      %v2476 = vpow.pop %v2475
      %v2477 = vmul.f32 %v2452, 1.442695
      %v2478 = vpow.pop %v2477
      %v2479 = vmul.f32 %v2453, 1.442695
      %v2480 = vpow.pop %v2479
      %v2481 = vmul.f32 %v2454, 1.442695
      %v2482 = vpow.pop %v2481
      %v2483 = vmul.f32 %v2455, 1.442695
      %v2484 = vpow.pop %v2483
      %v2485 = vmul.f32 %v2456, 1.442695
      %v2486 = vpow.pop %v2485
      %v2487 = vmul.f32 %v2457, 1.442695
      %v2488 = vpow.pop %v2487
      %v2489 = vmul.f32 %v2458, 1.442695
      %v2490 = vpow.pop %v2489
      %2491 = vadd.xlane.f32.xlu0 %v2460
      %v2492 = vpop.xlane.xlu0 %2491
      %2493 = vadd.xlane.f32.xlu0 %v2462
      %v2494 = vpop.xlane.xlu0 %2493
      %2495 = vadd.xlane.f32.xlu0 %v2464
      %v2496 = vpop.xlane.xlu0 %2495
      %2497 = vadd.xlane.f32.xlu0 %v2466
      %v2498 = vpop.xlane.xlu0 %2497
      %2499 = vadd.xlane.f32.xlu0 %v2468
      %v2500 = vpop.xlane.xlu0 %2499
      %2501 = vadd.xlane.f32.xlu0 %v2470
      %v2502 = vpop.xlane.xlu0 %2501
      %2503 = vadd.xlane.f32.xlu0 %v2472
      %v2504 = vpop.xlane.xlu0 %2503
      %2505 = vadd.xlane.f32.xlu0 %v2474
      %v2506 = vpop.xlane.xlu0 %2505
      %2507 = vadd.xlane.f32.xlu0 %v2476
      %v2508 = vpop.xlane.xlu0 %2507
      %2509 = vadd.xlane.f32.xlu0 %v2478
      %v2510 = vpop.xlane.xlu0 %2509
      %2511 = vadd.xlane.f32.xlu0 %v2480
      %v2512 = vpop.xlane.xlu0 %2511
      %2513 = vadd.xlane.f32.xlu0 %v2482
      %v2514 = vpop.xlane.xlu0 %2513
      %2515 = vadd.xlane.f32.xlu0 %v2484
      %v2516 = vpop.xlane.xlu0 %2515
      %2517 = vadd.xlane.f32.xlu0 %v2486
      %v2518 = vpop.xlane.xlu0 %2517
      %2519 = vadd.xlane.f32.xlu0 %v2488
      %v2520 = vpop.xlane.xlu0 %2519
      %2521 = vadd.xlane.f32.xlu0 %v2490
      %v2522 = vpop.xlane.xlu0 %2521
      %v2523 = vrcp.pop %v2492
      %v2524 = vrcp.pop %v2494
      %v2525 = vrcp.pop %v2496
      %v2526 = vrcp.pop %v2498
      %v2527 = vrcp.pop %v2500
      %v2528 = vrcp.pop %v2502
      %v2529 = vrcp.pop %v2504
      %v2530 = vrcp.pop %v2506
      %v2531 = vrcp.pop %v2508
      %v2532 = vrcp.pop %v2510
      %v2533 = vrcp.pop %v2512
      %v2534 = vrcp.pop %v2514
      %v2535 = vrcp.pop %v2516
      %v2536 = vrcp.pop %v2518
      %v2537 = vrcp.pop %v2520
      %v2538 = vrcp.pop %v2522
      %v2539 = vmul.f32 %v2460, %v2523
      %v2540 = vmul.f32 %v2462, %v2524
      %v2541 = vmul.f32 %v2464, %v2525
      %v2542 = vmul.f32 %v2466, %v2526
      %v2543 = vmul.f32 %v2468, %v2527
      %v2544 = vmul.f32 %v2470, %v2528
      %v2545 = vmul.f32 %v2472, %v2529
      %v2546 = vmul.f32 %v2474, %v2530
      %v2547 = vmul.f32 %v2476, %v2531
      %v2548 = vmul.f32 %v2478, %v2532
      %v2549 = vmul.f32 %v2480, %v2533
      %v2550 = vmul.f32 %v2482, %v2534
      %v2551 = vmul.f32 %v2484, %v2535
      %v2552 = vmul.f32 %v2486, %v2536
      %v2553 = vmul.f32 %v2488, %v2537
      %v2554 = vmul.f32 %v2490, %v2538
      %v2555 = vpack.c.bf16 %v2540, %v2539
      %v2556 = vpack.c.bf16 %v2542, %v2541
      %v2557 = vpack.c.bf16 %v2544, %v2543
      %v2558 = vpack.c.bf16 %v2546, %v2545
      %v2559 = vpack.c.bf16 %v2548, %v2547
      %v2560 = vpack.c.bf16 %v2550, %v2549
      %v2561 = vpack.c.bf16 %v2552, %v2551
      %v2562 = vpack.c.bf16 %v2554, %v2553
      %2563 = vmatprep.subr.bf16.mxu0 0
      %2564 = vmatpush1.bf16.msra.mxu0 %v1207
      %2565 = vmatprep.subr.bf16.mxu0 0
      %2566 = vmatpush1.bf16.msra.mxu0 %v1213
      %2567 = vmatprep.subr.bf16.mxu0 0
      %2568 = vmatpush1.bf16.msra.mxu0 %v1219
      %2569 = vmatprep.subr.bf16.mxu0 0
      %2570 = vmatpush1.bf16.msra.mxu0 %v1225
      %2571 = vmatprep.subr.bf16.mxu0 0
      %2572 = vmatpush1.bf16.msra.mxu0 %v1231
      %2573 = vmatprep.subr.bf16.mxu0 0
      %2574 = vmatpush1.bf16.msra.mxu0 %v1237
      %2575 = vmatprep.subr.bf16.mxu0 0
      %2576 = vmatpush1.bf16.msra.mxu0 %v1243
      %2577 = vmatprep.subr.bf16.mxu0 0
      %2578 = vmatpush1.bf16.msra.mxu0 %v1249
      %2579 = vmatprep.subr.bf16.mxu0 0
      %2580 = vmatpush1.bf16.msra.mxu0 0
      %2581 = vmatprep.subr.bf16.mxu0 0
      %2582 = vmatpush1.bf16.msra.mxu0 0
      %2583 = vmatprep.subr.bf16.mxu0 0
      %2584 = vmatpush1.bf16.msra.mxu0 0
      %2585 = vmatprep.subr.bf16.mxu0 0
      %2586 = vmatpush1.bf16.msra.mxu0 0
      %2587 = vmatprep.subr.bf16.mxu0 0
      %2588 = vmatpush1.bf16.msra.mxu0 0
      %2589 = vmatprep.subr.bf16.mxu0 0
      %2590 = vmatpush1.bf16.msra.mxu0 0
      %2591 = vmatprep.subr.bf16.mxu0 0
      %2592 = vmatpush1.bf16.msra.mxu0 0
      %2593 = vmatprep.subr.bf16.mxu0 0
      %2594 = vmatpush1.bf16.msra.mxu0 0
      %2595 = vmatprep.mubr.bf16.mxu0 0
      %2596 = vmatmul.mubr.bf16.gmra.mrb[0].mxu0 %v2555
      %v2597 = vpop.f32.mrb[0].mxu0
      %v2598 = vadd.f32 0.0, %v2597
      %v2599 = vpop.f32.mrb[0].mxu0
      %v2600 = vpop.f32.mrb[0].mxu0
      %v2601 = vadd.f32 0.0, %v2600
      %v2602 = vpop.f32.mrb[0].mxu0
      %2603 = vmatprep.mubr.bf16.mxu0 0
      %2604 = vmatmul.mubr.bf16.gmra.mrb[0].mxu0 %v2556
      %v2605 = vpop.f32.mrb[0].mxu0
      %v2606 = vadd.f32 0.0, %v2605
      %v2607 = vpop.f32.mrb[0].mxu0
      %v2608 = vpop.f32.mrb[0].mxu0
      %v2609 = vadd.f32 0.0, %v2608
      %v2610 = vpop.f32.mrb[0].mxu0
      %2611 = vmatprep.mubr.bf16.mxu0 0
      %2612 = vmatmul.mubr.bf16.gmra.mrb[0].mxu0 %v2557
      %v2613 = vpop.f32.mrb[0].mxu0
      %v2614 = vadd.f32 0.0, %v2613
      %v2615 = vpop.f32.mrb[0].mxu0
      %v2616 = vpop.f32.mrb[0].mxu0
      %v2617 = vadd.f32 0.0, %v2616
      %v2618 = vpop.f32.mrb[0].mxu0
      %2619 = vmatprep.mubr.bf16.mxu0 0
      %2620 = vmatmul.mubr.bf16.gmra.mrb[0].mxu0 %v2558
      %v2621 = vpop.f32.mrb[0].mxu0
      %v2622 = vadd.f32 0.0, %v2621
      %v2623 = vpop.f32.mrb[0].mxu0
      %v2624 = vpop.f32.mrb[0].mxu0
      %v2625 = vadd.f32 0.0, %v2624
      %v2626 = vpop.f32.mrb[0].mxu0
      %2627 = vmatprep.mubr.bf16.mxu0 0
      %2628 = vmatmul.mubr.bf16.gmra.mrb[0].mxu0 %v2559
      %v2629 = vpop.f32.mrb[0].mxu0
      %v2630 = vadd.f32 0.0, %v2629
      %v2631 = vpop.f32.mrb[0].mxu0
      %v2632 = vpop.f32.mrb[0].mxu0
      %v2633 = vadd.f32 0.0, %v2632
      %v2634 = vpop.f32.mrb[0].mxu0
      %2635 = vmatprep.mubr.bf16.mxu0 0
      %2636 = vmatmul.mubr.bf16.gmra.mrb[0].mxu0 %v2560
      %v2637 = vpop.f32.mrb[0].mxu0
      %v2638 = vadd.f32 0.0, %v2637
      %v2639 = vpop.f32.mrb[0].mxu0
      %v2640 = vpop.f32.mrb[0].mxu0
      %v2641 = vadd.f32 0.0, %v2640
      %v2642 = vpop.f32.mrb[0].mxu0
      %2643 = vmatprep.mubr.bf16.mxu0 0
      %2644 = vmatmul.mubr.bf16.gmra.mrb[0].mxu0 %v2561
      %v2645 = vpop.f32.mrb[0].mxu0
      %v2646 = vadd.f32 0.0, %v2645
      %v2647 = vpop.f32.mrb[0].mxu0
      %v2648 = vpop.f32.mrb[0].mxu0
      %v2649 = vadd.f32 0.0, %v2648
      %v2650 = vpop.f32.mrb[0].mxu0
      %2651 = vmatprep.mubr.bf16.mxu0 0
      %2652 = vmatmul.mubr.bf16.gmra.mrb[0].mxu0 %v2562
      %v2653 = vpop.f32.mrb[0].mxu0
      %v2654 = vadd.f32 0.0, %v2653
      %v2655 = vpop.f32.mrb[0].mxu0
      %v2656 = vpop.f32.mrb[0].mxu0
      %v2657 = vadd.f32 0.0, %v2656
      %v2658 = vpop.f32.mrb[0].mxu0
      %2659 = vdwg.mxu0
      %v2660 = vpack.c.bf16 %v2601, %v2598
      %v2661 = vpack.c.bf16 %v2609, %v2606
      %v2662 = vpack.c.bf16 %v2617, %v2614
      %v2663 = vpack.c.bf16 %v2625, %v2622
      %v2664 = vpack.c.bf16 %v2633, %v2630
      %v2665 = vpack.c.bf16 %v2641, %v2638
      %v2666 = vpack.c.bf16 %v2649, %v2646
      %v2667 = vpack.c.bf16 %v2657, %v2654
      %2668 = vst.msk [vmem:[#allocation2 + $0x8] sm:$0xff] %vm433, %v2660
      %2669 = vst.msk [vmem:[#allocation2 + $0x18] sm:$0xff] %vm433, %v2661
      %2670 = vst.msk [vmem:[#allocation2 + $0x28] sm:$0xff] %vm433, %v2662
      %2671 = vst.msk [vmem:[#allocation2 + $0x38] sm:$0xff] %vm433, %v2663
      %2672 = vst.msk [vmem:[#allocation2 + $0x48] sm:$0xff] %vm433, %v2664
      %2673 = vst.msk [vmem:[#allocation2 + $0x58] sm:$0xff] %vm433, %v2665
      %2674 = vst.msk [vmem:[#allocation2 + $0x68] sm:$0xff] %vm433, %v2666
      %2675 = vst.msk [vmem:[#allocation2 + $0x78] sm:$0xff] %vm433, %v2667
      %2684 = vrot.lane.b32.xlu0 %v1203, 64
      %v2685 = vpop.permute.xlu0 %2684
      %2686 = vrot.lane.b32.xlu0 %v1209, 64
      %v2687 = vpop.permute.xlu0 %2686
      %2688 = vrot.lane.b32.xlu0 %v1215, 64
      %v2689 = vpop.permute.xlu0 %2688
      %2690 = vrot.lane.b32.xlu0 %v1221, 64
      %v2691 = vpop.permute.xlu0 %2690
      %2692 = vrot.lane.b32.xlu0 %v1227, 64
      %v2693 = vpop.permute.xlu0 %2692
      %2694 = vrot.lane.b32.xlu0 %v1233, 64
      %v2695 = vpop.permute.xlu0 %2694
      %2696 = vrot.lane.b32.xlu0 %v1239, 64
      %v2697 = vpop.permute.xlu0 %2696
      %2698 = vrot.lane.b32.xlu0 %v1245, 64
      %v2699 = vpop.permute.xlu0 %2698
      %2708 = vrot.lane.b32.xlu0 %v1205, 64
      %v2709 = vpop.permute.xlu0 %2708
      %2710 = vrot.lane.b32.xlu0 %v1211, 64
      %v2711 = vpop.permute.xlu0 %2710
      %2712 = vrot.lane.b32.xlu0 %v1217, 64
      %v2713 = vpop.permute.xlu0 %2712
      %2714 = vrot.lane.b32.xlu0 %v1223, 64
      %v2715 = vpop.permute.xlu0 %2714
      %2716 = vrot.lane.b32.xlu0 %v1229, 64
      %v2717 = vpop.permute.xlu0 %2716
      %2718 = vrot.lane.b32.xlu0 %v1235, 64
      %v2719 = vpop.permute.xlu0 %2718
      %2720 = vrot.lane.b32.xlu0 %v1241, 64
      %v2721 = vpop.permute.xlu0 %2720
      %2722 = vrot.lane.b32.xlu0 %v1247, 64
      %v2723 = vpop.permute.xlu0 %2722
      %v2725 = vsel %vm433, %v2685, 0
      %v2728 = vsel %vm433, %v2687, 0
      %v2731 = vsel %vm433, %v2689, 0
      %v2734 = vsel %vm433, %v2691, 0
      %v2737 = vsel %vm433, %v2693, 0
      %v2740 = vsel %vm433, %v2695, 0
      %v2743 = vsel %vm433, %v2697, 0
      %v2746 = vsel %vm433, %v2699, 0
      %v2749 = vsel %vm433, %v2709, 0
      %v2752 = vsel %vm433, %v2711, 0
      %v2755 = vsel %vm433, %v2713, 0
      %v2758 = vsel %vm433, %v2715, 0
      %v2761 = vsel %vm433, %v2717, 0
      %v2764 = vsel %vm433, %v2719, 0
      %v2767 = vsel %vm433, %v2721, 0
      %v2770 = vsel %vm433, %v2723, 0
      %2772 = vmatprep.subr.bf16.mxu0 0
      %2773 = vmatpush1.bf16.xpose.msra.mxu0 %v2749
      %2774 = vmatprep.subr.bf16.mxu0 0
      %2775 = vmatpush1.bf16.xpose.msra.mxu0 %v2752
      %2776 = vmatprep.subr.bf16.mxu0 0
      %2777 = vmatpush1.bf16.xpose.msra.mxu0 %v2755
      %2778 = vmatprep.subr.bf16.mxu0 0
      %2779 = vmatpush1.bf16.xpose.msra.mxu0 %v2758
      %2780 = vmatprep.subr.bf16.mxu0 0
      %2781 = vmatpush1.bf16.xpose.msra.mxu0 %v2761
      %2782 = vmatprep.subr.bf16.mxu0 0
      %2783 = vmatpush1.bf16.xpose.msra.mxu0 %v2764
      %2784 = vmatprep.subr.bf16.mxu0 0
      %2785 = vmatpush1.bf16.xpose.msra.mxu0 %v2767
      %2786 = vmatprep.subr.bf16.mxu0 0
      %2787 = vmatpush1.bf16.xpose.msra.mxu0 %v2770
      %2788 = vmatprep.subr.bf16.mxu0 0
      %2789 = vmatpush1.bf16.xpose.msra.mxu0 0
      %2790 = vmatprep.subr.bf16.mxu0 0
      %2791 = vmatpush1.bf16.xpose.msra.mxu0 0
      %2792 = vmatprep.subr.bf16.mxu0 0
      %2793 = vmatpush1.bf16.xpose.msra.mxu0 0
      %2794 = vmatprep.subr.bf16.mxu0 0
      %2795 = vmatpush1.bf16.xpose.msra.mxu0 0
      %2796 = vmatprep.subr.bf16.mxu0 0
      %2797 = vmatpush1.bf16.xpose.msra.mxu0 0
      %2798 = vmatprep.subr.bf16.mxu0 0
      %2799 = vmatpush1.bf16.xpose.msra.mxu0 0
      %2800 = vmatprep.subr.bf16.mxu0 0
      %2801 = vmatpush1.bf16.xpose.msra.mxu0 0
      %2802 = vmatprep.subr.bf16.mxu0 0
      %2803 = vmatpush1.bf16.xpose.msra.mxu0 0
      %2804 = vmatprep.mubr.bf16.mxu0 0
      %2805 = vmatmul.mubr.bf16.gmra.mrb[0].mxu0 %v2725
      %v2806 = vpop.f32.mrb[0].mxu0
      %v2807 = vadd.f32 0.0, %v2806
      %v2808 = vpop.f32.mrb[0].mxu0
      %v2809 = vpop.f32.mrb[0].mxu0
      %v2810 = vadd.f32 0.0, %v2809
      %v2811 = vpop.f32.mrb[0].mxu0
      %2812 = vmatprep.mubr.bf16.mxu0 0
      %2813 = vmatmul.mubr.bf16.gmra.mrb[0].mxu0 %v2728
      %v2814 = vpop.f32.mrb[0].mxu0
      %v2815 = vadd.f32 0.0, %v2814
      %v2816 = vpop.f32.mrb[0].mxu0
      %v2817 = vpop.f32.mrb[0].mxu0
      %v2818 = vadd.f32 0.0, %v2817
      %v2819 = vpop.f32.mrb[0].mxu0
      %2820 = vmatprep.mubr.bf16.mxu0 0
      %2821 = vmatmul.mubr.bf16.gmra.mrb[0].mxu0 %v2731
      %v2822 = vpop.f32.mrb[0].mxu0
      %v2823 = vadd.f32 0.0, %v2822
      %v2824 = vpop.f32.mrb[0].mxu0
      %v2825 = vpop.f32.mrb[0].mxu0
      %v2826 = vadd.f32 0.0, %v2825
      %v2827 = vpop.f32.mrb[0].mxu0
      %2828 = vmatprep.mubr.bf16.mxu0 0
      %2829 = vmatmul.mubr.bf16.gmra.mrb[0].mxu0 %v2734
      %v2830 = vpop.f32.mrb[0].mxu0
      %v2831 = vadd.f32 0.0, %v2830
      %v2832 = vpop.f32.mrb[0].mxu0
      %v2833 = vpop.f32.mrb[0].mxu0
      %v2834 = vadd.f32 0.0, %v2833
      %v2835 = vpop.f32.mrb[0].mxu0
      %2836 = vmatprep.mubr.bf16.mxu0 0
      %2837 = vmatmul.mubr.bf16.gmra.mrb[0].mxu0 %v2737
      %v2838 = vpop.f32.mrb[0].mxu0
      %v2839 = vadd.f32 0.0, %v2838
      %v2840 = vpop.f32.mrb[0].mxu0
      %v2841 = vpop.f32.mrb[0].mxu0
      %v2842 = vadd.f32 0.0, %v2841
      %v2843 = vpop.f32.mrb[0].mxu0
      %2844 = vmatprep.mubr.bf16.mxu0 0
      %2845 = vmatmul.mubr.bf16.gmra.mrb[0].mxu0 %v2740
      %v2846 = vpop.f32.mrb[0].mxu0
      %v2847 = vadd.f32 0.0, %v2846
      %v2848 = vpop.f32.mrb[0].mxu0
      %v2849 = vpop.f32.mrb[0].mxu0
      %v2850 = vadd.f32 0.0, %v2849
      %v2851 = vpop.f32.mrb[0].mxu0
      %2852 = vmatprep.mubr.bf16.mxu0 0
      %2853 = vmatmul.mubr.bf16.gmra.mrb[0].mxu0 %v2743
      %v2854 = vpop.f32.mrb[0].mxu0
      %v2855 = vadd.f32 0.0, %v2854
      %v2856 = vpop.f32.mrb[0].mxu0
      %v2857 = vpop.f32.mrb[0].mxu0
      %v2858 = vadd.f32 0.0, %v2857
      %v2859 = vpop.f32.mrb[0].mxu0
      %2860 = vmatprep.mubr.bf16.mxu0 0
      %2861 = vmatmul.mubr.bf16.gmra.mrb[0].mxu0 %v2746
      %v2862 = vpop.f32.mrb[0].mxu0
      %v2863 = vadd.f32 0.0, %v2862
      %v2864 = vpop.f32.mrb[0].mxu0
      %v2865 = vpop.f32.mrb[0].mxu0
      %v2866 = vadd.f32 0.0, %v2865
      %v2867 = vpop.f32.mrb[0].mxu0
      %2868 = vdwg.mxu0
      %v2869 = vsel %vm1269, %v2807, -1e+30
      %v2870 = vsel %vm1270, %v2810, -1e+30
      %v2871 = vsel %vm1271, %v2815, -1e+30
      %v2872 = vsel %vm1272, %v2818, -1e+30
      %v2873 = vsel %vm1273, %v2823, -1e+30
      %v2874 = vsel %vm1274, %v2826, -1e+30
      %v2875 = vsel %vm1275, %v2831, -1e+30
      %v2876 = vsel %vm1276, %v2834, -1e+30
      %v2877 = vsel %vm1277, %v2839, -1e+30
      %v2878 = vsel %vm1278, %v2842, -1e+30
      %v2879 = vsel %vm1279, %v2847, -1e+30
      %v2880 = vsel %vm1280, %v2850, -1e+30
      %v2881 = vsel %vm1281, %v2855, -1e+30
      %v2882 = vsel %vm1282, %v2858, -1e+30
      %v2883 = vsel %vm1283, %v2863, -1e+30
      %v2884 = vsel %vm1284, %v2866, -1e+30
      %2885 = vmax.xlane.f32.xlu0 %v2869
      %v2886 = vpop.xlane.xlu0 %2885
      %2887 = vmax.xlane.f32.xlu0 %v2870
      %v2888 = vpop.xlane.xlu0 %2887
      %2889 = vmax.xlane.f32.xlu0 %v2871
      %v2890 = vpop.xlane.xlu0 %2889
      %2891 = vmax.xlane.f32.xlu0 %v2872
      %v2892 = vpop.xlane.xlu0 %2891
      %2893 = vmax.xlane.f32.xlu0 %v2873
      %v2894 = vpop.xlane.xlu0 %2893
      %2895 = vmax.xlane.f32.xlu0 %v2874
      %v2896 = vpop.xlane.xlu0 %2895
      %2897 = vmax.xlane.f32.xlu0 %v2875
      %v2898 = vpop.xlane.xlu0 %2897
      %2899 = vmax.xlane.f32.xlu0 %v2876
      %v2900 = vpop.xlane.xlu0 %2899
      %2901 = vmax.xlane.f32.xlu0 %v2877
      %v2902 = vpop.xlane.xlu0 %2901
      %2903 = vmax.xlane.f32.xlu0 %v2878
      %v2904 = vpop.xlane.xlu0 %2903
      %2905 = vmax.xlane.f32.xlu0 %v2879
      %v2906 = vpop.xlane.xlu0 %2905
      %2907 = vmax.xlane.f32.xlu0 %v2880
      %v2908 = vpop.xlane.xlu0 %2907
      %2909 = vmax.xlane.f32.xlu0 %v2881
      %v2910 = vpop.xlane.xlu0 %2909
      %2911 = vmax.xlane.f32.xlu0 %v2882
      %v2912 = vpop.xlane.xlu0 %2911
      %2913 = vmax.xlane.f32.xlu0 %v2883
      %v2914 = vpop.xlane.xlu0 %2913
      %2915 = vmax.xlane.f32.xlu0 %v2884
      %v2916 = vpop.xlane.xlu0 %2915
      %v2917 = vsub.f32 %v2869, %v2886
      %v2918 = vsub.f32 %v2870, %v2888
      %v2919 = vsub.f32 %v2871, %v2890
      %v2920 = vsub.f32 %v2872, %v2892
      %v2921 = vsub.f32 %v2873, %v2894
      %v2922 = vsub.f32 %v2874, %v2896
      %v2923 = vsub.f32 %v2875, %v2898
      %v2924 = vsub.f32 %v2876, %v2900
      %v2925 = vsub.f32 %v2877, %v2902
      %v2926 = vsub.f32 %v2878, %v2904
      %v2927 = vsub.f32 %v2879, %v2906
      %v2928 = vsub.f32 %v2880, %v2908
      %v2929 = vsub.f32 %v2881, %v2910
      %v2930 = vsub.f32 %v2882, %v2912
      %v2931 = vsub.f32 %v2883, %v2914
      %v2932 = vsub.f32 %v2884, %v2916
      %v2933 = vmul.f32 %v2917, 1.442695
      %v2934 = vpow.pop %v2933
      %v2935 = vmul.f32 %v2918, 1.442695
      %v2936 = vpow.pop %v2935
      %v2937 = vmul.f32 %v2919, 1.442695
      %v2938 = vpow.pop %v2937
      %v2939 = vmul.f32 %v2920, 1.442695
      %v2940 = vpow.pop %v2939
      %v2941 = vmul.f32 %v2921, 1.442695
      %v2942 = vpow.pop %v2941
      %v2943 = vmul.f32 %v2922, 1.442695
      %v2944 = vpow.pop %v2943
      %v2945 = vmul.f32 %v2923, 1.442695
      %v2946 = vpow.pop %v2945
      %v2947 = vmul.f32 %v2924, 1.442695
      %v2948 = vpow.pop %v2947
      %v2949 = vmul.f32 %v2925, 1.442695
      %v2950 = vpow.pop %v2949
      %v2951 = vmul.f32 %v2926, 1.442695
      %v2952 = vpow.pop %v2951
      %v2953 = vmul.f32 %v2927, 1.442695
      %v2954 = vpow.pop %v2953
      %v2955 = vmul.f32 %v2928, 1.442695
      %v2956 = vpow.pop %v2955
      %v2957 = vmul.f32 %v2929, 1.442695
      %v2958 = vpow.pop %v2957
      %v2959 = vmul.f32 %v2930, 1.442695
      %v2960 = vpow.pop %v2959
      %v2961 = vmul.f32 %v2931, 1.442695
      %v2962 = vpow.pop %v2961
      %v2963 = vmul.f32 %v2932, 1.442695
      %v2964 = vpow.pop %v2963
      %2965 = vadd.xlane.f32.xlu0 %v2934
      %v2966 = vpop.xlane.xlu0 %2965
      %2967 = vadd.xlane.f32.xlu0 %v2936
      %v2968 = vpop.xlane.xlu0 %2967
      %2969 = vadd.xlane.f32.xlu0 %v2938
      %v2970 = vpop.xlane.xlu0 %2969
      %2971 = vadd.xlane.f32.xlu0 %v2940
      %v2972 = vpop.xlane.xlu0 %2971
      %2973 = vadd.xlane.f32.xlu0 %v2942
      %v2974 = vpop.xlane.xlu0 %2973
      %2975 = vadd.xlane.f32.xlu0 %v2944
      %v2976 = vpop.xlane.xlu0 %2975
      %2977 = vadd.xlane.f32.xlu0 %v2946
      %v2978 = vpop.xlane.xlu0 %2977
      %2979 = vadd.xlane.f32.xlu0 %v2948
      %v2980 = vpop.xlane.xlu0 %2979
      %2981 = vadd.xlane.f32.xlu0 %v2950
      %v2982 = vpop.xlane.xlu0 %2981
      %2983 = vadd.xlane.f32.xlu0 %v2952
      %v2984 = vpop.xlane.xlu0 %2983
      %2985 = vadd.xlane.f32.xlu0 %v2954
      %v2986 = vpop.xlane.xlu0 %2985
      %2987 = vadd.xlane.f32.xlu0 %v2956
      %v2988 = vpop.xlane.xlu0 %2987
      %2989 = vadd.xlane.f32.xlu0 %v2958
      %v2990 = vpop.xlane.xlu0 %2989
      %2991 = vadd.xlane.f32.xlu0 %v2960
      %v2992 = vpop.xlane.xlu0 %2991
      %2993 = vadd.xlane.f32.xlu0 %v2962
      %v2994 = vpop.xlane.xlu0 %2993
      %2995 = vadd.xlane.f32.xlu0 %v2964
      %v2996 = vpop.xlane.xlu0 %2995
      %v2997 = vrcp.pop %v2966
      %v2998 = vrcp.pop %v2968
      %v2999 = vrcp.pop %v2970
      %v3000 = vrcp.pop %v2972
      %v3001 = vrcp.pop %v2974
      %v3002 = vrcp.pop %v2976
      %v3003 = vrcp.pop %v2978
      %v3004 = vrcp.pop %v2980
      %v3005 = vrcp.pop %v2982
      %v3006 = vrcp.pop %v2984
      %v3007 = vrcp.pop %v2986
      %v3008 = vrcp.pop %v2988
      %v3009 = vrcp.pop %v2990
      %v3010 = vrcp.pop %v2992
      %v3011 = vrcp.pop %v2994
      %v3012 = vrcp.pop %v2996
      %v3013 = vmul.f32 %v2934, %v2997
      %v3014 = vmul.f32 %v2936, %v2998
      %v3015 = vmul.f32 %v2938, %v2999
      %v3016 = vmul.f32 %v2940, %v3000
      %v3017 = vmul.f32 %v2942, %v3001
      %v3018 = vmul.f32 %v2944, %v3002
      %v3019 = vmul.f32 %v2946, %v3003
      %v3020 = vmul.f32 %v2948, %v3004
      %v3021 = vmul.f32 %v2950, %v3005
      %v3022 = vmul.f32 %v2952, %v3006
      %v3023 = vmul.f32 %v2954, %v3007
      %v3024 = vmul.f32 %v2956, %v3008
      %v3025 = vmul.f32 %v2958, %v3009
      %v3026 = vmul.f32 %v2960, %v3010
      %v3027 = vmul.f32 %v2962, %v3011
      %v3028 = vmul.f32 %v2964, %v3012
      %v3029 = vpack.c.bf16 %v3014, %v3013
      %v3030 = vpack.c.bf16 %v3016, %v3015
      %v3031 = vpack.c.bf16 %v3018, %v3017
      %v3032 = vpack.c.bf16 %v3020, %v3019
      %v3033 = vpack.c.bf16 %v3022, %v3021
      %v3034 = vpack.c.bf16 %v3024, %v3023
      %v3035 = vpack.c.bf16 %v3026, %v3025
      %v3036 = vpack.c.bf16 %v3028, %v3027
      %3045 = vrot.lane.b32.xlu0 %v1207, 64
      %v3046 = vpop.permute.xlu0 %3045
      %3047 = vrot.lane.b32.xlu0 %v1213, 64
      %v3048 = vpop.permute.xlu0 %3047
      %3049 = vrot.lane.b32.xlu0 %v1219, 64
      %v3050 = vpop.permute.xlu0 %3049
      %3051 = vrot.lane.b32.xlu0 %v1225, 64
      %v3052 = vpop.permute.xlu0 %3051
      %3053 = vrot.lane.b32.xlu0 %v1231, 64
      %v3054 = vpop.permute.xlu0 %3053
      %3055 = vrot.lane.b32.xlu0 %v1237, 64
      %v3056 = vpop.permute.xlu0 %3055
      %3057 = vrot.lane.b32.xlu0 %v1243, 64
      %v3058 = vpop.permute.xlu0 %3057
      %3059 = vrot.lane.b32.xlu0 %v1249, 64
      %v3060 = vpop.permute.xlu0 %3059
      %3069 = vmatprep.subr.bf16.mxu0 0
      %3070 = vmatpush1.bf16.msra.mxu0 %v3046
      %3071 = vmatprep.subr.bf16.mxu0 0
      %3072 = vmatpush1.bf16.msra.mxu0 %v3048
      %3073 = vmatprep.subr.bf16.mxu0 0
      %3074 = vmatpush1.bf16.msra.mxu0 %v3050
      %3075 = vmatprep.subr.bf16.mxu0 0
      %3076 = vmatpush1.bf16.msra.mxu0 %v3052
      %3077 = vmatprep.subr.bf16.mxu0 0
      %3078 = vmatpush1.bf16.msra.mxu0 %v3054
      %3079 = vmatprep.subr.bf16.mxu0 0
      %3080 = vmatpush1.bf16.msra.mxu0 %v3056
      %3081 = vmatprep.subr.bf16.mxu0 0
      %3082 = vmatpush1.bf16.msra.mxu0 %v3058
      %3083 = vmatprep.subr.bf16.mxu0 0
      %3084 = vmatpush1.bf16.msra.mxu0 %v3060
      %3085 = vmatprep.subr.bf16.mxu0 0
      %3086 = vmatpush1.bf16.msra.mxu0 0
      %3087 = vmatprep.subr.bf16.mxu0 0
      %3088 = vmatpush1.bf16.msra.mxu0 0
      %3089 = vmatprep.subr.bf16.mxu0 0
      %3090 = vmatpush1.bf16.msra.mxu0 0
      %3091 = vmatprep.subr.bf16.mxu0 0
      %3092 = vmatpush1.bf16.msra.mxu0 0
      %3093 = vmatprep.subr.bf16.mxu0 0
      %3094 = vmatpush1.bf16.msra.mxu0 0
      %3095 = vmatprep.subr.bf16.mxu0 0
      %3096 = vmatpush1.bf16.msra.mxu0 0
      %3097 = vmatprep.subr.bf16.mxu0 0
      %3098 = vmatpush1.bf16.msra.mxu0 0
      %3099 = vmatprep.subr.bf16.mxu0 0
      %3100 = vmatpush1.bf16.msra.mxu0 0
      %3101 = vmatprep.mubr.bf16.mxu0 0
      %3102 = vmatmul.mubr.bf16.gmra.mrb[0].mxu0 %v3029
      %v3103 = vpop.f32.mrb[0].mxu0
      %v3104 = vadd.f32 0.0, %v3103
      %v3105 = vpop.f32.mrb[0].mxu0
      %v3106 = vpop.f32.mrb[0].mxu0
      %v3107 = vadd.f32 0.0, %v3106
      %v3108 = vpop.f32.mrb[0].mxu0
      %3109 = vmatprep.mubr.bf16.mxu0 0
      %3110 = vmatmul.mubr.bf16.gmra.mrb[0].mxu0 %v3030
      %v3111 = vpop.f32.mrb[0].mxu0
      %v3112 = vadd.f32 0.0, %v3111
      %v3113 = vpop.f32.mrb[0].mxu0
      %v3114 = vpop.f32.mrb[0].mxu0
      %v3115 = vadd.f32 0.0, %v3114
      %v3116 = vpop.f32.mrb[0].mxu0
      %3117 = vmatprep.mubr.bf16.mxu0 0
      %3118 = vmatmul.mubr.bf16.gmra.mrb[0].mxu0 %v3031
      %v3119 = vpop.f32.mrb[0].mxu0
      %v3120 = vadd.f32 0.0, %v3119
      %v3121 = vpop.f32.mrb[0].mxu0
      %v3122 = vpop.f32.mrb[0].mxu0
      %v3123 = vadd.f32 0.0, %v3122
      %v3124 = vpop.f32.mrb[0].mxu0
      %3125 = vmatprep.mubr.bf16.mxu0 0
      %3126 = vmatmul.mubr.bf16.gmra.mrb[0].mxu0 %v3032
      %v3127 = vpop.f32.mrb[0].mxu0
      %v3128 = vadd.f32 0.0, %v3127
      %v3129 = vpop.f32.mrb[0].mxu0
      %v3130 = vpop.f32.mrb[0].mxu0
      %v3131 = vadd.f32 0.0, %v3130
      %v3132 = vpop.f32.mrb[0].mxu0
      %3133 = vmatprep.mubr.bf16.mxu0 0
      %3134 = vmatmul.mubr.bf16.gmra.mrb[0].mxu0 %v3033
      %v3135 = vpop.f32.mrb[0].mxu0
      %v3136 = vadd.f32 0.0, %v3135
      %v3137 = vpop.f32.mrb[0].mxu0
      %v3138 = vpop.f32.mrb[0].mxu0
      %v3139 = vadd.f32 0.0, %v3138
      %v3140 = vpop.f32.mrb[0].mxu0
      %3141 = vmatprep.mubr.bf16.mxu0 0
      %3142 = vmatmul.mubr.bf16.gmra.mrb[0].mxu0 %v3034
      %v3143 = vpop.f32.mrb[0].mxu0
      %v3144 = vadd.f32 0.0, %v3143
      %v3145 = vpop.f32.mrb[0].mxu0
      %v3146 = vpop.f32.mrb[0].mxu0
      %v3147 = vadd.f32 0.0, %v3146
      %v3148 = vpop.f32.mrb[0].mxu0
      %3149 = vmatprep.mubr.bf16.mxu0 0
      %3150 = vmatmul.mubr.bf16.gmra.mrb[0].mxu0 %v3035
      %v3151 = vpop.f32.mrb[0].mxu0
      %v3152 = vadd.f32 0.0, %v3151
      %v3153 = vpop.f32.mrb[0].mxu0
      %v3154 = vpop.f32.mrb[0].mxu0
      %v3155 = vadd.f32 0.0, %v3154
      %v3156 = vpop.f32.mrb[0].mxu0
      %3157 = vmatprep.mubr.bf16.mxu0 0
      %3158 = vmatmul.mubr.bf16.gmra.mrb[0].mxu0 %v3036
      %v3159 = vpop.f32.mrb[0].mxu0
      %v3160 = vadd.f32 0.0, %v3159
      %v3161 = vpop.f32.mrb[0].mxu0
      %v3162 = vpop.f32.mrb[0].mxu0
      %v3163 = vadd.f32 0.0, %v3162
      %v3164 = vpop.f32.mrb[0].mxu0
      %3165 = vdwg.mxu0
      %v3166 = vpack.c.bf16 %v3107, %v3104
      %v3167 = vpack.c.bf16 %v3115, %v3112
      %v3168 = vpack.c.bf16 %v3123, %v3120
      %v3169 = vpack.c.bf16 %v3131, %v3128
      %v3170 = vpack.c.bf16 %v3139, %v3136
      %v3171 = vpack.c.bf16 %v3147, %v3144
      %v3172 = vpack.c.bf16 %v3155, %v3152
      %v3173 = vpack.c.bf16 %v3163, %v3160
      %3182 = vrot.lane.b32.xlu0 %v3166, 64
      %v3183 = vpop.permute.xlu0 %3182
      %3184 = vrot.lane.b32.xlu0 %v3167, 64
      %v3185 = vpop.permute.xlu0 %3184
      %3186 = vrot.lane.b32.xlu0 %v3168, 64
      %v3187 = vpop.permute.xlu0 %3186
      %3188 = vrot.lane.b32.xlu0 %v3169, 64
      %v3189 = vpop.permute.xlu0 %3188
      %3190 = vrot.lane.b32.xlu0 %v3170, 64
      %v3191 = vpop.permute.xlu0 %3190
      %3192 = vrot.lane.b32.xlu0 %v3171, 64
      %v3193 = vpop.permute.xlu0 %3192
      %3194 = vrot.lane.b32.xlu0 %v3172, 64
      %v3195 = vpop.permute.xlu0 %3194
      %3196 = vrot.lane.b32.xlu0 %v3173, 64
      %v3197 = vpop.permute.xlu0 %3196
      %3206 = vst.msk [vmem:[#allocation2 + $0x8] sm:$0xff] %vm2241, %v3183
      %3207 = vst.msk [vmem:[#allocation2 + $0x18] sm:$0xff] %vm2241, %v3185
      %3208 = vst.msk [vmem:[#allocation2 + $0x28] sm:$0xff] %vm2241, %v3187
      %3209 = vst.msk [vmem:[#allocation2 + $0x38] sm:$0xff] %vm2241, %v3189
      %3210 = vst.msk [vmem:[#allocation2 + $0x48] sm:$0xff] %vm2241, %v3191
      %3211 = vst.msk [vmem:[#allocation2 + $0x58] sm:$0xff] %vm2241, %v3193
      %3212 = vst.msk [vmem:[#allocation2 + $0x68] sm:$0xff] %vm2241, %v3195
      %3213 = vst.msk [vmem:[#allocation2 + $0x78] sm:$0xff] %vm2241, %v3197
      %v3214 = vld [vmem:[#allocation2] sm:$0xff]
      %v3215 = vld [vmem:[#allocation2 + $0x8] sm:$0xff]
      %v3216 = vld [vmem:[#allocation2 + $0x10] sm:$0xff]
      %v3217 = vld [vmem:[#allocation2 + $0x18] sm:$0xff]
      %v3218 = vld [vmem:[#allocation2 + $0x20] sm:$0xff]
      %v3219 = vld [vmem:[#allocation2 + $0x28] sm:$0xff]
      %v3220 = vld [vmem:[#allocation2 + $0x30] sm:$0xff]
      %v3221 = vld [vmem:[#allocation2 + $0x38] sm:$0xff]
      %v3222 = vld [vmem:[#allocation2 + $0x40] sm:$0xff]
      %v3223 = vld [vmem:[#allocation2 + $0x48] sm:$0xff]
      %v3224 = vld [vmem:[#allocation2 + $0x50] sm:$0xff]
      %v3225 = vld [vmem:[#allocation2 + $0x58] sm:$0xff]
      %v3226 = vld [vmem:[#allocation2 + $0x60] sm:$0xff]
      %v3227 = vld [vmem:[#allocation2 + $0x68] sm:$0xff]
      %v3228 = vld [vmem:[#allocation2 + $0x70] sm:$0xff]
      %v3229 = vld [vmem:[#allocation2 + $0x78] sm:$0xff]
      %v3230 = vld [vmem:[%s4] sm:$0xf]
      %v3231 = vld [vmem:[%s4 + $0x4] sm:$0xf]
      %v3232 = vld [vmem:[%s4 + $0x8] sm:$0xf]
      %v3233 = vld [vmem:[%s4 + $0xc] sm:$0xf]
      %v3234 = vld [vmem:[%s4 + $0x10] sm:$0xf]
      %v3235 = vld [vmem:[%s4 + $0x14] sm:$0xf]
      %v3236 = vld [vmem:[%s4 + $0x18] sm:$0xf]
      %v3237 = vld [vmem:[%s4 + $0x1c] sm:$0xf]
      %v3238 = vld [vmem:[%s4 + $0x20] sm:$0xf]
      %v3239 = vld [vmem:[%s4 + $0x24] sm:$0xf]
      %v3240 = vld [vmem:[%s4 + $0x28] sm:$0xf]
      %v3241 = vld [vmem:[%s4 + $0x2c] sm:$0xf]
      %v3242 = vld [vmem:[%s4 + $0x30] sm:$0xf]
      %v3243 = vld [vmem:[%s4 + $0x34] sm:$0xf]
      %v3244 = vld [vmem:[%s4 + $0x38] sm:$0xf]
      %v3245 = vld [vmem:[%s4 + $0x3c] sm:$0xf]
      %v3246 = vld [vmem:[%s4 + $0x40] sm:$0xf]
      %v3247 = vld [vmem:[%s4 + $0x44] sm:$0xf]
      %v3248 = vld [vmem:[%s4 + $0x48] sm:$0xf]
      %v3249 = vld [vmem:[%s4 + $0x4c] sm:$0xf]
      %v3250 = vld [vmem:[%s4 + $0x50] sm:$0xf]
      %v3251 = vld [vmem:[%s4 + $0x54] sm:$0xf]
      %v3252 = vld [vmem:[%s4 + $0x58] sm:$0xf]
      %v3253 = vld [vmem:[%s4 + $0x5c] sm:$0xf]
      %v3254 = vld [vmem:[%s4 + $0x60] sm:$0xf]
      %v3255 = vld [vmem:[%s4 + $0x64] sm:$0xf]
      %v3256 = vld [vmem:[%s4 + $0x68] sm:$0xf]
      %v3257 = vld [vmem:[%s4 + $0x6c] sm:$0xf]
      %v3258 = vld [vmem:[%s4 + $0x70] sm:$0xf]
      %v3259 = vld [vmem:[%s4 + $0x74] sm:$0xf]
      %v3260 = vld [vmem:[%s4 + $0x78] sm:$0xf]
      %v3261 = vld [vmem:[%s4 + $0x7c] sm:$0xf]
      %v3294 = vunpack.c.l.b16 %v3230
      %v3295 = vunpack.c.l.b16 %v3231
      %v3296 = vunpack.c.l.b16 %v3232
      %v3297 = vunpack.c.l.b16 %v3233
      %v3298 = vunpack.c.l.b16 %v3234
      %v3299 = vunpack.c.l.b16 %v3235
      %v3300 = vunpack.c.l.b16 %v3236
      %v3301 = vunpack.c.l.b16 %v3237
      %v3302 = vunpack.c.l.b16 %v3238
      %v3303 = vunpack.c.l.b16 %v3239
      %v3304 = vunpack.c.l.b16 %v3240
      %v3305 = vunpack.c.l.b16 %v3241
      %v3306 = vunpack.c.l.b16 %v3242
      %v3307 = vunpack.c.l.b16 %v3243
      %v3308 = vunpack.c.l.b16 %v3244
      %v3309 = vunpack.c.l.b16 %v3245
      %v3310 = vunpack.c.l.b16 %v3246
      %v3311 = vunpack.c.l.b16 %v3247
      %v3312 = vunpack.c.l.b16 %v3248
      %v3313 = vunpack.c.l.b16 %v3249
      %v3314 = vunpack.c.l.b16 %v3250
      %v3315 = vunpack.c.l.b16 %v3251
      %v3316 = vunpack.c.l.b16 %v3252
      %v3317 = vunpack.c.l.b16 %v3253
      %v3318 = vunpack.c.l.b16 %v3254
      %v3319 = vunpack.c.l.b16 %v3255
      %v3320 = vunpack.c.l.b16 %v3256
      %v3321 = vunpack.c.l.b16 %v3257
      %v3322 = vunpack.c.l.b16 %v3258
      %v3323 = vunpack.c.l.b16 %v3259
      %v3324 = vunpack.c.l.b16 %v3260
      %v3325 = vunpack.c.l.b16 %v3261
      %v3326 = vpack.c.b16 %v3295, %v3294
      %v3327 = vpack.c.b16 %v3297, %v3296
      %v3328 = vpack.c.b16 %v3299, %v3298
      %v3329 = vpack.c.b16 %v3301, %v3300
      %v3330 = vpack.c.b16 %v3303, %v3302
      %v3331 = vpack.c.b16 %v3305, %v3304
      %v3332 = vpack.c.b16 %v3307, %v3306
      %v3333 = vpack.c.b16 %v3309, %v3308
      %v3334 = vpack.c.b16 %v3311, %v3310
      %v3335 = vpack.c.b16 %v3313, %v3312
      %v3336 = vpack.c.b16 %v3315, %v3314
      %v3337 = vpack.c.b16 %v3317, %v3316
      %v3338 = vpack.c.b16 %v3319, %v3318
      %v3339 = vpack.c.b16 %v3321, %v3320
      %v3340 = vpack.c.b16 %v3323, %v3322
      %v3341 = vpack.c.b16 %v3325, %v3324
      %3358 = vmatprep.subr.bf16.mxu0 0
      %3359 = vmatpush1.bf16.msra.mxu0 %v3326
      %3360 = vmatprep.subr.bf16.mxu0 0
      %3361 = vmatpush1.bf16.msra.mxu0 %v3327
      %3362 = vmatprep.subr.bf16.mxu0 0
      %3363 = vmatpush1.bf16.msra.mxu0 %v3328
      %3364 = vmatprep.subr.bf16.mxu0 0
      %3365 = vmatpush1.bf16.msra.mxu0 %v3329
      %3366 = vmatprep.subr.bf16.mxu0 0
      %3367 = vmatpush1.bf16.msra.mxu0 %v3330
      %3368 = vmatprep.subr.bf16.mxu0 0
      %3369 = vmatpush1.bf16.msra.mxu0 %v3331
      %3370 = vmatprep.subr.bf16.mxu0 0
      %3371 = vmatpush1.bf16.msra.mxu0 %v3332
      %3372 = vmatprep.subr.bf16.mxu0 0
      %3373 = vmatpush1.bf16.msra.mxu0 %v3333
      %3374 = vmatprep.subr.bf16.mxu0 0
      %3375 = vmatpush1.bf16.msra.mxu0 %v3334
      %3376 = vmatprep.subr.bf16.mxu0 0
      %3377 = vmatpush1.bf16.msra.mxu0 %v3335
      %3378 = vmatprep.subr.bf16.mxu0 0
      %3379 = vmatpush1.bf16.msra.mxu0 %v3336
      %3380 = vmatprep.subr.bf16.mxu0 0
      %3381 = vmatpush1.bf16.msra.mxu0 %v3337
      %3382 = vmatprep.subr.bf16.mxu0 0
      %3383 = vmatpush1.bf16.msra.mxu0 %v3338
      %3384 = vmatprep.subr.bf16.mxu0 0
      %3385 = vmatpush1.bf16.msra.mxu0 %v3339
      %3386 = vmatprep.subr.bf16.mxu0 0
      %3387 = vmatpush1.bf16.msra.mxu0 %v3340
      %3388 = vmatprep.subr.bf16.mxu0 0
      %3389 = vmatpush1.bf16.msra.mxu0 %v3341
      %3390 = vmatprep.mubr.bf16.mxu0 %v3215
      %3391 = vmatmul.mubr.bf16.gmra.mrb[0].mxu0 %v3214
      %v3392 = vpop.f32.mrb[0].mxu0
      %v3393 = vadd.f32 0.0, %v3392
      %v3394 = vpop.f32.mrb[0].mxu0
      %v3395 = vpop.f32.mrb[0].mxu0
      %v3396 = vadd.f32 0.0, %v3395
      %v3397 = vpop.f32.mrb[0].mxu0
      %3398 = vmatprep.mubr.bf16.mxu0 %v3217
      %3399 = vmatmul.mubr.bf16.gmra.mrb[0].mxu0 %v3216
      %v3400 = vpop.f32.mrb[0].mxu0
      %v3401 = vadd.f32 0.0, %v3400
      %v3402 = vpop.f32.mrb[0].mxu0
      %v3403 = vpop.f32.mrb[0].mxu0
      %v3404 = vadd.f32 0.0, %v3403
      %v3405 = vpop.f32.mrb[0].mxu0
      %3406 = vmatprep.mubr.bf16.mxu0 %v3219
      %3407 = vmatmul.mubr.bf16.gmra.mrb[0].mxu0 %v3218
      %v3408 = vpop.f32.mrb[0].mxu0
      %v3409 = vadd.f32 0.0, %v3408
      %v3410 = vpop.f32.mrb[0].mxu0
      %v3411 = vpop.f32.mrb[0].mxu0
      %v3412 = vadd.f32 0.0, %v3411
      %v3413 = vpop.f32.mrb[0].mxu0
      %3414 = vmatprep.mubr.bf16.mxu0 %v3221
      %3415 = vmatmul.mubr.bf16.gmra.mrb[0].mxu0 %v3220
      %v3416 = vpop.f32.mrb[0].mxu0
      %v3417 = vadd.f32 0.0, %v3416
      %v3418 = vpop.f32.mrb[0].mxu0
      %v3419 = vpop.f32.mrb[0].mxu0
      %v3420 = vadd.f32 0.0, %v3419
      %v3421 = vpop.f32.mrb[0].mxu0
      %3422 = vmatprep.mubr.bf16.mxu0 %v3223
      %3423 = vmatmul.mubr.bf16.gmra.mrb[0].mxu0 %v3222
      %v3424 = vpop.f32.mrb[0].mxu0
      %v3425 = vadd.f32 0.0, %v3424
      %v3426 = vpop.f32.mrb[0].mxu0
      %v3427 = vpop.f32.mrb[0].mxu0
      %v3428 = vadd.f32 0.0, %v3427
      %v3429 = vpop.f32.mrb[0].mxu0
      %3430 = vmatprep.mubr.bf16.mxu0 %v3225
      %3431 = vmatmul.mubr.bf16.gmra.mrb[0].mxu0 %v3224
      %v3432 = vpop.f32.mrb[0].mxu0
      %v3433 = vadd.f32 0.0, %v3432
      %v3434 = vpop.f32.mrb[0].mxu0
      %v3435 = vpop.f32.mrb[0].mxu0
      %v3436 = vadd.f32 0.0, %v3435
      %v3437 = vpop.f32.mrb[0].mxu0
      %3438 = vmatprep.mubr.bf16.mxu0 %v3227
      %3439 = vmatmul.mubr.bf16.gmra.mrb[0].mxu0 %v3226
      %v3440 = vpop.f32.mrb[0].mxu0
      %v3441 = vadd.f32 0.0, %v3440
      %v3442 = vpop.f32.mrb[0].mxu0
      %v3443 = vpop.f32.mrb[0].mxu0
      %v3444 = vadd.f32 0.0, %v3443
      %v3445 = vpop.f32.mrb[0].mxu0
      %3446 = vmatprep.mubr.bf16.mxu0 %v3229
      %3447 = vmatmul.mubr.bf16.gmra.mrb[0].mxu0 %v3228
      %v3448 = vpop.f32.mrb[0].mxu0
      %v3449 = vadd.f32 0.0, %v3448
      %v3450 = vpop.f32.mrb[0].mxu0
      %v3451 = vpop.f32.mrb[0].mxu0
      %v3452 = vadd.f32 0.0, %v3451
      %v3453 = vpop.f32.mrb[0].mxu0
      %3454 = vdwg.mxu0
      %v3455 = vadd.f32 %v415, %v3393
      %v3456 = vadd.f32 %v416, %v3396
      %v3457 = vadd.f32 %v417, %v3401
      %v3458 = vadd.f32 %v418, %v3404
      %v3459 = vadd.f32 %v419, %v3409
      %v3460 = vadd.f32 %v420, %v3412
      %v3461 = vadd.f32 %v421, %v3417
      %v3462 = vadd.f32 %v422, %v3420
      %v3463 = vadd.f32 %v423, %v3425
      %v3464 = vadd.f32 %v424, %v3428
      %v3465 = vadd.f32 %v425, %v3433
      %v3466 = vadd.f32 %v426, %v3436
      %v3467 = vadd.f32 %v427, %v3441
      %v3468 = vadd.f32 %v428, %v3444
      %v3469 = vadd.f32 %v429, %v3449
      %v3470 = vadd.f32 %v430, %v3452
      %v3471 = vld [vmem:[%s5] sm:$0x1]
      %v3473 = vlaneseq
      %v3474 = vshrl.u32 %v3473, 7
      %v3475 = vsub.s32 0, %v3474
      %v3476 = vrot.slane %v3471, %v3475
      %v3478 = vadd.f32 %v3455, %v3476
      %v3479 = vadd.f32 %v3456, %v3476
      %v3480 = vadd.f32 %v3457, %v3476
      %v3481 = vadd.f32 %v3458, %v3476
      %v3482 = vadd.f32 %v3459, %v3476
      %v3483 = vadd.f32 %v3460, %v3476
      %v3484 = vadd.f32 %v3461, %v3476
      %v3485 = vadd.f32 %v3462, %v3476
      %v3486 = vadd.f32 %v3463, %v3476
      %v3487 = vadd.f32 %v3464, %v3476
      %v3488 = vadd.f32 %v3465, %v3476
      %v3489 = vadd.f32 %v3466, %v3476
      %v3490 = vadd.f32 %v3467, %v3476
      %v3491 = vadd.f32 %v3468, %v3476
      %v3492 = vadd.f32 %v3469, %v3476
      %v3493 = vadd.f32 %v3470, %v3476
      %v3494 = vld [vmem:[%s6] sm:$0x1]
      %v3495 = vld [vmem:[%s7] sm:$0x1]
      %v3496 = vsel %vm433, %v3478, 0.0
      %3497 = vadd.xlane.f32.xlu0 %v3496
      %v3498 = vpop.xlane.xlu0 %3497
      %v3499 = vsel %vm433, %v3479, 0.0
      %3500 = vadd.xlane.f32.xlu0 %v3499
      %v3501 = vpop.xlane.xlu0 %3500
      %v3502 = vsel %vm433, %v3480, 0.0
      %3503 = vadd.xlane.f32.xlu0 %v3502
      %v3504 = vpop.xlane.xlu0 %3503
      %v3505 = vsel %vm433, %v3481, 0.0
      %3506 = vadd.xlane.f32.xlu0 %v3505
      %v3507 = vpop.xlane.xlu0 %3506
      %v3508 = vsel %vm433, %v3482, 0.0
      %3509 = vadd.xlane.f32.xlu0 %v3508
      %v3510 = vpop.xlane.xlu0 %3509
      %v3511 = vsel %vm433, %v3483, 0.0
      %3512 = vadd.xlane.f32.xlu0 %v3511
      %v3513 = vpop.xlane.xlu0 %3512
      %v3514 = vsel %vm433, %v3484, 0.0
      %3515 = vadd.xlane.f32.xlu0 %v3514
      %v3516 = vpop.xlane.xlu0 %3515
      %v3517 = vsel %vm433, %v3485, 0.0
      %3518 = vadd.xlane.f32.xlu0 %v3517
      %v3519 = vpop.xlane.xlu0 %3518
      %v3520 = vsel %vm433, %v3486, 0.0
      %3521 = vadd.xlane.f32.xlu0 %v3520
      %v3522 = vpop.xlane.xlu0 %3521
      %v3523 = vsel %vm433, %v3487, 0.0
      %3524 = vadd.xlane.f32.xlu0 %v3523
      %v3525 = vpop.xlane.xlu0 %3524
      %v3526 = vsel %vm433, %v3488, 0.0
      %3527 = vadd.xlane.f32.xlu0 %v3526
      %v3528 = vpop.xlane.xlu0 %3527
      %v3529 = vsel %vm433, %v3489, 0.0
      %3530 = vadd.xlane.f32.xlu0 %v3529
      %v3531 = vpop.xlane.xlu0 %3530
      %v3532 = vsel %vm433, %v3490, 0.0
      %3533 = vadd.xlane.f32.xlu0 %v3532
      %v3534 = vpop.xlane.xlu0 %3533
      %v3535 = vsel %vm433, %v3491, 0.0
      %3536 = vadd.xlane.f32.xlu0 %v3535
      %v3537 = vpop.xlane.xlu0 %3536
      %v3538 = vsel %vm433, %v3492, 0.0
      %3539 = vadd.xlane.f32.xlu0 %v3538
      %v3540 = vpop.xlane.xlu0 %3539
      %v3541 = vsel %vm433, %v3493, 0.0
      %3542 = vadd.xlane.f32.xlu0 %v3541
      %v3543 = vpop.xlane.xlu0 %3542
      %v3544 = vmul.f32 %v3498, %v482
      %v3545 = vmul.f32 %v3501, %v482
      %v3546 = vmul.f32 %v3504, %v482
      %v3547 = vmul.f32 %v3507, %v482
      %v3548 = vmul.f32 %v3510, %v482
      %v3549 = vmul.f32 %v3513, %v482
      %v3550 = vmul.f32 %v3516, %v482
      %v3551 = vmul.f32 %v3519, %v482
      %v3552 = vmul.f32 %v3522, %v482
      %v3553 = vmul.f32 %v3525, %v482
      %v3554 = vmul.f32 %v3528, %v482
      %v3555 = vmul.f32 %v3531, %v482
      %v3556 = vmul.f32 %v3534, %v482
      %v3557 = vmul.f32 %v3537, %v482
      %v3558 = vmul.f32 %v3540, %v482
      %v3559 = vmul.f32 %v3543, %v482
      %v3560 = vsub.f32 %v3478, %v3544
      %v3561 = vsub.f32 %v3479, %v3545
      %v3562 = vsub.f32 %v3480, %v3546
      %v3563 = vsub.f32 %v3481, %v3547
      %v3564 = vsub.f32 %v3482, %v3548
      %v3565 = vsub.f32 %v3483, %v3549
      %v3566 = vsub.f32 %v3484, %v3550
      %v3567 = vsub.f32 %v3485, %v3551
      %v3568 = vsub.f32 %v3486, %v3552
      %v3569 = vsub.f32 %v3487, %v3553
      %v3570 = vsub.f32 %v3488, %v3554
      %v3571 = vsub.f32 %v3489, %v3555
      %v3572 = vsub.f32 %v3490, %v3556
      %v3573 = vsub.f32 %v3491, %v3557
      %v3574 = vsub.f32 %v3492, %v3558
      %v3575 = vsub.f32 %v3493, %v3559
      %v3576 = vmul.f32 %v3560, %v3560
      %v3577 = vmul.f32 %v3561, %v3561
      %v3578 = vmul.f32 %v3562, %v3562
      %v3579 = vmul.f32 %v3563, %v3563
      %v3580 = vmul.f32 %v3564, %v3564
      %v3581 = vmul.f32 %v3565, %v3565
      %v3582 = vmul.f32 %v3566, %v3566
      %v3583 = vmul.f32 %v3567, %v3567
      %v3584 = vmul.f32 %v3568, %v3568
      %v3585 = vmul.f32 %v3569, %v3569
      %v3586 = vmul.f32 %v3570, %v3570
      %v3587 = vmul.f32 %v3571, %v3571
      %v3588 = vmul.f32 %v3572, %v3572
      %v3589 = vmul.f32 %v3573, %v3573
      %v3590 = vmul.f32 %v3574, %v3574
      %v3591 = vmul.f32 %v3575, %v3575
      %v3592 = vsel %vm433, %v3576, 0.0
      %3593 = vadd.xlane.f32.xlu0 %v3592
      %v3594 = vpop.xlane.xlu0 %3593
      %v3595 = vsel %vm433, %v3577, 0.0
      %3596 = vadd.xlane.f32.xlu0 %v3595
      %v3597 = vpop.xlane.xlu0 %3596
      %v3598 = vsel %vm433, %v3578, 0.0
      %3599 = vadd.xlane.f32.xlu0 %v3598
      %v3600 = vpop.xlane.xlu0 %3599
      %v3601 = vsel %vm433, %v3579, 0.0
      %3602 = vadd.xlane.f32.xlu0 %v3601
      %v3603 = vpop.xlane.xlu0 %3602
      %v3604 = vsel %vm433, %v3580, 0.0
      %3605 = vadd.xlane.f32.xlu0 %v3604
      %v3606 = vpop.xlane.xlu0 %3605
      %v3607 = vsel %vm433, %v3581, 0.0
      %3608 = vadd.xlane.f32.xlu0 %v3607
      %v3609 = vpop.xlane.xlu0 %3608
      %v3610 = vsel %vm433, %v3582, 0.0
      %3611 = vadd.xlane.f32.xlu0 %v3610
      %v3612 = vpop.xlane.xlu0 %3611
      %v3613 = vsel %vm433, %v3583, 0.0
      %3614 = vadd.xlane.f32.xlu0 %v3613
      %v3615 = vpop.xlane.xlu0 %3614
      %v3616 = vsel %vm433, %v3584, 0.0
      %3617 = vadd.xlane.f32.xlu0 %v3616
      %v3618 = vpop.xlane.xlu0 %3617
      %v3619 = vsel %vm433, %v3585, 0.0
      %3620 = vadd.xlane.f32.xlu0 %v3619
      %v3621 = vpop.xlane.xlu0 %3620
      %v3622 = vsel %vm433, %v3586, 0.0
      %3623 = vadd.xlane.f32.xlu0 %v3622
      %v3624 = vpop.xlane.xlu0 %3623
      %v3625 = vsel %vm433, %v3587, 0.0
      %3626 = vadd.xlane.f32.xlu0 %v3625
      %v3627 = vpop.xlane.xlu0 %3626
      %v3628 = vsel %vm433, %v3588, 0.0
      %3629 = vadd.xlane.f32.xlu0 %v3628
      %v3630 = vpop.xlane.xlu0 %3629
      %v3631 = vsel %vm433, %v3589, 0.0
      %3632 = vadd.xlane.f32.xlu0 %v3631
      %v3633 = vpop.xlane.xlu0 %3632
      %v3634 = vsel %vm433, %v3590, 0.0
      %3635 = vadd.xlane.f32.xlu0 %v3634
      %v3636 = vpop.xlane.xlu0 %3635
      %v3637 = vsel %vm433, %v3591, 0.0
      %3638 = vadd.xlane.f32.xlu0 %v3637
      %v3639 = vpop.xlane.xlu0 %3638
      %v3640 = vmul.f32 %v3594, %v482
      %v3641 = vmul.f32 %v3597, %v482
      %v3642 = vmul.f32 %v3600, %v482
      %v3643 = vmul.f32 %v3603, %v482
      %v3644 = vmul.f32 %v3606, %v482
      %v3645 = vmul.f32 %v3609, %v482
      %v3646 = vmul.f32 %v3612, %v482
      %v3647 = vmul.f32 %v3615, %v482
      %v3648 = vmul.f32 %v3618, %v482
      %v3649 = vmul.f32 %v3621, %v482
      %v3650 = vmul.f32 %v3624, %v482
      %v3651 = vmul.f32 %v3627, %v482
      %v3652 = vmul.f32 %v3630, %v482
      %v3653 = vmul.f32 %v3633, %v482
      %v3654 = vmul.f32 %v3636, %v482
      %v3655 = vmul.f32 %v3639, %v482
      %v3656 = vadd.f32 %v3640, 1e-05
      %v3657 = vadd.f32 %v3641, 1e-05
      %v3658 = vadd.f32 %v3642, 1e-05
      %v3659 = vadd.f32 %v3643, 1e-05
      %v3660 = vadd.f32 %v3644, 1e-05
      %v3661 = vadd.f32 %v3645, 1e-05
      %v3662 = vadd.f32 %v3646, 1e-05
      %v3663 = vadd.f32 %v3647, 1e-05
      %v3664 = vadd.f32 %v3648, 1e-05
      %v3665 = vadd.f32 %v3649, 1e-05
      %v3666 = vadd.f32 %v3650, 1e-05
      %v3667 = vadd.f32 %v3651, 1e-05
      %v3668 = vadd.f32 %v3652, 1e-05
      %v3669 = vadd.f32 %v3653, 1e-05
      %v3670 = vadd.f32 %v3654, 1e-05
      %v3671 = vadd.f32 %v3655, 1e-05
      %v3672 = vrsqrt.pop %v3656
      %v3673 = vrsqrt.pop %v3657
      %v3674 = vrsqrt.pop %v3658
      %v3675 = vrsqrt.pop %v3659
      %v3676 = vrsqrt.pop %v3660
      %v3677 = vrsqrt.pop %v3661
      %v3678 = vrsqrt.pop %v3662
      %v3679 = vrsqrt.pop %v3663
      %v3680 = vrsqrt.pop %v3664
      %v3681 = vrsqrt.pop %v3665
      %v3682 = vrsqrt.pop %v3666
      %v3683 = vrsqrt.pop %v3667
      %v3684 = vrsqrt.pop %v3668
      %v3685 = vrsqrt.pop %v3669
      %v3686 = vrsqrt.pop %v3670
      %v3687 = vrsqrt.pop %v3671
      %v3688 = vmul.f32 %v3560, %v3672
      %v3689 = vmul.f32 %v3561, %v3673
      %v3690 = vmul.f32 %v3562, %v3674
      %v3691 = vmul.f32 %v3563, %v3675
      %v3692 = vmul.f32 %v3564, %v3676
      %v3693 = vmul.f32 %v3565, %v3677
      %v3694 = vmul.f32 %v3566, %v3678
      %v3695 = vmul.f32 %v3567, %v3679
      %v3696 = vmul.f32 %v3568, %v3680
      %v3697 = vmul.f32 %v3569, %v3681
      %v3698 = vmul.f32 %v3570, %v3682
      %v3699 = vmul.f32 %v3571, %v3683
      %v3700 = vmul.f32 %v3572, %v3684
      %v3701 = vmul.f32 %v3573, %v3685
      %v3702 = vmul.f32 %v3574, %v3686
      %v3703 = vmul.f32 %v3575, %v3687
      %v3705 = vlaneseq
      %v3706 = vshrl.u32 %v3705, 7
      %v3707 = vsub.s32 0, %v3706
      %v3708 = vrot.slane %v3494, %v3707
      %v3710 = vmul.f32 %v3688, %v3708
      %v3711 = vmul.f32 %v3689, %v3708
      %v3712 = vmul.f32 %v3690, %v3708
      %v3713 = vmul.f32 %v3691, %v3708
      %v3714 = vmul.f32 %v3692, %v3708
      %v3715 = vmul.f32 %v3693, %v3708
      %v3716 = vmul.f32 %v3694, %v3708
      %v3717 = vmul.f32 %v3695, %v3708
      %v3718 = vmul.f32 %v3696, %v3708
      %v3719 = vmul.f32 %v3697, %v3708
      %v3720 = vmul.f32 %v3698, %v3708
      %v3721 = vmul.f32 %v3699, %v3708
      %v3722 = vmul.f32 %v3700, %v3708
      %v3723 = vmul.f32 %v3701, %v3708
      %v3724 = vmul.f32 %v3702, %v3708
      %v3725 = vmul.f32 %v3703, %v3708
      %v3727 = vlaneseq
      %v3728 = vshrl.u32 %v3727, 7
      %v3729 = vsub.s32 0, %v3728
      %v3730 = vrot.slane %v3495, %v3729
      %v3732 = vadd.f32 %v3710, %v3730
      %v3733 = vadd.f32 %v3711, %v3730
      %v3734 = vadd.f32 %v3712, %v3730
      %v3735 = vadd.f32 %v3713, %v3730
      %v3736 = vadd.f32 %v3714, %v3730
      %v3737 = vadd.f32 %v3715, %v3730
      %v3738 = vadd.f32 %v3716, %v3730
      %v3739 = vadd.f32 %v3717, %v3730
      %v3740 = vadd.f32 %v3718, %v3730
      %v3741 = vadd.f32 %v3719, %v3730
      %v3742 = vadd.f32 %v3720, %v3730
      %v3743 = vadd.f32 %v3721, %v3730
      %v3744 = vadd.f32 %v3722, %v3730
      %v3745 = vadd.f32 %v3723, %v3730
      %v3746 = vadd.f32 %v3724, %v3730
      %v3747 = vadd.f32 %v3725, %v3730
      %v3748 = vpack.c.bf16 %v3733, %v3732
      %v3749 = vpack.c.bf16 %v3735, %v3734
      %v3750 = vpack.c.bf16 %v3737, %v3736
      %v3751 = vpack.c.bf16 %v3739, %v3738
      %v3752 = vpack.c.bf16 %v3741, %v3740
      %v3753 = vpack.c.bf16 %v3743, %v3742
      %v3754 = vpack.c.bf16 %v3745, %v3744
      %v3755 = vpack.c.bf16 %v3747, %v3746
      %v3756 = vld [vmem:[%s8] sm:$0xff]
      %v3757 = vld [vmem:[%s8 + $0x8] sm:$0xff]
      %v3758 = vld [vmem:[%s8 + $0x10] sm:$0xff]
      %v3759 = vld [vmem:[%s8 + $0x18] sm:$0xff]
      %v3760 = vld [vmem:[%s8 + $0x20] sm:$0xff]
      %v3761 = vld [vmem:[%s8 + $0x28] sm:$0xff]
      %v3762 = vld [vmem:[%s8 + $0x30] sm:$0xff]
      %v3763 = vld [vmem:[%s8 + $0x38] sm:$0xff]
      %v3764 = vld [vmem:[%s9] sm:$0x3]
      %v3766 = vlaneseq
      %v3767 = vshrl.u32 %v3766, 7
      %v3768 = vsub.s32 0, %v3767
      %v3769 = vrot.slane %v3764, %v3768
      %v3770 = vlaneseq
      %v3771 = vshrl.u32 %v3770, 7
      %v3772 = vsub.s32 1, %v3771
      %v3773 = vrot.slane %v3764, %v3772
      %v3784 = vunpack.c.l.b16 %v3756
      %v3785 = vunpack.c.h.b16 %v3756
      %v3786 = vunpack.c.l.b16 %v3757
      %v3787 = vunpack.c.h.b16 %v3757
      %v3788 = vunpack.c.l.b16 %v3758
      %v3789 = vunpack.c.h.b16 %v3758
      %v3790 = vunpack.c.l.b16 %v3759
      %v3791 = vunpack.c.h.b16 %v3759
      %v3792 = vunpack.c.l.b16 %v3760
      %v3793 = vunpack.c.h.b16 %v3760
      %v3794 = vunpack.c.l.b16 %v3761
      %v3795 = vunpack.c.h.b16 %v3761
      %v3796 = vunpack.c.l.b16 %v3762
      %v3797 = vunpack.c.h.b16 %v3762
      %v3798 = vunpack.c.l.b16 %v3763
      %v3799 = vunpack.c.h.b16 %v3763
      %v3800 = vpack.c.b16 %v3786, %v3784
      %v3801 = vpack.c.b16 %v3787, %v3785
      %v3802 = vpack.c.b16 %v3790, %v3788
      %v3803 = vpack.c.b16 %v3791, %v3789
      %v3804 = vpack.c.b16 %v3794, %v3792
      %v3805 = vpack.c.b16 %v3795, %v3793
      %v3806 = vpack.c.b16 %v3798, %v3796
      %v3807 = vpack.c.b16 %v3799, %v3797
      %v3817 = vsel %vm433, %v3748, 0
      %v3820 = vsel %vm433, %v3749, 0
      %v3823 = vsel %vm433, %v3750, 0
      %v3826 = vsel %vm433, %v3751, 0
      %v3829 = vsel %vm433, %v3752, 0
      %v3832 = vsel %vm433, %v3753, 0
      %v3835 = vsel %vm433, %v3754, 0
      %v3838 = vsel %vm433, %v3755, 0
      %3840 = vmatprep.subr.bf16.mxu0 %v3801
      %3841 = vmatpush1.bf16.msra.mxu0 %v3800
      %3842 = vmatprep.subr.bf16.mxu0 %v3803
      %3843 = vmatpush1.bf16.msra.mxu0 %v3802
      %3844 = vmatprep.subr.bf16.mxu0 %v3805
      %3845 = vmatpush1.bf16.msra.mxu0 %v3804
      %3846 = vmatprep.subr.bf16.mxu0 %v3807
      %3847 = vmatpush1.bf16.msra.mxu0 %v3806
      %3848 = vmatprep.subr.bf16.mxu0 0
      %3849 = vmatpush1.bf16.msra.mxu0 0
      %3850 = vmatprep.subr.bf16.mxu0 0
      %3851 = vmatpush1.bf16.msra.mxu0 0
      %3852 = vmatprep.subr.bf16.mxu0 0
      %3853 = vmatpush1.bf16.msra.mxu0 0
      %3854 = vmatprep.subr.bf16.mxu0 0
      %3855 = vmatpush1.bf16.msra.mxu0 0
      %3856 = vmatprep.subr.bf16.mxu0 0
      %3857 = vmatpush1.bf16.msra.mxu0 0
      %3858 = vmatprep.subr.bf16.mxu0 0
      %3859 = vmatpush1.bf16.msra.mxu0 0
      %3860 = vmatprep.subr.bf16.mxu0 0
      %3861 = vmatpush1.bf16.msra.mxu0 0
      %3862 = vmatprep.subr.bf16.mxu0 0
      %3863 = vmatpush1.bf16.msra.mxu0 0
      %3864 = vmatprep.subr.bf16.mxu0 0
      %3865 = vmatpush1.bf16.msra.mxu0 0
      %3866 = vmatprep.subr.bf16.mxu0 0
      %3867 = vmatpush1.bf16.msra.mxu0 0
      %3868 = vmatprep.subr.bf16.mxu0 0
      %3869 = vmatpush1.bf16.msra.mxu0 0
      %3870 = vmatprep.subr.bf16.mxu0 0
      %3871 = vmatpush1.bf16.msra.mxu0 0
      %3872 = vmatprep.mubr.bf16.mxu0 0
      %3873 = vmatmul.mubr.bf16.gmra.mrb[0].mxu0 %v3817
      %v3874 = vpop.f32.mrb[0].mxu0
      %v3875 = vadd.f32 %v3769, %v3874
      %v3876 = vpop.f32.mrb[0].mxu0
      %v3877 = vadd.f32 %v3773, %v3876
      %v3878 = vpop.f32.mrb[0].mxu0
      %v3879 = vadd.f32 %v3769, %v3878
      %v3880 = vpop.f32.mrb[0].mxu0
      %v3881 = vadd.f32 %v3773, %v3880
      %3882 = vmatprep.mubr.bf16.mxu0 0
      %3883 = vmatmul.mubr.bf16.gmra.mrb[0].mxu0 %v3820
      %v3884 = vpop.f32.mrb[0].mxu0
      %v3885 = vadd.f32 %v3769, %v3884
      %v3886 = vpop.f32.mrb[0].mxu0
      %v3887 = vadd.f32 %v3773, %v3886
      %v3888 = vpop.f32.mrb[0].mxu0
      %v3889 = vadd.f32 %v3769, %v3888
      %v3890 = vpop.f32.mrb[0].mxu0
      %v3891 = vadd.f32 %v3773, %v3890
      %3892 = vmatprep.mubr.bf16.mxu0 0
      %3893 = vmatmul.mubr.bf16.gmra.mrb[0].mxu0 %v3823
      %v3894 = vpop.f32.mrb[0].mxu0
      %v3895 = vadd.f32 %v3769, %v3894
      %v3896 = vpop.f32.mrb[0].mxu0
      %v3897 = vadd.f32 %v3773, %v3896
      %v3898 = vpop.f32.mrb[0].mxu0
      %v3899 = vadd.f32 %v3769, %v3898
      %v3900 = vpop.f32.mrb[0].mxu0
      %v3901 = vadd.f32 %v3773, %v3900
      %3902 = vmatprep.mubr.bf16.mxu0 0
      %3903 = vmatmul.mubr.bf16.gmra.mrb[0].mxu0 %v3826
      %v3904 = vpop.f32.mrb[0].mxu0
      %v3905 = vadd.f32 %v3769, %v3904
      %v3906 = vpop.f32.mrb[0].mxu0
      %v3907 = vadd.f32 %v3773, %v3906
      %v3908 = vpop.f32.mrb[0].mxu0
      %v3909 = vadd.f32 %v3769, %v3908
      %v3910 = vpop.f32.mrb[0].mxu0
      %v3911 = vadd.f32 %v3773, %v3910
      %3912 = vmatprep.mubr.bf16.mxu0 0
      %3913 = vmatmul.mubr.bf16.gmra.mrb[0].mxu0 %v3829
      %v3914 = vpop.f32.mrb[0].mxu0
      %v3915 = vadd.f32 %v3769, %v3914
      %v3916 = vpop.f32.mrb[0].mxu0
      %v3917 = vadd.f32 %v3773, %v3916
      %v3918 = vpop.f32.mrb[0].mxu0
      %v3919 = vadd.f32 %v3769, %v3918
      %v3920 = vpop.f32.mrb[0].mxu0
      %v3921 = vadd.f32 %v3773, %v3920
      %3922 = vmatprep.mubr.bf16.mxu0 0
      %3923 = vmatmul.mubr.bf16.gmra.mrb[0].mxu0 %v3832
      %v3924 = vpop.f32.mrb[0].mxu0
      %v3925 = vadd.f32 %v3769, %v3924
      %v3926 = vpop.f32.mrb[0].mxu0
      %v3927 = vadd.f32 %v3773, %v3926
      %v3928 = vpop.f32.mrb[0].mxu0
      %v3929 = vadd.f32 %v3769, %v3928
      %v3930 = vpop.f32.mrb[0].mxu0
      %v3931 = vadd.f32 %v3773, %v3930
      %3932 = vmatprep.mubr.bf16.mxu0 0
      %3933 = vmatmul.mubr.bf16.gmra.mrb[0].mxu0 %v3835
      %v3934 = vpop.f32.mrb[0].mxu0
      %v3935 = vadd.f32 %v3769, %v3934
      %v3936 = vpop.f32.mrb[0].mxu0
      %v3937 = vadd.f32 %v3773, %v3936
      %v3938 = vpop.f32.mrb[0].mxu0
      %v3939 = vadd.f32 %v3769, %v3938
      %v3940 = vpop.f32.mrb[0].mxu0
      %v3941 = vadd.f32 %v3773, %v3940
      %3942 = vmatprep.mubr.bf16.mxu0 0
      %3943 = vmatmul.mubr.bf16.gmra.mrb[0].mxu0 %v3838
      %v3944 = vpop.f32.mrb[0].mxu0
      %v3945 = vadd.f32 %v3769, %v3944
      %v3946 = vpop.f32.mrb[0].mxu0
      %v3947 = vadd.f32 %v3773, %v3946
      %v3948 = vpop.f32.mrb[0].mxu0
      %v3949 = vadd.f32 %v3769, %v3948
      %v3950 = vpop.f32.mrb[0].mxu0
      %v3951 = vadd.f32 %v3773, %v3950
      %3952 = vdwg.mxu0
      %v3953 = vmul.f32 %v3875, 0.5
      %v3954 = vmul.f32 %v3877, 0.5
      %v3955 = vmul.f32 %v3879, 0.5
      %v3956 = vmul.f32 %v3881, 0.5
      %v3957 = vmul.f32 %v3885, 0.5
      %v3958 = vmul.f32 %v3887, 0.5
      %v3959 = vmul.f32 %v3889, 0.5
      %v3960 = vmul.f32 %v3891, 0.5
      %v3961 = vmul.f32 %v3895, 0.5
      %v3962 = vmul.f32 %v3897, 0.5
      %v3963 = vmul.f32 %v3899, 0.5
      %v3964 = vmul.f32 %v3901, 0.5
      %v3965 = vmul.f32 %v3905, 0.5
      %v3966 = vmul.f32 %v3907, 0.5
      %v3967 = vmul.f32 %v3909, 0.5
      %v3968 = vmul.f32 %v3911, 0.5
      %v3969 = vmul.f32 %v3915, 0.5
      %v3970 = vmul.f32 %v3917, 0.5
      %v3971 = vmul.f32 %v3919, 0.5
      %v3972 = vmul.f32 %v3921, 0.5
      %v3973 = vmul.f32 %v3925, 0.5
      %v3974 = vmul.f32 %v3927, 0.5
      %v3975 = vmul.f32 %v3929, 0.5
      %v3976 = vmul.f32 %v3931, 0.5
      %v3977 = vmul.f32 %v3935, 0.5
      %v3978 = vmul.f32 %v3937, 0.5
      %v3979 = vmul.f32 %v3939, 0.5
      %v3980 = vmul.f32 %v3941, 0.5
      %v3981 = vmul.f32 %v3945, 0.5
      %v3982 = vmul.f32 %v3947, 0.5
      %v3983 = vmul.f32 %v3949, 0.5
      %v3984 = vmul.f32 %v3951, 0.5
      %v3985 = vmul.f32 %v3875, 0.70710677
      %v3986 = vmul.f32 %v3877, 0.70710677
      %v3987 = vmul.f32 %v3879, 0.70710677
      %v3988 = vmul.f32 %v3881, 0.70710677
      %v3989 = vmul.f32 %v3885, 0.70710677
      %v3990 = vmul.f32 %v3887, 0.70710677
      %v3991 = vmul.f32 %v3889, 0.70710677
      %v3992 = vmul.f32 %v3891, 0.70710677
      %v3993 = vmul.f32 %v3895, 0.70710677
      %v3994 = vmul.f32 %v3897, 0.70710677
      %v3995 = vmul.f32 %v3899, 0.70710677
      %v3996 = vmul.f32 %v3901, 0.70710677
      %v3997 = vmul.f32 %v3905, 0.70710677
      %v3998 = vmul.f32 %v3907, 0.70710677
      %v3999 = vmul.f32 %v3909, 0.70710677
      %v4000 = vmul.f32 %v3911, 0.70710677
      %v4001 = vmul.f32 %v3915, 0.70710677
      %v4002 = vmul.f32 %v3917, 0.70710677
      %v4003 = vmul.f32 %v3919, 0.70710677
      %v4004 = vmul.f32 %v3921, 0.70710677
      %v4005 = vmul.f32 %v3925, 0.70710677
      %v4006 = vmul.f32 %v3927, 0.70710677
      %v4007 = vmul.f32 %v3929, 0.70710677
      %v4008 = vmul.f32 %v3931, 0.70710677
      %v4009 = vmul.f32 %v3935, 0.70710677
      %v4010 = vmul.f32 %v3937, 0.70710677
      %v4011 = vmul.f32 %v3939, 0.70710677
      %v4012 = vmul.f32 %v3941, 0.70710677
      %v4013 = vmul.f32 %v3945, 0.70710677
      %v4014 = vmul.f32 %v3947, 0.70710677
      %v4015 = vmul.f32 %v3949, 0.70710677
      %v4016 = vmul.f32 %v3951, 0.70710677
      %v4017 = verf.f32.pop %v3985
      %v4018 = verf.f32.pop %v3986
      %v4019 = verf.f32.pop %v3987
      %v4020 = verf.f32.pop %v3988
      %v4021 = verf.f32.pop %v3989
      %v4022 = verf.f32.pop %v3990
      %v4023 = verf.f32.pop %v3991
      %v4024 = verf.f32.pop %v3992
      %v4025 = verf.f32.pop %v3993
      %v4026 = verf.f32.pop %v3994
      %v4027 = verf.f32.pop %v3995
      %v4028 = verf.f32.pop %v3996
      %v4029 = verf.f32.pop %v3997
      %v4030 = verf.f32.pop %v3998
      %v4031 = verf.f32.pop %v3999
      %v4032 = verf.f32.pop %v4000
      %v4033 = verf.f32.pop %v4001
      %v4034 = verf.f32.pop %v4002
      %v4035 = verf.f32.pop %v4003
      %v4036 = verf.f32.pop %v4004
      %v4037 = verf.f32.pop %v4005
      %v4038 = verf.f32.pop %v4006
      %v4039 = verf.f32.pop %v4007
      %v4040 = verf.f32.pop %v4008
      %v4041 = verf.f32.pop %v4009
      %v4042 = verf.f32.pop %v4010
      %v4043 = verf.f32.pop %v4011
      %v4044 = verf.f32.pop %v4012
      %v4045 = verf.f32.pop %v4013
      %v4046 = verf.f32.pop %v4014
      %v4047 = verf.f32.pop %v4015
      %v4048 = verf.f32.pop %v4016
      %v4049 = vadd.f32 %v4017, 1.0
      %v4050 = vadd.f32 %v4018, 1.0
      %v4051 = vadd.f32 %v4019, 1.0
      %v4052 = vadd.f32 %v4020, 1.0
      %v4053 = vadd.f32 %v4021, 1.0
      %v4054 = vadd.f32 %v4022, 1.0
      %v4055 = vadd.f32 %v4023, 1.0
      %v4056 = vadd.f32 %v4024, 1.0
      %v4057 = vadd.f32 %v4025, 1.0
      %v4058 = vadd.f32 %v4026, 1.0
      %v4059 = vadd.f32 %v4027, 1.0
      %v4060 = vadd.f32 %v4028, 1.0
      %v4061 = vadd.f32 %v4029, 1.0
      %v4062 = vadd.f32 %v4030, 1.0
      %v4063 = vadd.f32 %v4031, 1.0
      %v4064 = vadd.f32 %v4032, 1.0
      %v4065 = vadd.f32 %v4033, 1.0
      %v4066 = vadd.f32 %v4034, 1.0
      %v4067 = vadd.f32 %v4035, 1.0
      %v4068 = vadd.f32 %v4036, 1.0
      %v4069 = vadd.f32 %v4037, 1.0
      %v4070 = vadd.f32 %v4038, 1.0
      %v4071 = vadd.f32 %v4039, 1.0
      %v4072 = vadd.f32 %v4040, 1.0
      %v4073 = vadd.f32 %v4041, 1.0
      %v4074 = vadd.f32 %v4042, 1.0
      %v4075 = vadd.f32 %v4043, 1.0
      %v4076 = vadd.f32 %v4044, 1.0
      %v4077 = vadd.f32 %v4045, 1.0
      %v4078 = vadd.f32 %v4046, 1.0
      %v4079 = vadd.f32 %v4047, 1.0
      %v4080 = vadd.f32 %v4048, 1.0
      %v4081 = vmul.f32 %v3953, %v4049
      %v4082 = vmul.f32 %v3954, %v4050
      %v4083 = vmul.f32 %v3955, %v4051
      %v4084 = vmul.f32 %v3956, %v4052
      %v4085 = vmul.f32 %v3957, %v4053
      %v4086 = vmul.f32 %v3958, %v4054
      %v4087 = vmul.f32 %v3959, %v4055
      %v4088 = vmul.f32 %v3960, %v4056
      %v4089 = vmul.f32 %v3961, %v4057
      %v4090 = vmul.f32 %v3962, %v4058
      %v4091 = vmul.f32 %v3963, %v4059
      %v4092 = vmul.f32 %v3964, %v4060
      %v4093 = vmul.f32 %v3965, %v4061
      %v4094 = vmul.f32 %v3966, %v4062
      %v4095 = vmul.f32 %v3967, %v4063
      %v4096 = vmul.f32 %v3968, %v4064
      %v4097 = vmul.f32 %v3969, %v4065
      %v4098 = vmul.f32 %v3970, %v4066
      %v4099 = vmul.f32 %v3971, %v4067
      %v4100 = vmul.f32 %v3972, %v4068
      %v4101 = vmul.f32 %v3973, %v4069
      %v4102 = vmul.f32 %v3974, %v4070
      %v4103 = vmul.f32 %v3975, %v4071
      %v4104 = vmul.f32 %v3976, %v4072
      %v4105 = vmul.f32 %v3977, %v4073
      %v4106 = vmul.f32 %v3978, %v4074
      %v4107 = vmul.f32 %v3979, %v4075
      %v4108 = vmul.f32 %v3980, %v4076
      %v4109 = vmul.f32 %v3981, %v4077
      %v4110 = vmul.f32 %v3982, %v4078
      %v4111 = vmul.f32 %v3983, %v4079
      %v4112 = vmul.f32 %v3984, %v4080
      %v4113 = vpack.c.bf16 %v4083, %v4081
      %v4114 = vpack.c.bf16 %v4084, %v4082
      %v4115 = vpack.c.bf16 %v4087, %v4085
      %v4116 = vpack.c.bf16 %v4088, %v4086
      %v4117 = vpack.c.bf16 %v4091, %v4089
      %v4118 = vpack.c.bf16 %v4092, %v4090
      %v4119 = vpack.c.bf16 %v4095, %v4093
      %v4120 = vpack.c.bf16 %v4096, %v4094
      %v4121 = vpack.c.bf16 %v4099, %v4097
      %v4122 = vpack.c.bf16 %v4100, %v4098
      %v4123 = vpack.c.bf16 %v4103, %v4101
      %v4124 = vpack.c.bf16 %v4104, %v4102
      %v4125 = vpack.c.bf16 %v4107, %v4105
      %v4126 = vpack.c.bf16 %v4108, %v4106
      %v4127 = vpack.c.bf16 %v4111, %v4109
      %v4128 = vpack.c.bf16 %v4112, %v4110
      %v4129 = vld [vmem:[%s10] sm:$0xf]
      %v4130 = vld [vmem:[%s10 + $0x4] sm:$0xf]
      %v4131 = vld [vmem:[%s10 + $0x8] sm:$0xf]
      %v4132 = vld [vmem:[%s10 + $0xc] sm:$0xf]
      %v4133 = vld [vmem:[%s10 + $0x10] sm:$0xf]
      %v4134 = vld [vmem:[%s10 + $0x14] sm:$0xf]
      %v4135 = vld [vmem:[%s10 + $0x18] sm:$0xf]
      %v4136 = vld [vmem:[%s10 + $0x1c] sm:$0xf]
      %v4137 = vld [vmem:[%s10 + $0x20] sm:$0xf]
      %v4138 = vld [vmem:[%s10 + $0x24] sm:$0xf]
      %v4139 = vld [vmem:[%s10 + $0x28] sm:$0xf]
      %v4140 = vld [vmem:[%s10 + $0x2c] sm:$0xf]
      %v4141 = vld [vmem:[%s10 + $0x30] sm:$0xf]
      %v4142 = vld [vmem:[%s10 + $0x34] sm:$0xf]
      %v4143 = vld [vmem:[%s10 + $0x38] sm:$0xf]
      %v4144 = vld [vmem:[%s10 + $0x3c] sm:$0xf]
      %v4145 = vld [vmem:[%s10 + $0x40] sm:$0xf]
      %v4146 = vld [vmem:[%s10 + $0x44] sm:$0xf]
      %v4147 = vld [vmem:[%s10 + $0x48] sm:$0xf]
      %v4148 = vld [vmem:[%s10 + $0x4c] sm:$0xf]
      %v4149 = vld [vmem:[%s10 + $0x50] sm:$0xf]
      %v4150 = vld [vmem:[%s10 + $0x54] sm:$0xf]
      %v4151 = vld [vmem:[%s10 + $0x58] sm:$0xf]
      %v4152 = vld [vmem:[%s10 + $0x5c] sm:$0xf]
      %v4153 = vld [vmem:[%s10 + $0x60] sm:$0xf]
      %v4154 = vld [vmem:[%s10 + $0x64] sm:$0xf]
      %v4155 = vld [vmem:[%s10 + $0x68] sm:$0xf]
      %v4156 = vld [vmem:[%s10 + $0x6c] sm:$0xf]
      %v4157 = vld [vmem:[%s10 + $0x70] sm:$0xf]
      %v4158 = vld [vmem:[%s10 + $0x74] sm:$0xf]
      %v4159 = vld [vmem:[%s10 + $0x78] sm:$0xf]
      %v4160 = vld [vmem:[%s10 + $0x7c] sm:$0xf]
      %v4161 = vld [vmem:[%s11] sm:$0x1]
      %v4163 = vlaneseq
      %v4164 = vshrl.u32 %v4163, 7
      %v4165 = vsub.s32 0, %v4164
      %v4166 = vrot.slane %v4161, %v4165
      %v4200 = vunpack.c.l.b16 %v4129
      %v4201 = vunpack.c.l.b16 %v4130
      %v4202 = vunpack.c.l.b16 %v4131
      %v4203 = vunpack.c.l.b16 %v4132
      %v4204 = vunpack.c.l.b16 %v4133
      %v4205 = vunpack.c.l.b16 %v4134
      %v4206 = vunpack.c.l.b16 %v4135
      %v4207 = vunpack.c.l.b16 %v4136
      %v4208 = vunpack.c.l.b16 %v4137
      %v4209 = vunpack.c.l.b16 %v4138
      %v4210 = vunpack.c.l.b16 %v4139
      %v4211 = vunpack.c.l.b16 %v4140
      %v4212 = vunpack.c.l.b16 %v4141
      %v4213 = vunpack.c.l.b16 %v4142
      %v4214 = vunpack.c.l.b16 %v4143
      %v4215 = vunpack.c.l.b16 %v4144
      %v4216 = vunpack.c.l.b16 %v4145
      %v4217 = vunpack.c.l.b16 %v4146
      %v4218 = vunpack.c.l.b16 %v4147
      %v4219 = vunpack.c.l.b16 %v4148
      %v4220 = vunpack.c.l.b16 %v4149
      %v4221 = vunpack.c.l.b16 %v4150
      %v4222 = vunpack.c.l.b16 %v4151
      %v4223 = vunpack.c.l.b16 %v4152
      %v4224 = vunpack.c.l.b16 %v4153
      %v4225 = vunpack.c.l.b16 %v4154
      %v4226 = vunpack.c.l.b16 %v4155
      %v4227 = vunpack.c.l.b16 %v4156
      %v4228 = vunpack.c.l.b16 %v4157
      %v4229 = vunpack.c.l.b16 %v4158
      %v4230 = vunpack.c.l.b16 %v4159
      %v4231 = vunpack.c.l.b16 %v4160
      %v4232 = vpack.c.b16 %v4201, %v4200
      %v4233 = vpack.c.b16 %v4203, %v4202
      %v4234 = vpack.c.b16 %v4205, %v4204
      %v4235 = vpack.c.b16 %v4207, %v4206
      %v4236 = vpack.c.b16 %v4209, %v4208
      %v4237 = vpack.c.b16 %v4211, %v4210
      %v4238 = vpack.c.b16 %v4213, %v4212
      %v4239 = vpack.c.b16 %v4215, %v4214
      %v4240 = vpack.c.b16 %v4217, %v4216
      %v4241 = vpack.c.b16 %v4219, %v4218
      %v4242 = vpack.c.b16 %v4221, %v4220
      %v4243 = vpack.c.b16 %v4223, %v4222
      %v4244 = vpack.c.b16 %v4225, %v4224
      %v4245 = vpack.c.b16 %v4227, %v4226
      %v4246 = vpack.c.b16 %v4229, %v4228
      %v4247 = vpack.c.b16 %v4231, %v4230
      %4264 = vmatprep.subr.bf16.mxu0 0
      %4265 = vmatpush1.bf16.msra.mxu0 %v4232
      %4266 = vmatprep.subr.bf16.mxu0 0
      %4267 = vmatpush1.bf16.msra.mxu0 %v4233
      %4268 = vmatprep.subr.bf16.mxu0 0
      %4269 = vmatpush1.bf16.msra.mxu0 %v4234
      %4270 = vmatprep.subr.bf16.mxu0 0
      %4271 = vmatpush1.bf16.msra.mxu0 %v4235
      %4272 = vmatprep.subr.bf16.mxu0 0
      %4273 = vmatpush1.bf16.msra.mxu0 %v4236
      %4274 = vmatprep.subr.bf16.mxu0 0
      %4275 = vmatpush1.bf16.msra.mxu0 %v4237
      %4276 = vmatprep.subr.bf16.mxu0 0
      %4277 = vmatpush1.bf16.msra.mxu0 %v4238
      %4278 = vmatprep.subr.bf16.mxu0 0
      %4279 = vmatpush1.bf16.msra.mxu0 %v4239
      %4280 = vmatprep.subr.bf16.mxu0 0
      %4281 = vmatpush1.bf16.msra.mxu0 %v4240
      %4282 = vmatprep.subr.bf16.mxu0 0
      %4283 = vmatpush1.bf16.msra.mxu0 %v4241
      %4284 = vmatprep.subr.bf16.mxu0 0
      %4285 = vmatpush1.bf16.msra.mxu0 %v4242
      %4286 = vmatprep.subr.bf16.mxu0 0
      %4287 = vmatpush1.bf16.msra.mxu0 %v4243
      %4288 = vmatprep.subr.bf16.mxu0 0
      %4289 = vmatpush1.bf16.msra.mxu0 %v4244
      %4290 = vmatprep.subr.bf16.mxu0 0
      %4291 = vmatpush1.bf16.msra.mxu0 %v4245
      %4292 = vmatprep.subr.bf16.mxu0 0
      %4293 = vmatpush1.bf16.msra.mxu0 %v4246
      %4294 = vmatprep.subr.bf16.mxu0 0
      %4295 = vmatpush1.bf16.msra.mxu0 %v4247
      %4296 = vmatprep.mubr.bf16.mxu0 %v4114
      %4297 = vmatmul.mubr.bf16.gmra.mrb[0].mxu0 %v4113
      %v4298 = vpop.f32.mrb[0].mxu0
      %v4299 = vadd.f32 %v4166, %v4298
      %v4300 = vpop.f32.mrb[0].mxu0
      %v4301 = vpop.f32.mrb[0].mxu0
      %v4302 = vadd.f32 %v4166, %v4301
      %v4303 = vpop.f32.mrb[0].mxu0
      %4304 = vmatprep.mubr.bf16.mxu0 %v4116
      %4305 = vmatmul.mubr.bf16.gmra.mrb[0].mxu0 %v4115
      %v4306 = vpop.f32.mrb[0].mxu0
      %v4307 = vadd.f32 %v4166, %v4306
      %v4308 = vpop.f32.mrb[0].mxu0
      %v4309 = vpop.f32.mrb[0].mxu0
      %v4310 = vadd.f32 %v4166, %v4309
      %v4311 = vpop.f32.mrb[0].mxu0
      %4312 = vmatprep.mubr.bf16.mxu0 %v4118
      %4313 = vmatmul.mubr.bf16.gmra.mrb[0].mxu0 %v4117
      %v4314 = vpop.f32.mrb[0].mxu0
      %v4315 = vadd.f32 %v4166, %v4314
      %v4316 = vpop.f32.mrb[0].mxu0
      %v4317 = vpop.f32.mrb[0].mxu0
      %v4318 = vadd.f32 %v4166, %v4317
      %v4319 = vpop.f32.mrb[0].mxu0
      %4320 = vmatprep.mubr.bf16.mxu0 %v4120
      %4321 = vmatmul.mubr.bf16.gmra.mrb[0].mxu0 %v4119
      %v4322 = vpop.f32.mrb[0].mxu0
      %v4323 = vadd.f32 %v4166, %v4322
      %v4324 = vpop.f32.mrb[0].mxu0
      %v4325 = vpop.f32.mrb[0].mxu0
      %v4326 = vadd.f32 %v4166, %v4325
      %v4327 = vpop.f32.mrb[0].mxu0
      %4328 = vmatprep.mubr.bf16.mxu0 %v4122
      %4329 = vmatmul.mubr.bf16.gmra.mrb[0].mxu0 %v4121
      %v4330 = vpop.f32.mrb[0].mxu0
      %v4331 = vadd.f32 %v4166, %v4330
      %v4332 = vpop.f32.mrb[0].mxu0
      %v4333 = vpop.f32.mrb[0].mxu0
      %v4334 = vadd.f32 %v4166, %v4333
      %v4335 = vpop.f32.mrb[0].mxu0
      %4336 = vmatprep.mubr.bf16.mxu0 %v4124
      %4337 = vmatmul.mubr.bf16.gmra.mrb[0].mxu0 %v4123
      %v4338 = vpop.f32.mrb[0].mxu0
      %v4339 = vadd.f32 %v4166, %v4338
      %v4340 = vpop.f32.mrb[0].mxu0
      %v4341 = vpop.f32.mrb[0].mxu0
      %v4342 = vadd.f32 %v4166, %v4341
      %v4343 = vpop.f32.mrb[0].mxu0
      %4344 = vmatprep.mubr.bf16.mxu0 %v4126
      %4345 = vmatmul.mubr.bf16.gmra.mrb[0].mxu0 %v4125
      %v4346 = vpop.f32.mrb[0].mxu0
      %v4347 = vadd.f32 %v4166, %v4346
      %v4348 = vpop.f32.mrb[0].mxu0
      %v4349 = vpop.f32.mrb[0].mxu0
      %v4350 = vadd.f32 %v4166, %v4349
      %v4351 = vpop.f32.mrb[0].mxu0
      %4352 = vmatprep.mubr.bf16.mxu0 %v4128
      %4353 = vmatmul.mubr.bf16.gmra.mrb[0].mxu0 %v4127
      %v4354 = vpop.f32.mrb[0].mxu0
      %v4355 = vadd.f32 %v4166, %v4354
      %v4356 = vpop.f32.mrb[0].mxu0
      %v4357 = vpop.f32.mrb[0].mxu0
      %v4358 = vadd.f32 %v4166, %v4357
      %v4359 = vpop.f32.mrb[0].mxu0
      %4360 = vdwg.mxu0
      %v4361 = vadd.f32 %v3478, %v4299
      %v4362 = vadd.f32 %v3479, %v4302
      %v4363 = vadd.f32 %v3480, %v4307
      %v4364 = vadd.f32 %v3481, %v4310
      %v4365 = vadd.f32 %v3482, %v4315
      %v4366 = vadd.f32 %v3483, %v4318
      %v4367 = vadd.f32 %v3484, %v4323
      %v4368 = vadd.f32 %v3485, %v4326
      %v4369 = vadd.f32 %v3486, %v4331
      %v4370 = vadd.f32 %v3487, %v4334
      %v4371 = vadd.f32 %v3488, %v4339
      %v4372 = vadd.f32 %v3489, %v4342
      %v4373 = vadd.f32 %v3490, %v4347
      %v4374 = vadd.f32 %v3491, %v4350
      %v4375 = vadd.f32 %v3492, %v4355
      %v4376 = vadd.f32 %v3493, %v4358
      %4377 = vst.msk [vmem:[%s413] sm:$0xff] %vm433, %v4361
      %4378 = vst.msk [vmem:[%s413 + $0x8] sm:$0xff] %vm433, %v4362
      %4379 = vst.msk [vmem:[%s413 + $0x10] sm:$0xff] %vm433, %v4363
      %4380 = vst.msk [vmem:[%s413 + $0x18] sm:$0xff] %vm433, %v4364
      %4381 = vst.msk [vmem:[%s413 + $0x20] sm:$0xff] %vm433, %v4365
      %4382 = vst.msk [vmem:[%s413 + $0x28] sm:$0xff] %vm433, %v4366
      %4383 = vst.msk [vmem:[%s413 + $0x30] sm:$0xff] %vm433, %v4367
      %4384 = vst.msk [vmem:[%s413 + $0x38] sm:$0xff] %vm433, %v4368
      %4385 = vst.msk [vmem:[%s413 + $0x40] sm:$0xff] %vm433, %v4369
      %4386 = vst.msk [vmem:[%s413 + $0x48] sm:$0xff] %vm433, %v4370
      %4387 = vst.msk [vmem:[%s413 + $0x50] sm:$0xff] %vm433, %v4371
      %4388 = vst.msk [vmem:[%s413 + $0x58] sm:$0xff] %vm433, %v4372
      %4389 = vst.msk [vmem:[%s413 + $0x60] sm:$0xff] %vm433, %v4373
      %4390 = vst.msk [vmem:[%s413 + $0x68] sm:$0xff] %vm433, %v4374
      %4391 = vst.msk [vmem:[%s413 + $0x70] sm:$0xff] %vm433, %v4375
      %4392 = vst.msk [vmem:[%s413 + $0x78] sm:$0xff] %vm433, %v4376
      %p4393 = scmp.lt.s32.totalorder %s23, 1
      %s4394 = scalar_select %p4393, %s23, 1
      %s4395 = smul.addr %s4394, 16
      %s4396 = smul.addr %s4395, 8
      %s4397 = scalar_lea.vmem %s12, %s4396
      // Predicated region
      $region69: #{gpt_block.1} parent=67 // pred_check
        %p4398 = pneg %p298
      $region70: #{gpt_block.1} parent=67 // pred_check_branch
        %4400 = sbr.rel (%p4398) target = $region72
      $region71: #{gpt_block.1} parent=67 // pred_region
        _
      $region72: #{gpt_block.1} parent=67 // pred_fallthru
        _
    $region68: #{gpt_block.1} parent=5 // pred_fallthru
      _
    %p4401 = scmp.le.s32.totalorder 2, %s18
    // Predicated region
    $region73: #{gpt_block.1} parent=5 // pred_check
      %p4402 = pneg %p4401
    $region74: #{gpt_block.1} parent=5 // pred_check_branch
      %4404 = sbr.rel (%p4402) target = $region76
    $region75: #{gpt_block.1} parent=5 // pred_region
      %s4405 = ssub.s32 %s18, 2
      // Predicated region
      $region77: #{gpt_block.1} parent=75 // pred_check
        %p4406 = pneg %p304
      $region78: #{gpt_block.1} parent=75 // pred_check_branch
        %4408 = sbr.rel (%p4406) target = $region80
      $region79: #{gpt_block.1} parent=75 // pred_region
        %p4409 = scmp.lt.s32.totalorder %s24, 1
        %s4410 = scalar_select %p4409, %s24, 1
        %s4411 = smul.addr %s4410, 16
        %s4412 = smul.addr %s4411, 8
        %s4413 = scalar_lea.vmem %s12, %s4412
      $region80: #{gpt_block.1} parent=75 // pred_fallthru
        _
    $region76: #{gpt_block.1} parent=5 // pred_fallthru
      _
  $region6: #{gpt_block.1} parent=0 // loop_footer
    %s22 = sadd.s32 1, %s18
  $region7: #{gpt_block.1} parent=0 // loop_footer_branch
    %17 = sbr.rel target = $region3
  $region8: #{gpt_block.1} parent=0 // loop_exit
    _

</llo_original>
